<compile_context>
chip_gen: v5e
topology: v5e:2x2
jax: 0.10.0
libtpu: 0.0.40
codegen_flags: <defaults>
</compile_context>

<pallas_src>
import functools
import math

import jax
import jax.numpy as jnp
from jax import lax
from jax.experimental import pallas as pl
from jax.experimental.pallas import tpu as pltpu


# ----------------------------- helpers -----------------------------

def _round_up(n, m):
    return ((n + m - 1) // m) * m


def _sigmoid(x):
    # sigmoid(x) = 0.5 * tanh(x/2) + 0.5 : single EUP transcendental,
    # avoids the VPU divide sequence of 1/(1+exp(-x)).
    return 0.5 * jnp.tanh(0.5 * x) + 0.5


def _full_spec(shape):
    n = len(shape)
    return pl.BlockSpec(shape, lambda i, _n=n: (0,) * _n)


def _padded_bytes(shape, dtype):
    itemsize = jnp.dtype(dtype).itemsize
    if len(shape) == 1:
        return _round_up(shape[0], 128) * itemsize
    sub = _round_up(shape[-2], 8)
    lane = _round_up(shape[-1], 128)
    lead = math.prod(shape[:-2]) if len(shape) > 2 else 1
    return lead * sub * lane * itemsize


# ----------------------------- the fused kernel -----------------------------

def _fused_kernel(x_ref, cal_ref, win_ref, bin_ref,
                  wih1_ref, whh1_ref, b1_ref, h01_ref, c01_ref,
                  wih2_ref, wc2_ref, whh2_ref, b2_ref, h02_ref, c02_ref,
                  wlog_ref, blog_ref,
                  o_ref,
                  gx1f, gx1b, h1f, h1b, gx2f, gx2b, h2f, h2b,
                  *, T, B, H, NT):
    f32 = jnp.float32
    bf16 = jnp.bfloat16
    TB = T * B
    unroll = True if T <= 8 else 2

    # ---- Phase A: input_layer + tanh, hoisted LSTM-1 input projection -------
    x_bf = x_ref[...].astype(bf16)                                   # (TB, ED)
    xin = jnp.tanh(jnp.dot(x_bf, win_ref[...],
                           preferred_element_type=f32) + bin_ref[...])
    xin_bf = xin.astype(bf16)                                        # (TB, HD)
    gx1f[...] = (jnp.dot(xin_bf, wih1_ref[0], preferred_element_type=f32)
                 + b1_ref[0]).reshape(T, B, 4 * H)
    gx1b[...] = (jnp.dot(xin_bf, wih1_ref[1], preferred_element_type=f32)
                 + b1_ref[1]).reshape(T, B, 4 * H)

    def make_step(gxf, gxb, whhf, whhb, outf, outb, W):
        # One step advances BOTH directions: fwd consumes time t, bwd T-1-t.
        # Gates are sublane-stacked ((2B, 4W), rows [0:B]=fwd, [B:2B]=bwd) so
        # the activation / cell-state math runs once for the two directions.
        def step(t, carry):
            h, c = carry                                             # (2B, W)
            tb = T - 1 - t
            mm_f = jnp.dot(h[0:B].astype(bf16), whhf,
                           preferred_element_type=f32)
            mm_b = jnp.dot(h[B:2 * B].astype(bf16), whhb,
                           preferred_element_type=f32)
            gates = jnp.concatenate([gxf[t] + mm_f, gxb[tb] + mm_b], axis=0)
            # PyTorch gate order i, f, g, o packed contiguously (native width).
            i_g = _sigmoid(gates[:, 0 * W:1 * W])
            f_g = _sigmoid(gates[:, 1 * W:2 * W])
            g_g = jnp.tanh(gates[:, 2 * W:3 * W])
            o_g = _sigmoid(gates[:, 3 * W:4 * W])
            c_new = f_g * c + i_g * g_g
            h_new = o_g * jnp.tanh(c_new)
            outf[t] = h_new[0:B]
            outb[tb] = h_new[B:2 * B]
            return h_new, c_new
        return step

    # ---- Phase B: BiLSTM 1 (fwd + bwd interleaved, state in vregs) ----------
    step1 = make_step(gx1f, gx1b, whh1_ref[0], whh1_ref[1], h1f, h1b, H)
    lax.fori_loop(0, T, step1, (h01_ref[...], c01_ref[...]), unroll=unroll)

    # ---- Phase C: callers concat + hoisted LSTM-2 input projection ----------
    h1cat = jnp.concatenate([h1f[...].reshape(TB, H), h1b[...].reshape(TB, H)],
                            axis=-1).astype(bf16)                    # (TB, 2H)
    cal = cal_ref[...]                                               # (TB, 1)
    gx2f[...] = (jnp.dot(h1cat, wih2_ref[0], preferred_element_type=f32)
                 + cal * wc2_ref[0] + b2_ref[0]).reshape(T, B, 4 * NT)
    gx2b[...] = (jnp.dot(h1cat, wih2_ref[1], preferred_element_type=f32)
                 + cal * wc2_ref[1] + b2_ref[1]).reshape(T, B, 4 * NT)

    # ---- Phase D: BiLSTM 2 (hidden2tag) --------------------------------------
    step2 = make_step(gx2f, gx2b, whh2_ref[0], whh2_ref[1], h2f, h2b, NT)
    lax.fori_loop(0, T, step2, (h02_ref[...], c02_ref[...]), unroll=unroll)

    # ---- Phase E: fused logit Linear, lane-dense (128-wide) output ----------
    h2cat = jnp.concatenate([h2f[...].reshape(TB, NT), h2b[...].reshape(TB, NT)],
                            axis=-1).astype(bf16)                    # (TB, 2NT)
    o_ref[...] = (jnp.dot(h2cat, wlog_ref[...], preferred_element_type=f32)
                  + blog_ref[...])


def pallas_bilstm_dec_cr2(xs, cal, kp, h01, c01, h02, c02,
                          *, T, B, H, NT, NTp):
    operands = (xs, cal, kp["w_in"], kp["b_in"],
                kp["wih1"], kp["whh1"], kp["b1"], h01, c01,
                kp["wih2"], kp["wc2"], kp["whh2"], kp["b2"], h02, c02,
                kp["wlog"], kp["blog"])

    scratch_defs = [
        ((T, B, 4 * H), jnp.float32),    # hoisted gates LSTM1 fwd
        ((T, B, 4 * H), jnp.float32),    # hoisted gates LSTM1 bwd
        ((T, B, H), jnp.float32),        # LSTM1 fwd hidden over time
        ((T, B, H), jnp.float32),        # LSTM1 bwd hidden over time
        ((T, B, 4 * NT), jnp.float32),   # hoisted gates LSTM2 fwd
        ((T, B, 4 * NT), jnp.float32),   # hoisted gates LSTM2 bwd
        ((T, B, NT), jnp.float32),       # LSTM2 fwd hidden over time
        ((T, B, NT), jnp.float32),       # LSTM2 bwd hidden over time
    ]
    scratch = [pltpu.VMEM(s, d) for s, d in scratch_defs]

    # Explicit VMEM budget: double-buffered I/O + scratch, 2x headroom,
    # kept below the v7x 64 MiB physical ceiling.
    est = sum(2 * _padded_bytes(op.shape, op.dtype) for op in operands)
    est += 2 * _padded_bytes((T * B, NTp), jnp.float32)
    est += sum(_padded_bytes(s, d) for s, d in scratch_defs)
    vmem_limit = int(min(96 * 2**20, max(32 * 2**20, 2 * est)))

    kernel = functools.partial(_fused_kernel, T=T, B=B, H=H, NT=NT)
    return pl.pallas_call(
        kernel,
        out_shape=jax.ShapeDtypeStruct((T * B, NTp), jnp.float32),
        grid=(1,),
        in_specs=[_full_spec(op.shape) for op in operands],
        out_specs=_full_spec((T * B, NTp)),
        scratch_shapes=scratch,
        compiler_params=pltpu.CompilerParams(
            dimension_semantics=("arbitrary",),
            vmem_limit_bytes=vmem_limit),
    )(*operands)


# ----------------------------- parameter init (PyTorch-shaped) ---------------

def init_params(key, embedding_dim, hidden_dim, num_tag):
    H = hidden_dim // 2
    ks = jax.random.split(key, 4)

    def lin(k, i, o):
        k1, k2 = jax.random.split(k)
        bd = 1.0 / math.sqrt(i)
        return {"w": jax.random.uniform(k1, (i, o), jnp.float32, -bd, bd),
                "b": jax.random.uniform(k2, (o,), jnp.float32, -bd, bd)}

    def bilstm(k, i, h):
        kk = jax.random.split(k, 8)
        bd = 1.0 / math.sqrt(h)

        def u(kx, s):
            return jax.random.uniform(kx, s, jnp.float32, -bd, bd)

        return {"wih_f": u(kk[0], (i, 4 * h)), "whh_f": u(kk[1], (h, 4 * h)),
                "b_f": u(kk[2], (4 * h,)) + u(kk[3], (4 * h,)),     # b_ih + b_hh
                "wih_b": u(kk[4], (i, 4 * h)), "whh_b": u(kk[5], (h, 4 * h)),
                "b_b": u(kk[6], (4 * h,)) + u(kk[7], (4 * h,))}

    return {
        "input_layer": lin(ks[0], embedding_dim, hidden_dim),
        "lstm": bilstm(ks[1], hidden_dim, H),
        "hidden2tag": bilstm(ks[2], hidden_dim + 1, num_tag),
        "logit": lin(ks[3], 2 * num_tag, num_tag),
        # NOTE: aux_hidden2tag exists in __init__ but is never used in forward().
    }


# --------------------- pack params into the kernel layout --------------------

def prepare_kernel_params(p, hidden_dim, num_tag):
    """Pack PyTorch-shaped params: native (unpadded) gate width, bf16 MXU
    operands, logit weights/bias zero-padded to a 128-lane output slab."""
    del hidden_dim  # gate widths are native; no lane padding needed
    NT = num_tag
    NTp = _round_up(NT, 128)
    bf16 = jnp.bfloat16

    # BiLSTM 1: gates packed contiguously at native width 4*H.
    wih1 = jnp.stack([p["lstm"]["wih_f"], p["lstm"]["wih_b"]]).astype(bf16)
    whh1 = jnp.stack([p["lstm"]["whh_f"], p["lstm"]["whh_b"]]).astype(bf16)
    b1 = jnp.stack([p["lstm"]["b_f"], p["lstm"]["b_b"]])[:, None, :]

    # BiLSTM 2 (hidden2tag): torch.cat([callers, x], 2) -> caller is input
    # feature 0, features 1..hd are the BiLSTM-1 output [fwd | bwd].
    wc2 = jnp.stack([p["hidden2tag"]["wih_f"][0:1],
                     p["hidden2tag"]["wih_b"][0:1]])                   # (2,1,4NT)
    wih2 = jnp.stack([p["hidden2tag"]["wih_f"][1:],
                      p["hidden2tag"]["wih_b"][1:]]).astype(bf16)      # (2,2H,4NT)
    whh2 = jnp.stack([p["hidden2tag"]["whh_f"],
                      p["hidden2tag"]["whh_b"]]).astype(bf16)          # (2,NT,4NT)
    b2 = jnp.stack([p["hidden2tag"]["b_f"], p["hidden2tag"]["b_b"]])[:, None, :]

    # logit Linear(2*num_tag, num_tag): rows 0..NT-1 act on the fwd hidden,
    # NT..2NT-1 on the bwd hidden (PyTorch bidirectional output order).
    # Columns are zero-padded to 128 lanes so the final store is lane-dense.
    wlog = jnp.zeros((2 * NT, NTp), jnp.float32).at[:, :NT].set(p["logit"]["w"])
    blog = jnp.zeros((1, NTp), jnp.float32).at[0, :NT].set(p["logit"]["b"])

    return {
        "w_in": p["input_layer"]["w"].astype(bf16),              # (ed, hd)
        "b_in": p["input_layer"]["b"][None, :],                  # (1, hd)
        "wih1": wih1, "whh1": whh1, "b1": b1,
        "wih2": wih2, "wc2": wc2, "whh2": whh2, "b2": b2,
        "wlog": wlog.astype(bf16), "blog": blog,
    }


# ----------------------------- full forward -----------------------------

def bilstm_dec_cr2_forward(kp, x, callers, hidden_key, *, hidden_dim, num_tag):
    """x: (b, c, embedding_dim), callers: (b, c) -> list of c tensors (b, num_tag)."""
    b, c, ed = x.shape
    H = hidden_dim // 2
    NT = num_tag
    NTp = _round_up(NT, 128)
    T, B = c, b

    # nn.Dropout(dropout_rate=0.0) -> identity.  Time-major, (T*B, .) flat
    # (sublane-dense HBM transfers).
    xs = jnp.transpose(x, (1, 0, 2)).reshape(T * B, ed)
    cal = jnp.transpose(callers, (1, 0)).reshape(T * B, 1).astype(jnp.float32)

    # init_hidden / init_hidden_logit use torch.randn in the reference;
    # reproduced with jax.random.normal.  Row blocks: [0:B]=fwd, [B:2B]=bwd.
    k = jax.random.split(hidden_key, 4)
    h01 = jax.random.normal(k[0], (2 * B, H), jnp.float32)
    c01 = jax.random.normal(k[1], (2 * B, H), jnp.float32)
    h02 = jax.random.normal(k[2], (2 * B, NT), jnp.float32)
    c02 = jax.random.normal(k[3], (2 * B, NT), jnp.float32)

    logits = pallas_bilstm_dec_cr2(xs, cal, kp, h01, c01, h02, c02,
                                   T=T, B=B, H=H, NT=NT, NTp=NTp)   # (T*B, NTp)

    out = logits[:, :NT].reshape(T, B, NT).transpose(1, 0, 2)       # (b, c, NT)
    return [out[:, i, :] for i in range(T)]


# ----------------------------- demo / main -----------------------------

if __name__ == "__main__":
    b, c = 2, 8                       # batch, conversation length (seq dim)
    embedding_dim = 32
    hidden_dim = 64                   # -> per-direction hidden = 32
    num_tag = 4

    key = jax.random.PRNGKey(0)
    k_par, k_x, k_cal, k_hid = jax.random.split(key, 4)

    params = init_params(k_par, embedding_dim, hidden_dim, num_tag)
    kparams = prepare_kernel_params(params, hidden_dim, num_tag)

    x = jax.random.normal(k_x, (b, c, embedding_dim), jnp.float32)
    callers = jax.random.bernoulli(k_cal, 0.5, (b, c)).astype(jnp.float32)

    fwd = jax.jit(functools.partial(bilstm_dec_cr2_forward,
                                    hidden_dim=hidden_dim, num_tag=num_tag))
    outputs = fwd(kparams, x, callers, k_hid)
    outputs = jax.block_until_ready(outputs)

    assert len(outputs) == c
    for o in outputs:
        assert o.shape == (b, num_tag)
        assert bool(jnp.all(jnp.isfinite(o)))

    print("KERNEL_OK")
</pallas_src>

<mosaic_0001>
module attributes {stable_mosaic.version = 11 : i64} {
  func.func @_fused_kernel(%arg0: i32, %arg1: memref<16x32xf32, #tpu.memory_space<vmem>>, %arg2: memref<16x1xf32, #tpu.memory_space<vmem>>, %arg3: memref<32x64xbf16, #tpu.memory_space<vmem>>, %arg4: memref<1x64xf32, #tpu.memory_space<vmem>>, %arg5: memref<2x64x128xbf16, #tpu.memory_space<vmem>>, %arg6: memref<2x32x128xbf16, #tpu.memory_space<vmem>>, %arg7: memref<2x1x128xf32, #tpu.memory_space<vmem>>, %arg8: memref<4x32xf32, #tpu.memory_space<vmem>>, %arg9: memref<4x32xf32, #tpu.memory_space<vmem>>, %arg10: memref<2x64x16xbf16, #tpu.memory_space<vmem>>, %arg11: memref<2x1x16xf32, #tpu.memory_space<vmem>>, %arg12: memref<2x4x16xbf16, #tpu.memory_space<vmem>>, %arg13: memref<2x1x16xf32, #tpu.memory_space<vmem>>, %arg14: memref<4x4xf32, #tpu.memory_space<vmem>>, %arg15: memref<4x4xf32, #tpu.memory_space<vmem>>, %arg16: memref<8x128xbf16, #tpu.memory_space<vmem>>, %arg17: memref<1x128xf32, #tpu.memory_space<vmem>>, %arg18: memref<16x128xf32, #tpu.memory_space<vmem>>, %arg19: memref<8x2x128xf32, #tpu.memory_space<vmem>>, %arg20: memref<8x2x128xf32, #tpu.memory_space<vmem>>, %arg21: memref<8x2x32xf32, #tpu.memory_space<vmem>>, %arg22: memref<8x2x32xf32, #tpu.memory_space<vmem>>, %arg23: memref<8x2x16xf32, #tpu.memory_space<vmem>>, %arg24: memref<8x2x16xf32, #tpu.memory_space<vmem>>, %arg25: memref<8x2x4xf32, #tpu.memory_space<vmem>>, %arg26: memref<8x2x4xf32, #tpu.memory_space<vmem>>) attributes {dimension_semantics = [#tpu.dimension_semantics<arbitrary>], iteration_bounds = array<i64: 1>, scalar_prefetch = 0 : i64, scratch_operands = 8 : i64, tpu.core_type = #tpu.core_type<tc>, window_params = [{pipeline_mode = #tpu.pipeline_mode<synchronous>, transform_indices = @transform_0, window_bounds = array<i64: 16, 32>}, {pipeline_mode = #tpu.pipeline_mode<synchronous>, transform_indices = @transform_1, window_bounds = array<i64: 16, 1>}, {pipeline_mode = #tpu.pipeline_mode<synchronous>, transform_indices = @transform_2, window_bounds = array<i64: 32, 64>}, {pipeline_mode = #tpu.pipeline_mode<synchronous>, transform_indices = @transform_3, window_bounds = array<i64: 1, 64>}, {pipeline_mode = #tpu.pipeline_mode<synchronous>, transform_indices = @transform_4, window_bounds = array<i64: 2, 64, 128>}, {pipeline_mode = #tpu.pipeline_mode<synchronous>, transform_indices = @transform_5, window_bounds = array<i64: 2, 32, 128>}, {pipeline_mode = #tpu.pipeline_mode<synchronous>, transform_indices = @transform_6, window_bounds = array<i64: 2, 1, 128>}, {pipeline_mode = #tpu.pipeline_mode<synchronous>, transform_indices = @transform_7, window_bounds = array<i64: 4, 32>}, {pipeline_mode = #tpu.pipeline_mode<synchronous>, transform_indices = @transform_8, window_bounds = array<i64: 4, 32>}, {pipeline_mode = #tpu.pipeline_mode<synchronous>, transform_indices = @transform_9, window_bounds = array<i64: 2, 64, 16>}, {pipeline_mode = #tpu.pipeline_mode<synchronous>, transform_indices = @transform_10, window_bounds = array<i64: 2, 1, 16>}, {pipeline_mode = #tpu.pipeline_mode<synchronous>, transform_indices = @transform_11, window_bounds = array<i64: 2, 4, 16>}, {pipeline_mode = #tpu.pipeline_mode<synchronous>, transform_indices = @transform_12, window_bounds = array<i64: 2, 1, 16>}, {pipeline_mode = #tpu.pipeline_mode<synchronous>, transform_indices = @transform_13, window_bounds = array<i64: 4, 4>}, {pipeline_mode = #tpu.pipeline_mode<synchronous>, transform_indices = @transform_14, window_bounds = array<i64: 4, 4>}, {pipeline_mode = #tpu.pipeline_mode<synchronous>, transform_indices = @transform_15, window_bounds = array<i64: 8, 128>}, {pipeline_mode = #tpu.pipeline_mode<synchronous>, transform_indices = @transform_16, window_bounds = array<i64: 1, 128>}, {pipeline_mode = #tpu.pipeline_mode<synchronous>, transform_indices = @transform_17, window_bounds = array<i64: 16, 128>}]} {
    %c0 = arith.constant 0 : index
    %c0_0 = arith.constant 0 : index
    %0 = vector.load %arg1[%c0, %c0_0] : memref<16x32xf32, #tpu.memory_space<vmem>>, vector<16x32xf32>
    %1 = arith.truncf %0 : vector<16x32xf32> to vector<16x32xbf16>
    %c0_1 = arith.constant 0 : index
    %c0_2 = arith.constant 0 : index
    %2 = vector.load %arg3[%c0_1, %c0_2] : memref<32x64xbf16, #tpu.memory_space<vmem>>, vector<32x64xbf16>
    %cst = arith.constant dense<0.000000e+00> : vector<16x64xf32>
    %3 = tpu.matmul %1, %2, %cst {dimension_numbers = #tpu.dot_dimension_numbers<[1], [0], [0], [1], [0, 0, 1, 1], [], []>} : vector<16x32xbf16>, vector<32x64xbf16>, vector<16x64xf32> -> vector<16x64xf32>
    %c0_3 = arith.constant 0 : index
    %c0_4 = arith.constant 0 : index
    %4 = vector.load %arg4[%c0_3, %c0_4] : memref<1x64xf32, #tpu.memory_space<vmem>>, vector<1x64xf32>
    %5 = vector.broadcast %4 : vector<1x64xf32> to vector<16x64xf32>
    %6 = arith.addf %3, %5 : vector<16x64xf32>
    %7 = math.tanh %6 : vector<16x64xf32>
    %8 = arith.truncf %7 : vector<16x64xf32> to vector<16x64xbf16>
    %c0_5 = arith.constant 0 : index
    %c0_6 = arith.constant 0 : index
    %c0_7 = arith.constant 0 : index
    %9 = vector.load %arg5[%c0_5, %c0_6, %c0_7] : memref<2x64x128xbf16, #tpu.memory_space<vmem>>, vector<1x64x128xbf16>
    %10 = vector.shape_cast %9 : vector<1x64x128xbf16> to vector<64x128xbf16>
    %cst_8 = arith.constant dense<0.000000e+00> : vector<16x128xf32>
    %11 = tpu.matmul %8, %10, %cst_8 {dimension_numbers = #tpu.dot_dimension_numbers<[1], [0], [0], [1], [0, 0, 1, 1], [], []>} : vector<16x64xbf16>, vector<64x128xbf16>, vector<16x128xf32> -> vector<16x128xf32>
    %c0_9 = arith.constant 0 : index
    %c0_10 = arith.constant 0 : index
    %c0_11 = arith.constant 0 : index
    %12 = vector.load %arg7[%c0_9, %c0_10, %c0_11] : memref<2x1x128xf32, #tpu.memory_space<vmem>>, vector<1x1x128xf32>
    %13 = vector.shape_cast %12 : vector<1x1x128xf32> to vector<1x128xf32>
    %14 = vector.broadcast %13 : vector<1x128xf32> to vector<16x128xf32>
    %15 = arith.addf %11, %14 : vector<16x128xf32>
    %16 = vector.shape_cast %15 : vector<16x128xf32> to vector<8x2x128xf32>
    %c0_12 = arith.constant 0 : index
    %c0_13 = arith.constant 0 : index
    %c0_14 = arith.constant 0 : index
    %17 = vector.load %arg19[%c0_12, %c0_13, %c0_14] : memref<8x2x128xf32, #tpu.memory_space<vmem>>, vector<8x2x128xf32>
    tpu.vector_store %arg19[%c0_12, %c0_13, %c0_14], %16 {strides = array<i32>} : memref<8x2x128xf32, #tpu.memory_space<vmem>>, vector<8x2x128xf32>,
    %c1 = arith.constant 1 : index
    %c0_15 = arith.constant 0 : index
    %c0_16 = arith.constant 0 : index
    %18 = vector.load %arg5[%c1, %c0_15, %c0_16] : memref<2x64x128xbf16, #tpu.memory_space<vmem>>, vector<1x64x128xbf16>
    %19 = vector.shape_cast %18 : vector<1x64x128xbf16> to vector<64x128xbf16>
    %cst_17 = arith.constant dense<0.000000e+00> : vector<16x128xf32>
    %20 = tpu.matmul %8, %19, %cst_17 {dimension_numbers = #tpu.dot_dimension_numbers<[1], [0], [0], [1], [0, 0, 1, 1], [], []>} : vector<16x64xbf16>, vector<64x128xbf16>, vector<16x128xf32> -> vector<16x128xf32>
    %c1_18 = arith.constant 1 : index
    %c0_19 = arith.constant 0 : index
    %c0_20 = arith.constant 0 : index
    %21 = vector.load %arg7[%c1_18, %c0_19, %c0_20] : memref<2x1x128xf32, #tpu.memory_space<vmem>>, vector<1x1x128xf32>
    %22 = vector.shape_cast %21 : vector<1x1x128xf32> to vector<1x128xf32>
    %23 = vector.broadcast %22 : vector<1x128xf32> to vector<16x128xf32>
    %24 = arith.addf %20, %23 : vector<16x128xf32>
    %25 = vector.shape_cast %24 : vector<16x128xf32> to vector<8x2x128xf32>
    %c0_21 = arith.constant 0 : index
    %c0_22 = arith.constant 0 : index
    %c0_23 = arith.constant 0 : index
    %26 = vector.load %arg20[%c0_21, %c0_22, %c0_23] : memref<8x2x128xf32, #tpu.memory_space<vmem>>, vector<8x2x128xf32>
    tpu.vector_store %arg20[%c0_21, %c0_22, %c0_23], %25 {strides = array<i32>} : memref<8x2x128xf32, #tpu.memory_space<vmem>>, vector<8x2x128xf32>,
    %c0_24 = arith.constant 0 : index
    %c0_25 = arith.constant 0 : index
    %c0_26 = arith.constant 0 : index
    %27 = vector.load %arg6[%c0_24, %c0_25, %c0_26] : memref<2x32x128xbf16, #tpu.memory_space<vmem>>, vector<1x32x128xbf16>
    %28 = vector.shape_cast %27 : vector<1x32x128xbf16> to vector<32x128xbf16>
    %c1_27 = arith.constant 1 : index
    %c0_28 = arith.constant 0 : index
    %c0_29 = arith.constant 0 : index
    %29 = vector.load %arg6[%c1_27, %c0_28, %c0_29] : memref<2x32x128xbf16, #tpu.memory_space<vmem>>, vector<1x32x128xbf16>
    %30 = vector.shape_cast %29 : vector<1x32x128xbf16> to vector<32x128xbf16>
    %c0_30 = arith.constant 0 : index
    %c0_31 = arith.constant 0 : index
    %31 = vector.load %arg8[%c0_30, %c0_31] : memref<4x32xf32, #tpu.memory_space<vmem>>, vector<4x32xf32>
    %c0_32 = arith.constant 0 : index
    %c0_33 = arith.constant 0 : index
    %32 = vector.load %arg9[%c0_32, %c0_33] : memref<4x32xf32, #tpu.memory_space<vmem>>, vector<4x32xf32>
    %c0_i32 = arith.constant 0 : i32
    %c7_i32 = arith.constant 7 : i32
    %33 = arith.subi %c7_i32, %c0_i32 : i32
    %34 = vector.extract_strided_slice %31 {offsets = [0, 0], sizes = [2, 32], strides = [1, 1]} : vector<4x32xf32> to vector<2x32xf32>
    %35 = arith.truncf %34 : vector<2x32xf32> to vector<2x32xbf16>
    %cst_34 = arith.constant dense<0.000000e+00> : vector<2x128xf32>
    %36 = tpu.matmul %35, %28, %cst_34 {dimension_numbers = #tpu.dot_dimension_numbers<[1], [0], [0], [1], [0, 0, 1, 1], [], []>} : vector<2x32xbf16>, vector<32x128xbf16>, vector<2x128xf32> -> vector<2x128xf32>
    %37 = vector.extract_strided_slice %31 {offsets = [2, 0], sizes = [2, 32], strides = [1, 1]} : vector<4x32xf32> to vector<2x32xf32>
    %38 = arith.truncf %37 : vector<2x32xf32> to vector<2x32xbf16>
    %cst_35 = arith.constant dense<0.000000e+00> : vector<2x128xf32>
    %39 = tpu.matmul %38, %30, %cst_35 {dimension_numbers = #tpu.dot_dimension_numbers<[1], [0], [0], [1], [0, 0, 1, 1], [], []>} : vector<2x32xbf16>, vector<32x128xbf16>, vector<2x128xf32> -> vector<2x128xf32>
    %40 = arith.index_cast %c0_i32 : i32 to index
    %c0_36 = arith.constant 0 : index
    %c0_37 = arith.constant 0 : index
    %41 = vector.load %arg19[%40, %c0_36, %c0_37] : memref<8x2x128xf32, #tpu.memory_space<vmem>>, vector<1x2x128xf32>
    %42 = vector.shape_cast %41 : vector<1x2x128xf32> to vector<2x128xf32>
    %43 = arith.addf %42, %36 : vector<2x128xf32>
    %44 = arith.index_cast %33 : i32 to index
    %c0_38 = arith.constant 0 : index
    %c0_39 = arith.constant 0 : index
    %45 = vector.load %arg20[%44, %c0_38, %c0_39] : memref<8x2x128xf32, #tpu.memory_space<vmem>>, vector<1x2x128xf32>
    %46 = vector.shape_cast %45 : vector<1x2x128xf32> to vector<2x128xf32>
    %47 = arith.addf %46, %39 : vector<2x128xf32>
    %48 = tpu.concatenate %43, %47 in 0 : vector<2x128xf32>, vector<2x128xf32> -> vector<4x128xf32>
    %49 = vector.extract_strided_slice %48 {offsets = [0, 0], sizes = [4, 32], strides = [1, 1]} : vector<4x128xf32> to vector<4x32xf32>
    %cst_40 = arith.constant 5.000000e-01 : f32
    %50 = vector.broadcast %cst_40 : f32 to vector<4x32xf32>
    %51 = arith.mulf %50, %49 : vector<4x32xf32>
    %52 = math.tanh %51 : vector<4x32xf32>
    %cst_41 = arith.constant 5.000000e-01 : f32
    %53 = vector.broadcast %cst_41 : f32 to vector<4x32xf32>
    %54 = arith.mulf %53, %52 : vector<4x32xf32>
    %cst_42 = arith.constant 5.000000e-01 : f32
    %55 = vector.broadcast %cst_42 : f32 to vector<4x32xf32>
    %56 = arith.addf %54, %55 : vector<4x32xf32>
    %57 = vector.extract_strided_slice %48 {offsets = [0, 32], sizes = [4, 32], strides = [1, 1]} : vector<4x128xf32> to vector<4x32xf32>
    %cst_43 = arith.constant 5.000000e-01 : f32
    %58 = vector.broadcast %cst_43 : f32 to vector<4x32xf32>
    %59 = arith.mulf %58, %57 : vector<4x32xf32>
    %60 = math.tanh %59 : vector<4x32xf32>
    %cst_44 = arith.constant 5.000000e-01 : f32
    %61 = vector.broadcast %cst_44 : f32 to vector<4x32xf32>
    %62 = arith.mulf %61, %60 : vector<4x32xf32>
    %cst_45 = arith.constant 5.000000e-01 : f32
    %63 = vector.broadcast %cst_45 : f32 to vector<4x32xf32>
    %64 = arith.addf %62, %63 : vector<4x32xf32>
    %65 = vector.extract_strided_slice %48 {offsets = [0, 64], sizes = [4, 32], strides = [1, 1]} : vector<4x128xf32> to vector<4x32xf32>
    %66 = math.tanh %65 : vector<4x32xf32>
    %67 = vector.extract_strided_slice %48 {offsets = [0, 96], sizes = [4, 32], strides = [1, 1]} : vector<4x128xf32> to vector<4x32xf32>
    %cst_46 = arith.constant 5.000000e-01 : f32
    %68 = vector.broadcast %cst_46 : f32 to vector<4x32xf32>
    %69 = arith.mulf %68, %67 : vector<4x32xf32>
    %70 = math.tanh %69 : vector<4x32xf32>
    %cst_47 = arith.constant 5.000000e-01 : f32
    %71 = vector.broadcast %cst_47 : f32 to vector<4x32xf32>
    %72 = arith.mulf %71, %70 : vector<4x32xf32>
    %cst_48 = arith.constant 5.000000e-01 : f32
    %73 = vector.broadcast %cst_48 : f32 to vector<4x32xf32>
    %74 = arith.addf %72, %73 : vector<4x32xf32>
    %75 = arith.mulf %64, %32 : vector<4x32xf32>
    %76 = arith.mulf %56, %66 : vector<4x32xf32>
    %77 = arith.addf %75, %76 : vector<4x32xf32>
    %78 = math.tanh %77 : vector<4x32xf32>
    %79 = arith.mulf %74, %78 : vector<4x32xf32>
    %80 = vector.extract_strided_slice %79 {offsets = [0, 0], sizes = [2, 32], strides = [1, 1]} : vector<4x32xf32> to vector<2x32xf32>
    %81 = arith.index_cast %c0_i32 : i32 to index
    %c0_49 = arith.constant 0 : index
    %c0_50 = arith.constant 0 : index
    %82 = vector.load %arg21[%81, %c0_49, %c0_50] : memref<8x2x32xf32, #tpu.memory_space<vmem>>, vector<1x2x32xf32>
    %83 = vector.shape_cast %82 : vector<1x2x32xf32> to vector<2x32xf32>
    %84 = vector.shape_cast %80 : vector<2x32xf32> to vector<1x2x32xf32>
    tpu.vector_store %arg21[%81, %c0_49, %c0_50], %84 {strides = array<i32>} : memref<8x2x32xf32, #tpu.memory_space<vmem>>, vector<1x2x32xf32>,
    %85 = vector.extract_strided_slice %79 {offsets = [2, 0], sizes = [2, 32], strides = [1, 1]} : vector<4x32xf32> to vector<2x32xf32>
    %86 = arith.index_cast %33 : i32 to index
    %c0_51 = arith.constant 0 : index
    %c0_52 = arith.constant 0 : index
    %87 = vector.load %arg22[%86, %c0_51, %c0_52] : memref<8x2x32xf32, #tpu.memory_space<vmem>>, vector<1x2x32xf32>
    %88 = vector.shape_cast %87 : vector<1x2x32xf32> to vector<2x32xf32>
    %89 = vector.shape_cast %85 : vector<2x32xf32> to vector<1x2x32xf32>
    tpu.vector_store %arg22[%86, %c0_51, %c0_52], %89 {strides = array<i32>} : memref<8x2x32xf32, #tpu.memory_space<vmem>>, vector<1x2x32xf32>,
    %c1_i32 = arith.constant 1 : i32
    %c7_i32_53 = arith.constant 7 : i32
    %90 = arith.subi %c7_i32_53, %c1_i32 : i32
    %91 = vector.extract_strided_slice %79 {offsets = [0, 0], sizes = [2, 32], strides = [1, 1]} : vector<4x32xf32> to vector<2x32xf32>
    %92 = arith.truncf %91 : vector<2x32xf32> to vector<2x32xbf16>
    %cst_54 = arith.constant dense<0.000000e+00> : vector<2x128xf32>
    %93 = tpu.matmul %92, %28, %cst_54 {dimension_numbers = #tpu.dot_dimension_numbers<[1], [0], [0], [1], [0, 0, 1, 1], [], []>} : vector<2x32xbf16>, vector<32x128xbf16>, vector<2x128xf32> -> vector<2x128xf32>
    %94 = vector.extract_strided_slice %79 {offsets = [2, 0], sizes = [2, 32], strides = [1, 1]} : vector<4x32xf32> to vector<2x32xf32>
    %95 = arith.truncf %94 : vector<2x32xf32> to vector<2x32xbf16>
    %cst_55 = arith.constant dense<0.000000e+00> : vector<2x128xf32>
    %96 = tpu.matmul %95, %30, %cst_55 {dimension_numbers = #tpu.dot_dimension_numbers<[1], [0], [0], [1], [0, 0, 1, 1], [], []>} : vector<2x32xbf16>, vector<32x128xbf16>, vector<2x128xf32> -> vector<2x128xf32>
    %97 = arith.index_cast %c1_i32 : i32 to index
    %c0_56 = arith.constant 0 : index
    %c0_57 = arith.constant 0 : index
    %98 = vector.load %arg19[%97, %c0_56, %c0_57] : memref<8x2x128xf32, #tpu.memory_space<vmem>>, vector<1x2x128xf32>
    %99 = vector.shape_cast %98 : vector<1x2x128xf32> to vector<2x128xf32>
    %100 = arith.addf %99, %93 : vector<2x128xf32>
    %101 = arith.index_cast %90 : i32 to index
    %c0_58 = arith.constant 0 : index
    %c0_59 = arith.constant 0 : index
    %102 = vector.load %arg20[%101, %c0_58, %c0_59] : memref<8x2x128xf32, #tpu.memory_space<vmem>>, vector<1x2x128xf32>
    %103 = vector.shape_cast %102 : vector<1x2x128xf32> to vector<2x128xf32>
    %104 = arith.addf %103, %96 : vector<2x128xf32>
    %105 = tpu.concatenate %100, %104 in 0 : vector<2x128xf32>, vector<2x128xf32> -> vector<4x128xf32>
    %106 = vector.extract_strided_slice %105 {offsets = [0, 0], sizes = [4, 32], strides = [1, 1]} : vector<4x128xf32> to vector<4x32xf32>
    %cst_60 = arith.constant 5.000000e-01 : f32
    %107 = vector.broadcast %cst_60 : f32 to vector<4x32xf32>
    %108 = arith.mulf %107, %106 : vector<4x32xf32>
    %109 = math.tanh %108 : vector<4x32xf32>
    %cst_61 = arith.constant 5.000000e-01 : f32
    %110 = vector.broadcast %cst_61 : f32 to vector<4x32xf32>
    %111 = arith.mulf %110, %109 : vector<4x32xf32>
    %cst_62 = arith.constant 5.000000e-01 : f32
    %112 = vector.broadcast %cst_62 : f32 to vector<4x32xf32>
    %113 = arith.addf %111, %112 : vector<4x32xf32>
    %114 = vector.extract_strided_slice %105 {offsets = [0, 32], sizes = [4, 32], strides = [1, 1]} : vector<4x128xf32> to vector<4x32xf32>
    %cst_63 = arith.constant 5.000000e-01 : f32
    %115 = vector.broadcast %cst_63 : f32 to vector<4x32xf32>
    %116 = arith.mulf %115, %114 : vector<4x32xf32>
    %117 = math.tanh %116 : vector<4x32xf32>
    %cst_64 = arith.constant 5.000000e-01 : f32
    %118 = vector.broadcast %cst_64 : f32 to vector<4x32xf32>
    %119 = arith.mulf %118, %117 : vector<4x32xf32>
    %cst_65 = arith.constant 5.000000e-01 : f32
    %120 = vector.broadcast %cst_65 : f32 to vector<4x32xf32>
    %121 = arith.addf %119, %120 : vector<4x32xf32>
    %122 = vector.extract_strided_slice %105 {offsets = [0, 64], sizes = [4, 32], strides = [1, 1]} : vector<4x128xf32> to vector<4x32xf32>
    %123 = math.tanh %122 : vector<4x32xf32>
    %124 = vector.extract_strided_slice %105 {offsets = [0, 96], sizes = [4, 32], strides = [1, 1]} : vector<4x128xf32> to vector<4x32xf32>
    %cst_66 = arith.constant 5.000000e-01 : f32
    %125 = vector.broadcast %cst_66 : f32 to vector<4x32xf32>
    %126 = arith.mulf %125, %124 : vector<4x32xf32>
    %127 = math.tanh %126 : vector<4x32xf32>
    %cst_67 = arith.constant 5.000000e-01 : f32
    %128 = vector.broadcast %cst_67 : f32 to vector<4x32xf32>
    %129 = arith.mulf %128, %127 : vector<4x32xf32>
    %cst_68 = arith.constant 5.000000e-01 : f32
    %130 = vector.broadcast %cst_68 : f32 to vector<4x32xf32>
    %131 = arith.addf %129, %130 : vector<4x32xf32>
    %132 = arith.mulf %121, %77 : vector<4x32xf32>
    %133 = arith.mulf %113, %123 : vector<4x32xf32>
    %134 = arith.addf %132, %133 : vector<4x32xf32>
    %135 = math.tanh %134 : vector<4x32xf32>
    %136 = arith.mulf %131, %135 : vector<4x32xf32>
    %137 = vector.extract_strided_slice %136 {offsets = [0, 0], sizes = [2, 32], strides = [1, 1]} : vector<4x32xf32> to vector<2x32xf32>
    %138 = arith.index_cast %c1_i32 : i32 to index
    %c0_69 = arith.constant 0 : index
    %c0_70 = arith.constant 0 : index
    %139 = vector.load %arg21[%138, %c0_69, %c0_70] : memref<8x2x32xf32, #tpu.memory_space<vmem>>, vector<1x2x32xf32>
    %140 = vector.shape_cast %139 : vector<1x2x32xf32> to vector<2x32xf32>
    %141 = vector.shape_cast %137 : vector<2x32xf32> to vector<1x2x32xf32>
    tpu.vector_store %arg21[%138, %c0_69, %c0_70], %141 {strides = array<i32>} : memref<8x2x32xf32, #tpu.memory_space<vmem>>, vector<1x2x32xf32>,
    %142 = vector.extract_strided_slice %136 {offsets = [2, 0], sizes = [2, 32], strides = [1, 1]} : vector<4x32xf32> to vector<2x32xf32>
    %143 = arith.index_cast %90 : i32 to index
    %c0_71 = arith.constant 0 : index
    %c0_72 = arith.constant 0 : index
    %144 = vector.load %arg22[%143, %c0_71, %c0_72] : memref<8x2x32xf32, #tpu.memory_space<vmem>>, vector<1x2x32xf32>
    %145 = vector.shape_cast %144 : vector<1x2x32xf32> to vector<2x32xf32>
    %146 = vector.shape_cast %142 : vector<2x32xf32> to vector<1x2x32xf32>
    tpu.vector_store %arg22[%143, %c0_71, %c0_72], %146 {strides = array<i32>} : memref<8x2x32xf32, #tpu.memory_space<vmem>>, vector<1x2x32xf32>,
    %c2_i32 = arith.constant 2 : i32
    %c7_i32_73 = arith.constant 7 : i32
    %147 = arith.subi %c7_i32_73, %c2_i32 : i32
    %148 = vector.extract_strided_slice %136 {offsets = [0, 0], sizes = [2, 32], strides = [1, 1]} : vector<4x32xf32> to vector<2x32xf32>
    %149 = arith.truncf %148 : vector<2x32xf32> to vector<2x32xbf16>
    %cst_74 = arith.constant dense<0.000000e+00> : vector<2x128xf32>
    %150 = tpu.matmul %149, %28, %cst_74 {dimension_numbers = #tpu.dot_dimension_numbers<[1], [0], [0], [1], [0, 0, 1, 1], [], []>} : vector<2x32xbf16>, vector<32x128xbf16>, vector<2x128xf32> -> vector<2x128xf32>
    %151 = vector.extract_strided_slice %136 {offsets = [2, 0], sizes = [2, 32], strides = [1, 1]} : vector<4x32xf32> to vector<2x32xf32>
    %152 = arith.truncf %151 : vector<2x32xf32> to vector<2x32xbf16>
    %cst_75 = arith.constant dense<0.000000e+00> : vector<2x128xf32>
    %153 = tpu.matmul %152, %30, %cst_75 {dimension_numbers = #tpu.dot_dimension_numbers<[1], [0], [0], [1], [0, 0, 1, 1], [], []>} : vector<2x32xbf16>, vector<32x128xbf16>, vector<2x128xf32> -> vector<2x128xf32>
    %154 = arith.index_cast %c2_i32 : i32 to index
    %c0_76 = arith.constant 0 : index
    %c0_77 = arith.constant 0 : index
    %155 = vector.load %arg19[%154, %c0_76, %c0_77] : memref<8x2x128xf32, #tpu.memory_space<vmem>>, vector<1x2x128xf32>
    %156 = vector.shape_cast %155 : vector<1x2x128xf32> to vector<2x128xf32>
    %157 = arith.addf %156, %150 : vector<2x128xf32>
    %158 = arith.index_cast %147 : i32 to index
    %c0_78 = arith.constant 0 : index
    %c0_79 = arith.constant 0 : index
    %159 = vector.load %arg20[%158, %c0_78, %c0_79] : memref<8x2x128xf32, #tpu.memory_space<vmem>>, vector<1x2x128xf32>
    %160 = vector.shape_cast %159 : vector<1x2x128xf32> to vector<2x128xf32>
    %161 = arith.addf %160, %153 : vector<2x128xf32>
    %162 = tpu.concatenate %157, %161 in 0 : vector<2x128xf32>, vector<2x128xf32> -> vector<4x128xf32>
    %163 = vector.extract_strided_slice %162 {offsets = [0, 0], sizes = [4, 32], strides = [1, 1]} : vector<4x128xf32> to vector<4x32xf32>
    %cst_80 = arith.constant 5.000000e-01 : f32
    %164 = vector.broadcast %cst_80 : f32 to vector<4x32xf32>
    %165 = arith.mulf %164, %163 : vector<4x32xf32>
    %166 = math.tanh %165 : vector<4x32xf32>
    %cst_81 = arith.constant 5.000000e-01 : f32
    %167 = vector.broadcast %cst_81 : f32 to vector<4x32xf32>
    %168 = arith.mulf %167, %166 : vector<4x32xf32>
    %cst_82 = arith.constant 5.000000e-01 : f32
    %169 = vector.broadcast %cst_82 : f32 to vector<4x32xf32>
    %170 = arith.addf %168, %169 : vector<4x32xf32>
    %171 = vector.extract_strided_slice %162 {offsets = [0, 32], sizes = [4, 32], strides = [1, 1]} : vector<4x128xf32> to vector<4x32xf32>
    %cst_83 = arith.constant 5.000000e-01 : f32
    %172 = vector.broadcast %cst_83 : f32 to vector<4x32xf32>
    %173 = arith.mulf %172, %171 : vector<4x32xf32>
    %174 = math.tanh %173 : vector<4x32xf32>
    %cst_84 = arith.constant 5.000000e-01 : f32
    %175 = vector.broadcast %cst_84 : f32 to vector<4x32xf32>
    %176 = arith.mulf %175, %174 : vector<4x32xf32>
    %cst_85 = arith.constant 5.000000e-01 : f32
    %177 = vector.broadcast %cst_85 : f32 to vector<4x32xf32>
    %178 = arith.addf %176, %177 : vector<4x32xf32>
    %179 = vector.extract_strided_slice %162 {offsets = [0, 64], sizes = [4, 32], strides = [1, 1]} : vector<4x128xf32> to vector<4x32xf32>
    %180 = math.tanh %179 : vector<4x32xf32>
    %181 = vector.extract_strided_slice %162 {offsets = [0, 96], sizes = [4, 32], strides = [1, 1]} : vector<4x128xf32> to vector<4x32xf32>
    %cst_86 = arith.constant 5.000000e-01 : f32
    %182 = vector.broadcast %cst_86 : f32 to vector<4x32xf32>
    %183 = arith.mulf %182, %181 : vector<4x32xf32>
    %184 = math.tanh %183 : vector<4x32xf32>
    %cst_87 = arith.constant 5.000000e-01 : f32
    %185 = vector.broadcast %cst_87 : f32 to vector<4x32xf32>
    %186 = arith.mulf %185, %184 : vector<4x32xf32>
    %cst_88 = arith.constant 5.000000e-01 : f32
    %187 = vector.broadcast %cst_88 : f32 to vector<4x32xf32>
    %188 = arith.addf %186, %187 : vector<4x32xf32>
    %189 = arith.mulf %178, %134 : vector<4x32xf32>
    %190 = arith.mulf %170, %180 : vector<4x32xf32>
    %191 = arith.addf %189, %190 : vector<4x32xf32>
    %192 = math.tanh %191 : vector<4x32xf32>
    %193 = arith.mulf %188, %192 : vector<4x32xf32>
    %194 = vector.extract_strided_slice %193 {offsets = [0, 0], sizes = [2, 32], strides = [1, 1]} : vector<4x32xf32> to vector<2x32xf32>
    %195 = arith.index_cast %c2_i32 : i32 to index
    %c0_89 = arith.constant 0 : index
    %c0_90 = arith.constant 0 : index
    %196 = vector.load %arg21[%195, %c0_89, %c0_90] : memref<8x2x32xf32, #tpu.memory_space<vmem>>, vector<1x2x32xf32>
    %197 = vector.shape_cast %196 : vector<1x2x32xf32> to vector<2x32xf32>
    %198 = vector.shape_cast %194 : vector<2x32xf32> to vector<1x2x32xf32>
    tpu.vector_store %arg21[%195, %c0_89, %c0_90], %198 {strides = array<i32>} : memref<8x2x32xf32, #tpu.memory_space<vmem>>, vector<1x2x32xf32>,
    %199 = vector.extract_strided_slice %193 {offsets = [2, 0], sizes = [2, 32], strides = [1, 1]} : vector<4x32xf32> to vector<2x32xf32>
    %200 = arith.index_cast %147 : i32 to index
    %c0_91 = arith.constant 0 : index
    %c0_92 = arith.constant 0 : index
    %201 = vector.load %arg22[%200, %c0_91, %c0_92] : memref<8x2x32xf32, #tpu.memory_space<vmem>>, vector<1x2x32xf32>
    %202 = vector.shape_cast %201 : vector<1x2x32xf32> to vector<2x32xf32>
    %203 = vector.shape_cast %199 : vector<2x32xf32> to vector<1x2x32xf32>
    tpu.vector_store %arg22[%200, %c0_91, %c0_92], %203 {strides = array<i32>} : memref<8x2x32xf32, #tpu.memory_space<vmem>>, vector<1x2x32xf32>,
    %c3_i32 = arith.constant 3 : i32
    %c7_i32_93 = arith.constant 7 : i32
    %204 = arith.subi %c7_i32_93, %c3_i32 : i32
    %205 = vector.extract_strided_slice %193 {offsets = [0, 0], sizes = [2, 32], strides = [1, 1]} : vector<4x32xf32> to vector<2x32xf32>
    %206 = arith.truncf %205 : vector<2x32xf32> to vector<2x32xbf16>
    %cst_94 = arith.constant dense<0.000000e+00> : vector<2x128xf32>
    %207 = tpu.matmul %206, %28, %cst_94 {dimension_numbers = #tpu.dot_dimension_numbers<[1], [0], [0], [1], [0, 0, 1, 1], [], []>} : vector<2x32xbf16>, vector<32x128xbf16>, vector<2x128xf32> -> vector<2x128xf32>
    %208 = vector.extract_strided_slice %193 {offsets = [2, 0], sizes = [2, 32], strides = [1, 1]} : vector<4x32xf32> to vector<2x32xf32>
    %209 = arith.truncf %208 : vector<2x32xf32> to vector<2x32xbf16>
    %cst_95 = arith.constant dense<0.000000e+00> : vector<2x128xf32>
    %210 = tpu.matmul %209, %30, %cst_95 {dimension_numbers = #tpu.dot_dimension_numbers<[1], [0], [0], [1], [0, 0, 1, 1], [], []>} : vector<2x32xbf16>, vector<32x128xbf16>, vector<2x128xf32> -> vector<2x128xf32>
    %211 = arith.index_cast %c3_i32 : i32 to index
    %c0_96 = arith.constant 0 : index
    %c0_97 = arith.constant 0 : index
    %212 = vector.load %arg19[%211, %c0_96, %c0_97] : memref<8x2x128xf32, #tpu.memory_space<vmem>>, vector<1x2x128xf32>
    %213 = vector.shape_cast %212 : vector<1x2x128xf32> to vector<2x128xf32>
    %214 = arith.addf %213, %207 : vector<2x128xf32>
    %215 = arith.index_cast %204 : i32 to index
    %c0_98 = arith.constant 0 : index
    %c0_99 = arith.constant 0 : index
    %216 = vector.load %arg20[%215, %c0_98, %c0_99] : memref<8x2x128xf32, #tpu.memory_space<vmem>>, vector<1x2x128xf32>
    %217 = vector.shape_cast %216 : vector<1x2x128xf32> to vector<2x128xf32>
    %218 = arith.addf %217, %210 : vector<2x128xf32>
    %219 = tpu.concatenate %214, %218 in 0 : vector<2x128xf32>, vector<2x128xf32> -> vector<4x128xf32>
    %220 = vector.extract_strided_slice %219 {offsets = [0, 0], sizes = [4, 32], strides = [1, 1]} : vector<4x128xf32> to vector<4x32xf32>
    %cst_100 = arith.constant 5.000000e-01 : f32
    %221 = vector.broadcast %cst_100 : f32 to vector<4x32xf32>
    %222 = arith.mulf %221, %220 : vector<4x32xf32>
    %223 = math.tanh %222 : vector<4x32xf32>
    %cst_101 = arith.constant 5.000000e-01 : f32
    %224 = vector.broadcast %cst_101 : f32 to vector<4x32xf32>
    %225 = arith.mulf %224, %223 : vector<4x32xf32>
    %cst_102 = arith.constant 5.000000e-01 : f32
    %226 = vector.broadcast %cst_102 : f32 to vector<4x32xf32>
    %227 = arith.addf %225, %226 : vector<4x32xf32>
    %228 = vector.extract_strided_slice %219 {offsets = [0, 32], sizes = [4, 32], strides = [1, 1]} : vector<4x128xf32> to vector<4x32xf32>
    %cst_103 = arith.constant 5.000000e-01 : f32
    %229 = vector.broadcast %cst_103 : f32 to vector<4x32xf32>
    %230 = arith.mulf %229, %228 : vector<4x32xf32>
    %231 = math.tanh %230 : vector<4x32xf32>
    %cst_104 = arith.constant 5.000000e-01 : f32
    %232 = vector.broadcast %cst_104 : f32 to vector<4x32xf32>
    %233 = arith.mulf %232, %231 : vector<4x32xf32>
    %cst_105 = arith.constant 5.000000e-01 : f32
    %234 = vector.broadcast %cst_105 : f32 to vector<4x32xf32>
    %235 = arith.addf %233, %234 : vector<4x32xf32>
    %236 = vector.extract_strided_slice %219 {offsets = [0, 64], sizes = [4, 32], strides = [1, 1]} : vector<4x128xf32> to vector<4x32xf32>
    %237 = math.tanh %236 : vector<4x32xf32>
    %238 = vector.extract_strided_slice %219 {offsets = [0, 96], sizes = [4, 32], strides = [1, 1]} : vector<4x128xf32> to vector<4x32xf32>
    %cst_106 = arith.constant 5.000000e-01 : f32
    %239 = vector.broadcast %cst_106 : f32 to vector<4x32xf32>
    %240 = arith.mulf %239, %238 : vector<4x32xf32>
    %241 = math.tanh %240 : vector<4x32xf32>
    %cst_107 = arith.constant 5.000000e-01 : f32
    %242 = vector.broadcast %cst_107 : f32 to vector<4x32xf32>
    %243 = arith.mulf %242, %241 : vector<4x32xf32>
    %cst_108 = arith.constant 5.000000e-01 : f32
    %244 = vector.broadcast %cst_108 : f32 to vector<4x32xf32>
    %245 = arith.addf %243, %244 : vector<4x32xf32>
    %246 = arith.mulf %235, %191 : vector<4x32xf32>
    %247 = arith.mulf %227, %237 : vector<4x32xf32>
    %248 = arith.addf %246, %247 : vector<4x32xf32>
    %249 = math.tanh %248 : vector<4x32xf32>
    %250 = arith.mulf %245, %249 : vector<4x32xf32>
    %251 = vector.extract_strided_slice %250 {offsets = [0, 0], sizes = [2, 32], strides = [1, 1]} : vector<4x32xf32> to vector<2x32xf32>
    %252 = arith.index_cast %c3_i32 : i32 to index
    %c0_109 = arith.constant 0 : index
    %c0_110 = arith.constant 0 : index
    %253 = vector.load %arg21[%252, %c0_109, %c0_110] : memref<8x2x32xf32, #tpu.memory_space<vmem>>, vector<1x2x32xf32>
    %254 = vector.shape_cast %253 : vector<1x2x32xf32> to vector<2x32xf32>
    %255 = vector.shape_cast %251 : vector<2x32xf32> to vector<1x2x32xf32>
    tpu.vector_store %arg21[%252, %c0_109, %c0_110], %255 {strides = array<i32>} : memref<8x2x32xf32, #tpu.memory_space<vmem>>, vector<1x2x32xf32>,
    %256 = vector.extract_strided_slice %250 {offsets = [2, 0], sizes = [2, 32], strides = [1, 1]} : vector<4x32xf32> to vector<2x32xf32>
    %257 = arith.index_cast %204 : i32 to index
    %c0_111 = arith.constant 0 : index
    %c0_112 = arith.constant 0 : index
    %258 = vector.load %arg22[%257, %c0_111, %c0_112] : memref<8x2x32xf32, #tpu.memory_space<vmem>>, vector<1x2x32xf32>
    %259 = vector.shape_cast %258 : vector<1x2x32xf32> to vector<2x32xf32>
    %260 = vector.shape_cast %256 : vector<2x32xf32> to vector<1x2x32xf32>
    tpu.vector_store %arg22[%257, %c0_111, %c0_112], %260 {strides = array<i32>} : memref<8x2x32xf32, #tpu.memory_space<vmem>>, vector<1x2x32xf32>,
    %c4_i32 = arith.constant 4 : i32
    %c7_i32_113 = arith.constant 7 : i32
    %261 = arith.subi %c7_i32_113, %c4_i32 : i32
    %262 = vector.extract_strided_slice %250 {offsets = [0, 0], sizes = [2, 32], strides = [1, 1]} : vector<4x32xf32> to vector<2x32xf32>
    %263 = arith.truncf %262 : vector<2x32xf32> to vector<2x32xbf16>
    %cst_114 = arith.constant dense<0.000000e+00> : vector<2x128xf32>
    %264 = tpu.matmul %263, %28, %cst_114 {dimension_numbers = #tpu.dot_dimension_numbers<[1], [0], [0], [1], [0, 0, 1, 1], [], []>} : vector<2x32xbf16>, vector<32x128xbf16>, vector<2x128xf32> -> vector<2x128xf32>
    %265 = vector.extract_strided_slice %250 {offsets = [2, 0], sizes = [2, 32], strides = [1, 1]} : vector<4x32xf32> to vector<2x32xf32>
    %266 = arith.truncf %265 : vector<2x32xf32> to vector<2x32xbf16>
    %cst_115 = arith.constant dense<0.000000e+00> : vector<2x128xf32>
    %267 = tpu.matmul %266, %30, %cst_115 {dimension_numbers = #tpu.dot_dimension_numbers<[1], [0], [0], [1], [0, 0, 1, 1], [], []>} : vector<2x32xbf16>, vector<32x128xbf16>, vector<2x128xf32> -> vector<2x128xf32>
    %268 = arith.index_cast %c4_i32 : i32 to index
    %c0_116 = arith.constant 0 : index
    %c0_117 = arith.constant 0 : index
    %269 = vector.load %arg19[%268, %c0_116, %c0_117] : memref<8x2x128xf32, #tpu.memory_space<vmem>>, vector<1x2x128xf32>
    %270 = vector.shape_cast %269 : vector<1x2x128xf32> to vector<2x128xf32>
    %271 = arith.addf %270, %264 : vector<2x128xf32>
    %272 = arith.index_cast %261 : i32 to index
    %c0_118 = arith.constant 0 : index
    %c0_119 = arith.constant 0 : index
    %273 = vector.load %arg20[%272, %c0_118, %c0_119] : memref<8x2x128xf32, #tpu.memory_space<vmem>>, vector<1x2x128xf32>
    %274 = vector.shape_cast %273 : vector<1x2x128xf32> to vector<2x128xf32>
    %275 = arith.addf %274, %267 : vector<2x128xf32>
    %276 = tpu.concatenate %271, %275 in 0 : vector<2x128xf32>, vector<2x128xf32> -> vector<4x128xf32>
    %277 = vector.extract_strided_slice %276 {offsets = [0, 0], sizes = [4, 32], strides = [1, 1]} : vector<4x128xf32> to vector<4x32xf32>
    %cst_120 = arith.constant 5.000000e-01 : f32
    %278 = vector.broadcast %cst_120 : f32 to vector<4x32xf32>
    %279 = arith.mulf %278, %277 : vector<4x32xf32>
    %280 = math.tanh %279 : vector<4x32xf32>
    %cst_121 = arith.constant 5.000000e-01 : f32
    %281 = vector.broadcast %cst_121 : f32 to vector<4x32xf32>
    %282 = arith.mulf %281, %280 : vector<4x32xf32>
    %cst_122 = arith.constant 5.000000e-01 : f32
    %283 = vector.broadcast %cst_122 : f32 to vector<4x32xf32>
    %284 = arith.addf %282, %283 : vector<4x32xf32>
    %285 = vector.extract_strided_slice %276 {offsets = [0, 32], sizes = [4, 32], strides = [1, 1]} : vector<4x128xf32> to vector<4x32xf32>
    %cst_123 = arith.constant 5.000000e-01 : f32
    %286 = vector.broadcast %cst_123 : f32 to vector<4x32xf32>
    %287 = arith.mulf %286, %285 : vector<4x32xf32>
    %288 = math.tanh %287 : vector<4x32xf32>
    %cst_124 = arith.constant 5.000000e-01 : f32
    %289 = vector.broadcast %cst_124 : f32 to vector<4x32xf32>
    %290 = arith.mulf %289, %288 : vector<4x32xf32>
    %cst_125 = arith.constant 5.000000e-01 : f32
    %291 = vector.broadcast %cst_125 : f32 to vector<4x32xf32>
    %292 = arith.addf %290, %291 : vector<4x32xf32>
    %293 = vector.extract_strided_slice %276 {offsets = [0, 64], sizes = [4, 32], strides = [1, 1]} : vector<4x128xf32> to vector<4x32xf32>
    %294 = math.tanh %293 : vector<4x32xf32>
    %295 = vector.extract_strided_slice %276 {offsets = [0, 96], sizes = [4, 32], strides = [1, 1]} : vector<4x128xf32> to vector<4x32xf32>
    %cst_126 = arith.constant 5.000000e-01 : f32
    %296 = vector.broadcast %cst_126 : f32 to vector<4x32xf32>
    %297 = arith.mulf %296, %295 : vector<4x32xf32>
    %298 = math.tanh %297 : vector<4x32xf32>
    %cst_127 = arith.constant 5.000000e-01 : f32
    %299 = vector.broadcast %cst_127 : f32 to vector<4x32xf32>
    %300 = arith.mulf %299, %298 : vector<4x32xf32>
    %cst_128 = arith.constant 5.000000e-01 : f32
    %301 = vector.broadcast %cst_128 : f32 to vector<4x32xf32>
    %302 = arith.addf %300, %301 : vector<4x32xf32>
    %303 = arith.mulf %292, %248 : vector<4x32xf32>
    %304 = arith.mulf %284, %294 : vector<4x32xf32>
    %305 = arith.addf %303, %304 : vector<4x32xf32>
    %306 = math.tanh %305 : vector<4x32xf32>
    %307 = arith.mulf %302, %306 : vector<4x32xf32>
    %308 = vector.extract_strided_slice %307 {offsets = [0, 0], sizes = [2, 32], strides = [1, 1]} : vector<4x32xf32> to vector<2x32xf32>
    %309 = arith.index_cast %c4_i32 : i32 to index
    %c0_129 = arith.constant 0 : index
    %c0_130 = arith.constant 0 : index
    %310 = vector.load %arg21[%309, %c0_129, %c0_130] : memref<8x2x32xf32, #tpu.memory_space<vmem>>, vector<1x2x32xf32>
    %311 = vector.shape_cast %310 : vector<1x2x32xf32> to vector<2x32xf32>
    %312 = vector.shape_cast %308 : vector<2x32xf32> to vector<1x2x32xf32>
    tpu.vector_store %arg21[%309, %c0_129, %c0_130], %312 {strides = array<i32>} : memref<8x2x32xf32, #tpu.memory_space<vmem>>, vector<1x2x32xf32>,
    %313 = vector.extract_strided_slice %307 {offsets = [2, 0], sizes = [2, 32], strides = [1, 1]} : vector<4x32xf32> to vector<2x32xf32>
    %314 = arith.index_cast %261 : i32 to index
    %c0_131 = arith.constant 0 : index
    %c0_132 = arith.constant 0 : index
    %315 = vector.load %arg22[%314, %c0_131, %c0_132] : memref<8x2x32xf32, #tpu.memory_space<vmem>>, vector<1x2x32xf32>
    %316 = vector.shape_cast %315 : vector<1x2x32xf32> to vector<2x32xf32>
    %317 = vector.shape_cast %313 : vector<2x32xf32> to vector<1x2x32xf32>
    tpu.vector_store %arg22[%314, %c0_131, %c0_132], %317 {strides = array<i32>} : memref<8x2x32xf32, #tpu.memory_space<vmem>>, vector<1x2x32xf32>,
    %c5_i32 = arith.constant 5 : i32
    %c7_i32_133 = arith.constant 7 : i32
    %318 = arith.subi %c7_i32_133, %c5_i32 : i32
    %319 = vector.extract_strided_slice %307 {offsets = [0, 0], sizes = [2, 32], strides = [1, 1]} : vector<4x32xf32> to vector<2x32xf32>
    %320 = arith.truncf %319 : vector<2x32xf32> to vector<2x32xbf16>
    %cst_134 = arith.constant dense<0.000000e+00> : vector<2x128xf32>
    %321 = tpu.matmul %320, %28, %cst_134 {dimension_numbers = #tpu.dot_dimension_numbers<[1], [0], [0], [1], [0, 0, 1, 1], [], []>} : vector<2x32xbf16>, vector<32x128xbf16>, vector<2x128xf32> -> vector<2x128xf32>
    %322 = vector.extract_strided_slice %307 {offsets = [2, 0], sizes = [2, 32], strides = [1, 1]} : vector<4x32xf32> to vector<2x32xf32>
    %323 = arith.truncf %322 : vector<2x32xf32> to vector<2x32xbf16>
    %cst_135 = arith.constant dense<0.000000e+00> : vector<2x128xf32>
    %324 = tpu.matmul %323, %30, %cst_135 {dimension_numbers = #tpu.dot_dimension_numbers<[1], [0], [0], [1], [0, 0, 1, 1], [], []>} : vector<2x32xbf16>, vector<32x128xbf16>, vector<2x128xf32> -> vector<2x128xf32>
    %325 = arith.index_cast %c5_i32 : i32 to index
    %c0_136 = arith.constant 0 : index
    %c0_137 = arith.constant 0 : index
    %326 = vector.load %arg19[%325, %c0_136, %c0_137] : memref<8x2x128xf32, #tpu.memory_space<vmem>>, vector<1x2x128xf32>
    %327 = vector.shape_cast %326 : vector<1x2x128xf32> to vector<2x128xf32>
    %328 = arith.addf %327, %321 : vector<2x128xf32>
    %329 = arith.index_cast %318 : i32 to index
    %c0_138 = arith.constant 0 : index
    %c0_139 = arith.constant 0 : index
    %330 = vector.load %arg20[%329, %c0_138, %c0_139] : memref<8x2x128xf32, #tpu.memory_space<vmem>>, vector<1x2x128xf32>
    %331 = vector.shape_cast %330 : vector<1x2x128xf32> to vector<2x128xf32>
    %332 = arith.addf %331, %324 : vector<2x128xf32>
    %333 = tpu.concatenate %328, %332 in 0 : vector<2x128xf32>, vector<2x128xf32> -> vector<4x128xf32>
    %334 = vector.extract_strided_slice %333 {offsets = [0, 0], sizes = [4, 32], strides = [1, 1]} : vector<4x128xf32> to vector<4x32xf32>
    %cst_140 = arith.constant 5.000000e-01 : f32
    %335 = vector.broadcast %cst_140 : f32 to vector<4x32xf32>
    %336 = arith.mulf %335, %334 : vector<4x32xf32>
    %337 = math.tanh %336 : vector<4x32xf32>
    %cst_141 = arith.constant 5.000000e-01 : f32
    %338 = vector.broadcast %cst_141 : f32 to vector<4x32xf32>
    %339 = arith.mulf %338, %337 : vector<4x32xf32>
    %cst_142 = arith.constant 5.000000e-01 : f32
    %340 = vector.broadcast %cst_142 : f32 to vector<4x32xf32>
    %341 = arith.addf %339, %340 : vector<4x32xf32>
    %342 = vector.extract_strided_slice %333 {offsets = [0, 32], sizes = [4, 32], strides = [1, 1]} : vector<4x128xf32> to vector<4x32xf32>
    %cst_143 = arith.constant 5.000000e-01 : f32
    %343 = vector.broadcast %cst_143 : f32 to vector<4x32xf32>
    %344 = arith.mulf %343, %342 : vector<4x32xf32>
    %345 = math.tanh %344 : vector<4x32xf32>
    %cst_144 = arith.constant 5.000000e-01 : f32
    %346 = vector.broadcast %cst_144 : f32 to vector<4x32xf32>
    %347 = arith.mulf %346, %345 : vector<4x32xf32>
    %cst_145 = arith.constant 5.000000e-01 : f32
    %348 = vector.broadcast %cst_145 : f32 to vector<4x32xf32>
    %349 = arith.addf %347, %348 : vector<4x32xf32>
    %350 = vector.extract_strided_slice %333 {offsets = [0, 64], sizes = [4, 32], strides = [1, 1]} : vector<4x128xf32> to vector<4x32xf32>
    %351 = math.tanh %350 : vector<4x32xf32>
    %352 = vector.extract_strided_slice %333 {offsets = [0, 96], sizes = [4, 32], strides = [1, 1]} : vector<4x128xf32> to vector<4x32xf32>
    %cst_146 = arith.constant 5.000000e-01 : f32
    %353 = vector.broadcast %cst_146 : f32 to vector<4x32xf32>
    %354 = arith.mulf %353, %352 : vector<4x32xf32>
    %355 = math.tanh %354 : vector<4x32xf32>
    %cst_147 = arith.constant 5.000000e-01 : f32
    %356 = vector.broadcast %cst_147 : f32 to vector<4x32xf32>
    %357 = arith.mulf %356, %355 : vector<4x32xf32>
    %cst_148 = arith.constant 5.000000e-01 : f32
    %358 = vector.broadcast %cst_148 : f32 to vector<4x32xf32>
    %359 = arith.addf %357, %358 : vector<4x32xf32>
    %360 = arith.mulf %349, %305 : vector<4x32xf32>
    %361 = arith.mulf %341, %351 : vector<4x32xf32>
    %362 = arith.addf %360, %361 : vector<4x32xf32>
    %363 = math.tanh %362 : vector<4x32xf32>
    %364 = arith.mulf %359, %363 : vector<4x32xf32>
    %365 = vector.extract_strided_slice %364 {offsets = [0, 0], sizes = [2, 32], strides = [1, 1]} : vector<4x32xf32> to vector<2x32xf32>
    %366 = arith.index_cast %c5_i32 : i32 to index
    %c0_149 = arith.constant 0 : index
    %c0_150 = arith.constant 0 : index
    %367 = vector.load %arg21[%366, %c0_149, %c0_150] : memref<8x2x32xf32, #tpu.memory_space<vmem>>, vector<1x2x32xf32>
    %368 = vector.shape_cast %367 : vector<1x2x32xf32> to vector<2x32xf32>
    %369 = vector.shape_cast %365 : vector<2x32xf32> to vector<1x2x32xf32>
    tpu.vector_store %arg21[%366, %c0_149, %c0_150], %369 {strides = array<i32>} : memref<8x2x32xf32, #tpu.memory_space<vmem>>, vector<1x2x32xf32>,
    %370 = vector.extract_strided_slice %364 {offsets = [2, 0], sizes = [2, 32], strides = [1, 1]} : vector<4x32xf32> to vector<2x32xf32>
    %371 = arith.index_cast %318 : i32 to index
    %c0_151 = arith.constant 0 : index
    %c0_152 = arith.constant 0 : index
    %372 = vector.load %arg22[%371, %c0_151, %c0_152] : memref<8x2x32xf32, #tpu.memory_space<vmem>>, vector<1x2x32xf32>
    %373 = vector.shape_cast %372 : vector<1x2x32xf32> to vector<2x32xf32>
    %374 = vector.shape_cast %370 : vector<2x32xf32> to vector<1x2x32xf32>
    tpu.vector_store %arg22[%371, %c0_151, %c0_152], %374 {strides = array<i32>} : memref<8x2x32xf32, #tpu.memory_space<vmem>>, vector<1x2x32xf32>,
    %c6_i32 = arith.constant 6 : i32
    %c7_i32_153 = arith.constant 7 : i32
    %375 = arith.subi %c7_i32_153, %c6_i32 : i32
    %376 = vector.extract_strided_slice %364 {offsets = [0, 0], sizes = [2, 32], strides = [1, 1]} : vector<4x32xf32> to vector<2x32xf32>
    %377 = arith.truncf %376 : vector<2x32xf32> to vector<2x32xbf16>
    %cst_154 = arith.constant dense<0.000000e+00> : vector<2x128xf32>
    %378 = tpu.matmul %377, %28, %cst_154 {dimension_numbers = #tpu.dot_dimension_numbers<[1], [0], [0], [1], [0, 0, 1, 1], [], []>} : vector<2x32xbf16>, vector<32x128xbf16>, vector<2x128xf32> -> vector<2x128xf32>
    %379 = vector.extract_strided_slice %364 {offsets = [2, 0], sizes = [2, 32], strides = [1, 1]} : vector<4x32xf32> to vector<2x32xf32>
    %380 = arith.truncf %379 : vector<2x32xf32> to vector<2x32xbf16>
    %cst_155 = arith.constant dense<0.000000e+00> : vector<2x128xf32>
    %381 = tpu.matmul %380, %30, %cst_155 {dimension_numbers = #tpu.dot_dimension_numbers<[1], [0], [0], [1], [0, 0, 1, 1], [], []>} : vector<2x32xbf16>, vector<32x128xbf16>, vector<2x128xf32> -> vector<2x128xf32>
    %382 = arith.index_cast %c6_i32 : i32 to index
    %c0_156 = arith.constant 0 : index
    %c0_157 = arith.constant 0 : index
    %383 = vector.load %arg19[%382, %c0_156, %c0_157] : memref<8x2x128xf32, #tpu.memory_space<vmem>>, vector<1x2x128xf32>
    %384 = vector.shape_cast %383 : vector<1x2x128xf32> to vector<2x128xf32>
    %385 = arith.addf %384, %378 : vector<2x128xf32>
    %386 = arith.index_cast %375 : i32 to index
    %c0_158 = arith.constant 0 : index
    %c0_159 = arith.constant 0 : index
    %387 = vector.load %arg20[%386, %c0_158, %c0_159] : memref<8x2x128xf32, #tpu.memory_space<vmem>>, vector<1x2x128xf32>
    %388 = vector.shape_cast %387 : vector<1x2x128xf32> to vector<2x128xf32>
    %389 = arith.addf %388, %381 : vector<2x128xf32>
    %390 = tpu.concatenate %385, %389 in 0 : vector<2x128xf32>, vector<2x128xf32> -> vector<4x128xf32>
    %391 = vector.extract_strided_slice %390 {offsets = [0, 0], sizes = [4, 32], strides = [1, 1]} : vector<4x128xf32> to vector<4x32xf32>
    %cst_160 = arith.constant 5.000000e-01 : f32
    %392 = vector.broadcast %cst_160 : f32 to vector<4x32xf32>
    %393 = arith.mulf %392, %391 : vector<4x32xf32>
    %394 = math.tanh %393 : vector<4x32xf32>
    %cst_161 = arith.constant 5.000000e-01 : f32
    %395 = vector.broadcast %cst_161 : f32 to vector<4x32xf32>
    %396 = arith.mulf %395, %394 : vector<4x32xf32>
    %cst_162 = arith.constant 5.000000e-01 : f32
    %397 = vector.broadcast %cst_162 : f32 to vector<4x32xf32>
    %398 = arith.addf %396, %397 : vector<4x32xf32>
    %399 = vector.extract_strided_slice %390 {offsets = [0, 32], sizes = [4, 32], strides = [1, 1]} : vector<4x128xf32> to vector<4x32xf32>
    %cst_163 = arith.constant 5.000000e-01 : f32
    %400 = vector.broadcast %cst_163 : f32 to vector<4x32xf32>
    %401 = arith.mulf %400, %399 : vector<4x32xf32>
    %402 = math.tanh %401 : vector<4x32xf32>
    %cst_164 = arith.constant 5.000000e-01 : f32
    %403 = vector.broadcast %cst_164 : f32 to vector<4x32xf32>
    %404 = arith.mulf %403, %402 : vector<4x32xf32>
    %cst_165 = arith.constant 5.000000e-01 : f32
    %405 = vector.broadcast %cst_165 : f32 to vector<4x32xf32>
    %406 = arith.addf %404, %405 : vector<4x32xf32>
    %407 = vector.extract_strided_slice %390 {offsets = [0, 64], sizes = [4, 32], strides = [1, 1]} : vector<4x128xf32> to vector<4x32xf32>
    %408 = math.tanh %407 : vector<4x32xf32>
    %409 = vector.extract_strided_slice %390 {offsets = [0, 96], sizes = [4, 32], strides = [1, 1]} : vector<4x128xf32> to vector<4x32xf32>
    %cst_166 = arith.constant 5.000000e-01 : f32
    %410 = vector.broadcast %cst_166 : f32 to vector<4x32xf32>
    %411 = arith.mulf %410, %409 : vector<4x32xf32>
    %412 = math.tanh %411 : vector<4x32xf32>
    %cst_167 = arith.constant 5.000000e-01 : f32
    %413 = vector.broadcast %cst_167 : f32 to vector<4x32xf32>
    %414 = arith.mulf %413, %412 : vector<4x32xf32>
    %cst_168 = arith.constant 5.000000e-01 : f32
    %415 = vector.broadcast %cst_168 : f32 to vector<4x32xf32>
    %416 = arith.addf %414, %415 : vector<4x32xf32>
    %417 = arith.mulf %406, %362 : vector<4x32xf32>
    %418 = arith.mulf %398, %408 : vector<4x32xf32>
    %419 = arith.addf %417, %418 : vector<4x32xf32>
    %420 = math.tanh %419 : vector<4x32xf32>
    %421 = arith.mulf %416, %420 : vector<4x32xf32>
    %422 = vector.extract_strided_slice %421 {offsets = [0, 0], sizes = [2, 32], strides = [1, 1]} : vector<4x32xf32> to vector<2x32xf32>
    %423 = arith.index_cast %c6_i32 : i32 to index
    %c0_169 = arith.constant 0 : index
    %c0_170 = arith.constant 0 : index
    %424 = vector.load %arg21[%423, %c0_169, %c0_170] : memref<8x2x32xf32, #tpu.memory_space<vmem>>, vector<1x2x32xf32>
    %425 = vector.shape_cast %424 : vector<1x2x32xf32> to vector<2x32xf32>
    %426 = vector.shape_cast %422 : vector<2x32xf32> to vector<1x2x32xf32>
    tpu.vector_store %arg21[%423, %c0_169, %c0_170], %426 {strides = array<i32>} : memref<8x2x32xf32, #tpu.memory_space<vmem>>, vector<1x2x32xf32>,
    %427 = vector.extract_strided_slice %421 {offsets = [2, 0], sizes = [2, 32], strides = [1, 1]} : vector<4x32xf32> to vector<2x32xf32>
    %428 = arith.index_cast %375 : i32 to index
    %c0_171 = arith.constant 0 : index
    %c0_172 = arith.constant 0 : index
    %429 = vector.load %arg22[%428, %c0_171, %c0_172] : memref<8x2x32xf32, #tpu.memory_space<vmem>>, vector<1x2x32xf32>
    %430 = vector.shape_cast %429 : vector<1x2x32xf32> to vector<2x32xf32>
    %431 = vector.shape_cast %427 : vector<2x32xf32> to vector<1x2x32xf32>
    tpu.vector_store %arg22[%428, %c0_171, %c0_172], %431 {strides = array<i32>} : memref<8x2x32xf32, #tpu.memory_space<vmem>>, vector<1x2x32xf32>,
    %c7_i32_173 = arith.constant 7 : i32
    %c7_i32_174 = arith.constant 7 : i32
    %432 = arith.subi %c7_i32_174, %c7_i32_173 : i32
    %433 = vector.extract_strided_slice %421 {offsets = [0, 0], sizes = [2, 32], strides = [1, 1]} : vector<4x32xf32> to vector<2x32xf32>
    %434 = arith.truncf %433 : vector<2x32xf32> to vector<2x32xbf16>
    %cst_175 = arith.constant dense<0.000000e+00> : vector<2x128xf32>
    %435 = tpu.matmul %434, %28, %cst_175 {dimension_numbers = #tpu.dot_dimension_numbers<[1], [0], [0], [1], [0, 0, 1, 1], [], []>} : vector<2x32xbf16>, vector<32x128xbf16>, vector<2x128xf32> -> vector<2x128xf32>
    %436 = vector.extract_strided_slice %421 {offsets = [2, 0], sizes = [2, 32], strides = [1, 1]} : vector<4x32xf32> to vector<2x32xf32>
    %437 = arith.truncf %436 : vector<2x32xf32> to vector<2x32xbf16>
    %cst_176 = arith.constant dense<0.000000e+00> : vector<2x128xf32>
    %438 = tpu.matmul %437, %30, %cst_176 {dimension_numbers = #tpu.dot_dimension_numbers<[1], [0], [0], [1], [0, 0, 1, 1], [], []>} : vector<2x32xbf16>, vector<32x128xbf16>, vector<2x128xf32> -> vector<2x128xf32>
    %439 = arith.index_cast %c7_i32_173 : i32 to index
    %c0_177 = arith.constant 0 : index
    %c0_178 = arith.constant 0 : index
    %440 = vector.load %arg19[%439, %c0_177, %c0_178] : memref<8x2x128xf32, #tpu.memory_space<vmem>>, vector<1x2x128xf32>
    %441 = vector.shape_cast %440 : vector<1x2x128xf32> to vector<2x128xf32>
    %442 = arith.addf %441, %435 : vector<2x128xf32>
    %443 = arith.index_cast %432 : i32 to index
    %c0_179 = arith.constant 0 : index
    %c0_180 = arith.constant 0 : index
    %444 = vector.load %arg20[%443, %c0_179, %c0_180] : memref<8x2x128xf32, #tpu.memory_space<vmem>>, vector<1x2x128xf32>
    %445 = vector.shape_cast %444 : vector<1x2x128xf32> to vector<2x128xf32>
    %446 = arith.addf %445, %438 : vector<2x128xf32>
    %447 = tpu.concatenate %442, %446 in 0 : vector<2x128xf32>, vector<2x128xf32> -> vector<4x128xf32>
    %448 = vector.extract_strided_slice %447 {offsets = [0, 0], sizes = [4, 32], strides = [1, 1]} : vector<4x128xf32> to vector<4x32xf32>
    %cst_181 = arith.constant 5.000000e-01 : f32
    %449 = vector.broadcast %cst_181 : f32 to vector<4x32xf32>
    %450 = arith.mulf %449, %448 : vector<4x32xf32>
    %451 = math.tanh %450 : vector<4x32xf32>
    %cst_182 = arith.constant 5.000000e-01 : f32
    %452 = vector.broadcast %cst_182 : f32 to vector<4x32xf32>
    %453 = arith.mulf %452, %451 : vector<4x32xf32>
    %cst_183 = arith.constant 5.000000e-01 : f32
    %454 = vector.broadcast %cst_183 : f32 to vector<4x32xf32>
    %455 = arith.addf %453, %454 : vector<4x32xf32>
    %456 = vector.extract_strided_slice %447 {offsets = [0, 32], sizes = [4, 32], strides = [1, 1]} : vector<4x128xf32> to vector<4x32xf32>
    %cst_184 = arith.constant 5.000000e-01 : f32
    %457 = vector.broadcast %cst_184 : f32 to vector<4x32xf32>
    %458 = arith.mulf %457, %456 : vector<4x32xf32>
    %459 = math.tanh %458 : vector<4x32xf32>
    %cst_185 = arith.constant 5.000000e-01 : f32
    %460 = vector.broadcast %cst_185 : f32 to vector<4x32xf32>
    %461 = arith.mulf %460, %459 : vector<4x32xf32>
    %cst_186 = arith.constant 5.000000e-01 : f32
    %462 = vector.broadcast %cst_186 : f32 to vector<4x32xf32>
    %463 = arith.addf %461, %462 : vector<4x32xf32>
    %464 = vector.extract_strided_slice %447 {offsets = [0, 64], sizes = [4, 32], strides = [1, 1]} : vector<4x128xf32> to vector<4x32xf32>
    %465 = math.tanh %464 : vector<4x32xf32>
    %466 = vector.extract_strided_slice %447 {offsets = [0, 96], sizes = [4, 32], strides = [1, 1]} : vector<4x128xf32> to vector<4x32xf32>
    %cst_187 = arith.constant 5.000000e-01 : f32
    %467 = vector.broadcast %cst_187 : f32 to vector<4x32xf32>
    %468 = arith.mulf %467, %466 : vector<4x32xf32>
    %469 = math.tanh %468 : vector<4x32xf32>
    %cst_188 = arith.constant 5.000000e-01 : f32
    %470 = vector.broadcast %cst_188 : f32 to vector<4x32xf32>
    %471 = arith.mulf %470, %469 : vector<4x32xf32>
    %cst_189 = arith.constant 5.000000e-01 : f32
    %472 = vector.broadcast %cst_189 : f32 to vector<4x32xf32>
    %473 = arith.addf %471, %472 : vector<4x32xf32>
    %474 = arith.mulf %463, %419 : vector<4x32xf32>
    %475 = arith.mulf %455, %465 : vector<4x32xf32>
    %476 = arith.addf %474, %475 : vector<4x32xf32>
    %477 = math.tanh %476 : vector<4x32xf32>
    %478 = arith.mulf %473, %477 : vector<4x32xf32>
    %479 = vector.extract_strided_slice %478 {offsets = [0, 0], sizes = [2, 32], strides = [1, 1]} : vector<4x32xf32> to vector<2x32xf32>
    %480 = arith.index_cast %c7_i32_173 : i32 to index
    %c0_190 = arith.constant 0 : index
    %c0_191 = arith.constant 0 : index
    %481 = vector.load %arg21[%480, %c0_190, %c0_191] : memref<8x2x32xf32, #tpu.memory_space<vmem>>, vector<1x2x32xf32>
    %482 = vector.shape_cast %481 : vector<1x2x32xf32> to vector<2x32xf32>
    %483 = vector.shape_cast %479 : vector<2x32xf32> to vector<1x2x32xf32>
    tpu.vector_store %arg21[%480, %c0_190, %c0_191], %483 {strides = array<i32>} : memref<8x2x32xf32, #tpu.memory_space<vmem>>, vector<1x2x32xf32>,
    %484 = vector.extract_strided_slice %478 {offsets = [2, 0], sizes = [2, 32], strides = [1, 1]} : vector<4x32xf32> to vector<2x32xf32>
    %485 = arith.index_cast %432 : i32 to index
    %c0_192 = arith.constant 0 : index
    %c0_193 = arith.constant 0 : index
    %486 = vector.load %arg22[%485, %c0_192, %c0_193] : memref<8x2x32xf32, #tpu.memory_space<vmem>>, vector<1x2x32xf32>
    %487 = vector.shape_cast %486 : vector<1x2x32xf32> to vector<2x32xf32>
    %488 = vector.shape_cast %484 : vector<2x32xf32> to vector<1x2x32xf32>
    tpu.vector_store %arg22[%485, %c0_192, %c0_193], %488 {strides = array<i32>} : memref<8x2x32xf32, #tpu.memory_space<vmem>>, vector<1x2x32xf32>,
    %c8_i32 = arith.constant 8 : i32
    %c0_194 = arith.constant 0 : index
    %c0_195 = arith.constant 0 : index
    %c0_196 = arith.constant 0 : index
    %489 = vector.load %arg21[%c0_194, %c0_195, %c0_196] : memref<8x2x32xf32, #tpu.memory_space<vmem>>, vector<8x2x32xf32>
    %490 = vector.shape_cast %489 : vector<8x2x32xf32> to vector<16x32xf32>
    %c0_197 = arith.constant 0 : index
    %c0_198 = arith.constant 0 : index
    %c0_199 = arith.constant 0 : index
    %491 = vector.load %arg22[%c0_197, %c0_198, %c0_199] : memref<8x2x32xf32, #tpu.memory_space<vmem>>, vector<8x2x32xf32>
    %492 = vector.shape_cast %491 : vector<8x2x32xf32> to vector<16x32xf32>
    %493 = tpu.concatenate %490, %492 in 1 : vector<16x32xf32>, vector<16x32xf32> -> vector<16x64xf32>
    %494 = arith.truncf %493 : vector<16x64xf32> to vector<16x64xbf16>
    %c0_200 = arith.constant 0 : index
    %c0_201 = arith.constant 0 : index
    %495 = vector.load %arg2[%c0_200, %c0_201] : memref<16x1xf32, #tpu.memory_space<vmem>>, vector<16x1xf32>
    %c0_202 = arith.constant 0 : index
    %c0_203 = arith.constant 0 : index
    %c0_204 = arith.constant 0 : index
    %496 = vector.load %arg10[%c0_202, %c0_203, %c0_204] : memref<2x64x16xbf16, #tpu.memory_space<vmem>>, vector<1x64x16xbf16>
    %497 = vector.shape_cast %496 : vector<1x64x16xbf16> to vector<64x16xbf16>
    %cst_205 = arith.constant dense<0.000000e+00> : vector<16x16xf32>
    %498 = tpu.matmul %494, %497, %cst_205 {dimension_numbers = #tpu.dot_dimension_numbers<[1], [0], [0], [1], [0, 0, 1, 1], [], []>} : vector<16x64xbf16>, vector<64x16xbf16>, vector<16x16xf32> -> vector<16x16xf32>
    %c0_206 = arith.constant 0 : index
    %c0_207 = arith.constant 0 : index
    %c0_208 = arith.constant 0 : index
    %499 = vector.load %arg11[%c0_206, %c0_207, %c0_208] : memref<2x1x16xf32, #tpu.memory_space<vmem>>, vector<1x1x16xf32>
    %500 = vector.shape_cast %499 : vector<1x1x16xf32> to vector<1x16xf32>
    %501 = vector.broadcast %495 : vector<16x1xf32> to vector<16x16xf32>
    %502 = vector.broadcast %500 : vector<1x16xf32> to vector<16x16xf32>
    %503 = arith.mulf %501, %502 : vector<16x16xf32>
    %504 = arith.addf %498, %503 : vector<16x16xf32>
    %c0_209 = arith.constant 0 : index
    %c0_210 = arith.constant 0 : index
    %c0_211 = arith.constant 0 : index
    %505 = vector.load %arg13[%c0_209, %c0_210, %c0_211] : memref<2x1x16xf32, #tpu.memory_space<vmem>>, vector<1x1x16xf32>
    %506 = vector.shape_cast %505 : vector<1x1x16xf32> to vector<1x16xf32>
    %507 = vector.broadcast %506 : vector<1x16xf32> to vector<16x16xf32>
    %508 = arith.addf %504, %507 : vector<16x16xf32>
    %509 = vector.shape_cast %508 : vector<16x16xf32> to vector<8x2x16xf32>
    %c0_212 = arith.constant 0 : index
    %c0_213 = arith.constant 0 : index
    %c0_214 = arith.constant 0 : index
    %510 = vector.load %arg23[%c0_212, %c0_213, %c0_214] : memref<8x2x16xf32, #tpu.memory_space<vmem>>, vector<8x2x16xf32>
    tpu.vector_store %arg23[%c0_212, %c0_213, %c0_214], %509 {strides = array<i32>} : memref<8x2x16xf32, #tpu.memory_space<vmem>>, vector<8x2x16xf32>,
    %c1_215 = arith.constant 1 : index
    %c0_216 = arith.constant 0 : index
    %c0_217 = arith.constant 0 : index
    %511 = vector.load %arg10[%c1_215, %c0_216, %c0_217] : memref<2x64x16xbf16, #tpu.memory_space<vmem>>, vector<1x64x16xbf16>
    %512 = vector.shape_cast %511 : vector<1x64x16xbf16> to vector<64x16xbf16>
    %cst_218 = arith.constant dense<0.000000e+00> : vector<16x16xf32>
    %513 = tpu.matmul %494, %512, %cst_218 {dimension_numbers = #tpu.dot_dimension_numbers<[1], [0], [0], [1], [0, 0, 1, 1], [], []>} : vector<16x64xbf16>, vector<64x16xbf16>, vector<16x16xf32> -> vector<16x16xf32>
    %c1_219 = arith.constant 1 : index
    %c0_220 = arith.constant 0 : index
    %c0_221 = arith.constant 0 : index
    %514 = vector.load %arg11[%c1_219, %c0_220, %c0_221] : memref<2x1x16xf32, #tpu.memory_space<vmem>>, vector<1x1x16xf32>
    %515 = vector.shape_cast %514 : vector<1x1x16xf32> to vector<1x16xf32>
    %516 = vector.broadcast %495 : vector<16x1xf32> to vector<16x16xf32>
    %517 = vector.broadcast %515 : vector<1x16xf32> to vector<16x16xf32>
    %518 = arith.mulf %516, %517 : vector<16x16xf32>
    %519 = arith.addf %513, %518 : vector<16x16xf32>
    %c1_222 = arith.constant 1 : index
    %c0_223 = arith.constant 0 : index
    %c0_224 = arith.constant 0 : index
    %520 = vector.load %arg13[%c1_222, %c0_223, %c0_224] : memref<2x1x16xf32, #tpu.memory_space<vmem>>, vector<1x1x16xf32>
    %521 = vector.shape_cast %520 : vector<1x1x16xf32> to vector<1x16xf32>
    %522 = vector.broadcast %521 : vector<1x16xf32> to vector<16x16xf32>
    %523 = arith.addf %519, %522 : vector<16x16xf32>
    %524 = vector.shape_cast %523 : vector<16x16xf32> to vector<8x2x16xf32>
    %c0_225 = arith.constant 0 : index
    %c0_226 = arith.constant 0 : index
    %c0_227 = arith.constant 0 : index
    %525 = vector.load %arg24[%c0_225, %c0_226, %c0_227] : memref<8x2x16xf32, #tpu.memory_space<vmem>>, vector<8x2x16xf32>
    tpu.vector_store %arg24[%c0_225, %c0_226, %c0_227], %524 {strides = array<i32>} : memref<8x2x16xf32, #tpu.memory_space<vmem>>, vector<8x2x16xf32>,
    %c0_228 = arith.constant 0 : index
    %c0_229 = arith.constant 0 : index
    %c0_230 = arith.constant 0 : index
    %526 = vector.load %arg12[%c0_228, %c0_229, %c0_230] : memref<2x4x16xbf16, #tpu.memory_space<vmem>>, vector<1x4x16xbf16>
    %527 = vector.shape_cast %526 : vector<1x4x16xbf16> to vector<4x16xbf16>
    %c1_231 = arith.constant 1 : index
    %c0_232 = arith.constant 0 : index
    %c0_233 = arith.constant 0 : index
    %528 = vector.load %arg12[%c1_231, %c0_232, %c0_233] : memref<2x4x16xbf16, #tpu.memory_space<vmem>>, vector<1x4x16xbf16>
    %529 = vector.shape_cast %528 : vector<1x4x16xbf16> to vector<4x16xbf16>
    %c0_234 = arith.constant 0 : index
    %c0_235 = arith.constant 0 : index
    %530 = vector.load %arg14[%c0_234, %c0_235] : memref<4x4xf32, #tpu.memory_space<vmem>>, vector<4x4xf32>
    %c0_236 = arith.constant 0 : index
    %c0_237 = arith.constant 0 : index
    %531 = vector.load %arg15[%c0_236, %c0_237] : memref<4x4xf32, #tpu.memory_space<vmem>>, vector<4x4xf32>
    %c0_i32_238 = arith.constant 0 : i32
    %c7_i32_239 = arith.constant 7 : i32
    %532 = arith.subi %c7_i32_239, %c0_i32_238 : i32
    %533 = vector.extract_strided_slice %530 {offsets = [0, 0], sizes = [2, 4], strides = [1, 1]} : vector<4x4xf32> to vector<2x4xf32>
    %534 = arith.truncf %533 : vector<2x4xf32> to vector<2x4xbf16>
    %cst_240 = arith.constant dense<0.000000e+00> : vector<2x16xf32>
    %535 = tpu.matmul %534, %527, %cst_240 {dimension_numbers = #tpu.dot_dimension_numbers<[1], [0], [0], [1], [0, 0, 1, 1], [], []>} : vector<2x4xbf16>, vector<4x16xbf16>, vector<2x16xf32> -> vector<2x16xf32>
    %536 = vector.extract_strided_slice %530 {offsets = [2, 0], sizes = [2, 4], strides = [1, 1]} : vector<4x4xf32> to vector<2x4xf32>
    %537 = arith.truncf %536 : vector<2x4xf32> to vector<2x4xbf16>
    %cst_241 = arith.constant dense<0.000000e+00> : vector<2x16xf32>
    %538 = tpu.matmul %537, %529, %cst_241 {dimension_numbers = #tpu.dot_dimension_numbers<[1], [0], [0], [1], [0, 0, 1, 1], [], []>} : vector<2x4xbf16>, vector<4x16xbf16>, vector<2x16xf32> -> vector<2x16xf32>
    %539 = arith.index_cast %c0_i32_238 : i32 to index
    %c0_242 = arith.constant 0 : index
    %c0_243 = arith.constant 0 : index
    %540 = vector.load %arg23[%539, %c0_242, %c0_243] : memref<8x2x16xf32, #tpu.memory_space<vmem>>, vector<1x2x16xf32>
    %541 = vector.shape_cast %540 : vector<1x2x16xf32> to vector<2x16xf32>
    %542 = arith.addf %541, %535 : vector<2x16xf32>
    %543 = arith.index_cast %532 : i32 to index
    %c0_244 = arith.constant 0 : index
    %c0_245 = arith.constant 0 : index
    %544 = vector.load %arg24[%543, %c0_244, %c0_245] : memref<8x2x16xf32, #tpu.memory_space<vmem>>, vector<1x2x16xf32>
    %545 = vector.shape_cast %544 : vector<1x2x16xf32> to vector<2x16xf32>
    %546 = arith.addf %545, %538 : vector<2x16xf32>
    %547 = tpu.concatenate %542, %546 in 0 : vector<2x16xf32>, vector<2x16xf32> -> vector<4x16xf32>
    %548 = vector.extract_strided_slice %547 {offsets = [0, 0], sizes = [4, 4], strides = [1, 1]} : vector<4x16xf32> to vector<4x4xf32>
    %cst_246 = arith.constant 5.000000e-01 : f32
    %549 = vector.broadcast %cst_246 : f32 to vector<4x4xf32>
    %550 = arith.mulf %549, %548 : vector<4x4xf32>
    %551 = math.tanh %550 : vector<4x4xf32>
    %cst_247 = arith.constant 5.000000e-01 : f32
    %552 = vector.broadcast %cst_247 : f32 to vector<4x4xf32>
    %553 = arith.mulf %552, %551 : vector<4x4xf32>
    %cst_248 = arith.constant 5.000000e-01 : f32
    %554 = vector.broadcast %cst_248 : f32 to vector<4x4xf32>
    %555 = arith.addf %553, %554 : vector<4x4xf32>
    %556 = vector.extract_strided_slice %547 {offsets = [0, 4], sizes = [4, 4], strides = [1, 1]} : vector<4x16xf32> to vector<4x4xf32>
    %cst_249 = arith.constant 5.000000e-01 : f32
    %557 = vector.broadcast %cst_249 : f32 to vector<4x4xf32>
    %558 = arith.mulf %557, %556 : vector<4x4xf32>
    %559 = math.tanh %558 : vector<4x4xf32>
    %cst_250 = arith.constant 5.000000e-01 : f32
    %560 = vector.broadcast %cst_250 : f32 to vector<4x4xf32>
    %561 = arith.mulf %560, %559 : vector<4x4xf32>
    %cst_251 = arith.constant 5.000000e-01 : f32
    %562 = vector.broadcast %cst_251 : f32 to vector<4x4xf32>
    %563 = arith.addf %561, %562 : vector<4x4xf32>
    %564 = vector.extract_strided_slice %547 {offsets = [0, 8], sizes = [4, 4], strides = [1, 1]} : vector<4x16xf32> to vector<4x4xf32>
    %565 = math.tanh %564 : vector<4x4xf32>
    %566 = vector.extract_strided_slice %547 {offsets = [0, 12], sizes = [4, 4], strides = [1, 1]} : vector<4x16xf32> to vector<4x4xf32>
    %cst_252 = arith.constant 5.000000e-01 : f32
    %567 = vector.broadcast %cst_252 : f32 to vector<4x4xf32>
    %568 = arith.mulf %567, %566 : vector<4x4xf32>
    %569 = math.tanh %568 : vector<4x4xf32>
    %cst_253 = arith.constant 5.000000e-01 : f32
    %570 = vector.broadcast %cst_253 : f32 to vector<4x4xf32>
    %571 = arith.mulf %570, %569 : vector<4x4xf32>
    %cst_254 = arith.constant 5.000000e-01 : f32
    %572 = vector.broadcast %cst_254 : f32 to vector<4x4xf32>
    %573 = arith.addf %571, %572 : vector<4x4xf32>
    %574 = arith.mulf %563, %531 : vector<4x4xf32>
    %575 = arith.mulf %555, %565 : vector<4x4xf32>
    %576 = arith.addf %574, %575 : vector<4x4xf32>
    %577 = math.tanh %576 : vector<4x4xf32>
    %578 = arith.mulf %573, %577 : vector<4x4xf32>
    %579 = vector.extract_strided_slice %578 {offsets = [0, 0], sizes = [2, 4], strides = [1, 1]} : vector<4x4xf32> to vector<2x4xf32>
    %580 = arith.index_cast %c0_i32_238 : i32 to index
    %c0_255 = arith.constant 0 : index
    %c0_256 = arith.constant 0 : index
    %581 = vector.load %arg25[%580, %c0_255, %c0_256] : memref<8x2x4xf32, #tpu.memory_space<vmem>>, vector<1x2x4xf32>
    %582 = vector.shape_cast %581 : vector<1x2x4xf32> to vector<2x4xf32>
    %583 = vector.shape_cast %579 : vector<2x4xf32> to vector<1x2x4xf32>
    tpu.vector_store %arg25[%580, %c0_255, %c0_256], %583 {strides = array<i32>} : memref<8x2x4xf32, #tpu.memory_space<vmem>>, vector<1x2x4xf32>,
    %584 = vector.extract_strided_slice %578 {offsets = [2, 0], sizes = [2, 4], strides = [1, 1]} : vector<4x4xf32> to vector<2x4xf32>
    %585 = arith.index_cast %532 : i32 to index
    %c0_257 = arith.constant 0 : index
    %c0_258 = arith.constant 0 : index
    %586 = vector.load %arg26[%585, %c0_257, %c0_258] : memref<8x2x4xf32, #tpu.memory_space<vmem>>, vector<1x2x4xf32>
    %587 = vector.shape_cast %586 : vector<1x2x4xf32> to vector<2x4xf32>
    %588 = vector.shape_cast %584 : vector<2x4xf32> to vector<1x2x4xf32>
    tpu.vector_store %arg26[%585, %c0_257, %c0_258], %588 {strides = array<i32>} : memref<8x2x4xf32, #tpu.memory_space<vmem>>, vector<1x2x4xf32>,
    %c1_i32_259 = arith.constant 1 : i32
    %c7_i32_260 = arith.constant 7 : i32
    %589 = arith.subi %c7_i32_260, %c1_i32_259 : i32
    %590 = vector.extract_strided_slice %578 {offsets = [0, 0], sizes = [2, 4], strides = [1, 1]} : vector<4x4xf32> to vector<2x4xf32>
    %591 = arith.truncf %590 : vector<2x4xf32> to vector<2x4xbf16>
    %cst_261 = arith.constant dense<0.000000e+00> : vector<2x16xf32>
    %592 = tpu.matmul %591, %527, %cst_261 {dimension_numbers = #tpu.dot_dimension_numbers<[1], [0], [0], [1], [0, 0, 1, 1], [], []>} : vector<2x4xbf16>, vector<4x16xbf16>, vector<2x16xf32> -> vector<2x16xf32>
    %593 = vector.extract_strided_slice %578 {offsets = [2, 0], sizes = [2, 4], strides = [1, 1]} : vector<4x4xf32> to vector<2x4xf32>
    %594 = arith.truncf %593 : vector<2x4xf32> to vector<2x4xbf16>
    %cst_262 = arith.constant dense<0.000000e+00> : vector<2x16xf32>
    %595 = tpu.matmul %594, %529, %cst_262 {dimension_numbers = #tpu.dot_dimension_numbers<[1], [0], [0], [1], [0, 0, 1, 1], [], []>} : vector<2x4xbf16>, vector<4x16xbf16>, vector<2x16xf32> -> vector<2x16xf32>
    %596 = arith.index_cast %c1_i32_259 : i32 to index
    %c0_263 = arith.constant 0 : index
    %c0_264 = arith.constant 0 : index
    %597 = vector.load %arg23[%596, %c0_263, %c0_264] : memref<8x2x16xf32, #tpu.memory_space<vmem>>, vector<1x2x16xf32>
    %598 = vector.shape_cast %597 : vector<1x2x16xf32> to vector<2x16xf32>
    %599 = arith.addf %598, %592 : vector<2x16xf32>
    %600 = arith.index_cast %589 : i32 to index
    %c0_265 = arith.constant 0 : index
    %c0_266 = arith.constant 0 : index
    %601 = vector.load %arg24[%600, %c0_265, %c0_266] : memref<8x2x16xf32, #tpu.memory_space<vmem>>, vector<1x2x16xf32>
    %602 = vector.shape_cast %601 : vector<1x2x16xf32> to vector<2x16xf32>
    %603 = arith.addf %602, %595 : vector<2x16xf32>
    %604 = tpu.concatenate %599, %603 in 0 : vector<2x16xf32>, vector<2x16xf32> -> vector<4x16xf32>
    %605 = vector.extract_strided_slice %604 {offsets = [0, 0], sizes = [4, 4], strides = [1, 1]} : vector<4x16xf32> to vector<4x4xf32>
    %cst_267 = arith.constant 5.000000e-01 : f32
    %606 = vector.broadcast %cst_267 : f32 to vector<4x4xf32>
    %607 = arith.mulf %606, %605 : vector<4x4xf32>
    %608 = math.tanh %607 : vector<4x4xf32>
    %cst_268 = arith.constant 5.000000e-01 : f32
    %609 = vector.broadcast %cst_268 : f32 to vector<4x4xf32>
    %610 = arith.mulf %609, %608 : vector<4x4xf32>
    %cst_269 = arith.constant 5.000000e-01 : f32
    %611 = vector.broadcast %cst_269 : f32 to vector<4x4xf32>
    %612 = arith.addf %610, %611 : vector<4x4xf32>
    %613 = vector.extract_strided_slice %604 {offsets = [0, 4], sizes = [4, 4], strides = [1, 1]} : vector<4x16xf32> to vector<4x4xf32>
    %cst_270 = arith.constant 5.000000e-01 : f32
    %614 = vector.broadcast %cst_270 : f32 to vector<4x4xf32>
    %615 = arith.mulf %614, %613 : vector<4x4xf32>
    %616 = math.tanh %615 : vector<4x4xf32>
    %cst_271 = arith.constant 5.000000e-01 : f32
    %617 = vector.broadcast %cst_271 : f32 to vector<4x4xf32>
    %618 = arith.mulf %617, %616 : vector<4x4xf32>
    %cst_272 = arith.constant 5.000000e-01 : f32
    %619 = vector.broadcast %cst_272 : f32 to vector<4x4xf32>
    %620 = arith.addf %618, %619 : vector<4x4xf32>
    %621 = vector.extract_strided_slice %604 {offsets = [0, 8], sizes = [4, 4], strides = [1, 1]} : vector<4x16xf32> to vector<4x4xf32>
    %622 = math.tanh %621 : vector<4x4xf32>
    %623 = vector.extract_strided_slice %604 {offsets = [0, 12], sizes = [4, 4], strides = [1, 1]} : vector<4x16xf32> to vector<4x4xf32>
    %cst_273 = arith.constant 5.000000e-01 : f32
    %624 = vector.broadcast %cst_273 : f32 to vector<4x4xf32>
    %625 = arith.mulf %624, %623 : vector<4x4xf32>
    %626 = math.tanh %625 : vector<4x4xf32>
    %cst_274 = arith.constant 5.000000e-01 : f32
    %627 = vector.broadcast %cst_274 : f32 to vector<4x4xf32>
    %628 = arith.mulf %627, %626 : vector<4x4xf32>
    %cst_275 = arith.constant 5.000000e-01 : f32
    %629 = vector.broadcast %cst_275 : f32 to vector<4x4xf32>
    %630 = arith.addf %628, %629 : vector<4x4xf32>
    %631 = arith.mulf %620, %576 : vector<4x4xf32>
    %632 = arith.mulf %612, %622 : vector<4x4xf32>
    %633 = arith.addf %631, %632 : vector<4x4xf32>
    %634 = math.tanh %633 : vector<4x4xf32>
    %635 = arith.mulf %630, %634 : vector<4x4xf32>
    %636 = vector.extract_strided_slice %635 {offsets = [0, 0], sizes = [2, 4], strides = [1, 1]} : vector<4x4xf32> to vector<2x4xf32>
    %637 = arith.index_cast %c1_i32_259 : i32 to index
    %c0_276 = arith.constant 0 : index
    %c0_277 = arith.constant 0 : index
    %638 = vector.load %arg25[%637, %c0_276, %c0_277] : memref<8x2x4xf32, #tpu.memory_space<vmem>>, vector<1x2x4xf32>
    %639 = vector.shape_cast %638 : vector<1x2x4xf32> to vector<2x4xf32>
    %640 = vector.shape_cast %636 : vector<2x4xf32> to vector<1x2x4xf32>
    tpu.vector_store %arg25[%637, %c0_276, %c0_277], %640 {strides = array<i32>} : memref<8x2x4xf32, #tpu.memory_space<vmem>>, vector<1x2x4xf32>,
    %641 = vector.extract_strided_slice %635 {offsets = [2, 0], sizes = [2, 4], strides = [1, 1]} : vector<4x4xf32> to vector<2x4xf32>
    %642 = arith.index_cast %589 : i32 to index
    %c0_278 = arith.constant 0 : index
    %c0_279 = arith.constant 0 : index
    %643 = vector.load %arg26[%642, %c0_278, %c0_279] : memref<8x2x4xf32, #tpu.memory_space<vmem>>, vector<1x2x4xf32>
    %644 = vector.shape_cast %643 : vector<1x2x4xf32> to vector<2x4xf32>
    %645 = vector.shape_cast %641 : vector<2x4xf32> to vector<1x2x4xf32>
    tpu.vector_store %arg26[%642, %c0_278, %c0_279], %645 {strides = array<i32>} : memref<8x2x4xf32, #tpu.memory_space<vmem>>, vector<1x2x4xf32>,
    %c2_i32_280 = arith.constant 2 : i32
    %c7_i32_281 = arith.constant 7 : i32
    %646 = arith.subi %c7_i32_281, %c2_i32_280 : i32
    %647 = vector.extract_strided_slice %635 {offsets = [0, 0], sizes = [2, 4], strides = [1, 1]} : vector<4x4xf32> to vector<2x4xf32>
    %648 = arith.truncf %647 : vector<2x4xf32> to vector<2x4xbf16>
    %cst_282 = arith.constant dense<0.000000e+00> : vector<2x16xf32>
    %649 = tpu.matmul %648, %527, %cst_282 {dimension_numbers = #tpu.dot_dimension_numbers<[1], [0], [0], [1], [0, 0, 1, 1], [], []>} : vector<2x4xbf16>, vector<4x16xbf16>, vector<2x16xf32> -> vector<2x16xf32>
    %650 = vector.extract_strided_slice %635 {offsets = [2, 0], sizes = [2, 4], strides = [1, 1]} : vector<4x4xf32> to vector<2x4xf32>
    %651 = arith.truncf %650 : vector<2x4xf32> to vector<2x4xbf16>
    %cst_283 = arith.constant dense<0.000000e+00> : vector<2x16xf32>
    %652 = tpu.matmul %651, %529, %cst_283 {dimension_numbers = #tpu.dot_dimension_numbers<[1], [0], [0], [1], [0, 0, 1, 1], [], []>} : vector<2x4xbf16>, vector<4x16xbf16>, vector<2x16xf32> -> vector<2x16xf32>
    %653 = arith.index_cast %c2_i32_280 : i32 to index
    %c0_284 = arith.constant 0 : index
    %c0_285 = arith.constant 0 : index
    %654 = vector.load %arg23[%653, %c0_284, %c0_285] : memref<8x2x16xf32, #tpu.memory_space<vmem>>, vector<1x2x16xf32>
    %655 = vector.shape_cast %654 : vector<1x2x16xf32> to vector<2x16xf32>
    %656 = arith.addf %655, %649 : vector<2x16xf32>
    %657 = arith.index_cast %646 : i32 to index
    %c0_286 = arith.constant 0 : index
    %c0_287 = arith.constant 0 : index
    %658 = vector.load %arg24[%657, %c0_286, %c0_287] : memref<8x2x16xf32, #tpu.memory_space<vmem>>, vector<1x2x16xf32>
    %659 = vector.shape_cast %658 : vector<1x2x16xf32> to vector<2x16xf32>
    %660 = arith.addf %659, %652 : vector<2x16xf32>
    %661 = tpu.concatenate %656, %660 in 0 : vector<2x16xf32>, vector<2x16xf32> -> vector<4x16xf32>
    %662 = vector.extract_strided_slice %661 {offsets = [0, 0], sizes = [4, 4], strides = [1, 1]} : vector<4x16xf32> to vector<4x4xf32>
    %cst_288 = arith.constant 5.000000e-01 : f32
    %663 = vector.broadcast %cst_288 : f32 to vector<4x4xf32>
    %664 = arith.mulf %663, %662 : vector<4x4xf32>
    %665 = math.tanh %664 : vector<4x4xf32>
    %cst_289 = arith.constant 5.000000e-01 : f32
    %666 = vector.broadcast %cst_289 : f32 to vector<4x4xf32>
    %667 = arith.mulf %666, %665 : vector<4x4xf32>
    %cst_290 = arith.constant 5.000000e-01 : f32
    %668 = vector.broadcast %cst_290 : f32 to vector<4x4xf32>
    %669 = arith.addf %667, %668 : vector<4x4xf32>
    %670 = vector.extract_strided_slice %661 {offsets = [0, 4], sizes = [4, 4], strides = [1, 1]} : vector<4x16xf32> to vector<4x4xf32>
    %cst_291 = arith.constant 5.000000e-01 : f32
    %671 = vector.broadcast %cst_291 : f32 to vector<4x4xf32>
    %672 = arith.mulf %671, %670 : vector<4x4xf32>
    %673 = math.tanh %672 : vector<4x4xf32>
    %cst_292 = arith.constant 5.000000e-01 : f32
    %674 = vector.broadcast %cst_292 : f32 to vector<4x4xf32>
    %675 = arith.mulf %674, %673 : vector<4x4xf32>
    %cst_293 = arith.constant 5.000000e-01 : f32
    %676 = vector.broadcast %cst_293 : f32 to vector<4x4xf32>
    %677 = arith.addf %675, %676 : vector<4x4xf32>
    %678 = vector.extract_strided_slice %661 {offsets = [0, 8], sizes = [4, 4], strides = [1, 1]} : vector<4x16xf32> to vector<4x4xf32>
    %679 = math.tanh %678 : vector<4x4xf32>
    %680 = vector.extract_strided_slice %661 {offsets = [0, 12], sizes = [4, 4], strides = [1, 1]} : vector<4x16xf32> to vector<4x4xf32>
    %cst_294 = arith.constant 5.000000e-01 : f32
    %681 = vector.broadcast %cst_294 : f32 to vector<4x4xf32>
    %682 = arith.mulf %681, %680 : vector<4x4xf32>
    %683 = math.tanh %682 : vector<4x4xf32>
    %cst_295 = arith.constant 5.000000e-01 : f32
    %684 = vector.broadcast %cst_295 : f32 to vector<4x4xf32>
    %685 = arith.mulf %684, %683 : vector<4x4xf32>
    %cst_296 = arith.constant 5.000000e-01 : f32
    %686 = vector.broadcast %cst_296 : f32 to vector<4x4xf32>
    %687 = arith.addf %685, %686 : vector<4x4xf32>
    %688 = arith.mulf %677, %633 : vector<4x4xf32>
    %689 = arith.mulf %669, %679 : vector<4x4xf32>
    %690 = arith.addf %688, %689 : vector<4x4xf32>
    %691 = math.tanh %690 : vector<4x4xf32>
    %692 = arith.mulf %687, %691 : vector<4x4xf32>
    %693 = vector.extract_strided_slice %692 {offsets = [0, 0], sizes = [2, 4], strides = [1, 1]} : vector<4x4xf32> to vector<2x4xf32>
    %694 = arith.index_cast %c2_i32_280 : i32 to index
    %c0_297 = arith.constant 0 : index
    %c0_298 = arith.constant 0 : index
    %695 = vector.load %arg25[%694, %c0_297, %c0_298] : memref<8x2x4xf32, #tpu.memory_space<vmem>>, vector<1x2x4xf32>
    %696 = vector.shape_cast %695 : vector<1x2x4xf32> to vector<2x4xf32>
    %697 = vector.shape_cast %693 : vector<2x4xf32> to vector<1x2x4xf32>
    tpu.vector_store %arg25[%694, %c0_297, %c0_298], %697 {strides = array<i32>} : memref<8x2x4xf32, #tpu.memory_space<vmem>>, vector<1x2x4xf32>,
    %698 = vector.extract_strided_slice %692 {offsets = [2, 0], sizes = [2, 4], strides = [1, 1]} : vector<4x4xf32> to vector<2x4xf32>
    %699 = arith.index_cast %646 : i32 to index
    %c0_299 = arith.constant 0 : index
    %c0_300 = arith.constant 0 : index
    %700 = vector.load %arg26[%699, %c0_299, %c0_300] : memref<8x2x4xf32, #tpu.memory_space<vmem>>, vector<1x2x4xf32>
    %701 = vector.shape_cast %700 : vector<1x2x4xf32> to vector<2x4xf32>
    %702 = vector.shape_cast %698 : vector<2x4xf32> to vector<1x2x4xf32>
    tpu.vector_store %arg26[%699, %c0_299, %c0_300], %702 {strides = array<i32>} : memref<8x2x4xf32, #tpu.memory_space<vmem>>, vector<1x2x4xf32>,
    %c3_i32_301 = arith.constant 3 : i32
    %c7_i32_302 = arith.constant 7 : i32
    %703 = arith.subi %c7_i32_302, %c3_i32_301 : i32
    %704 = vector.extract_strided_slice %692 {offsets = [0, 0], sizes = [2, 4], strides = [1, 1]} : vector<4x4xf32> to vector<2x4xf32>
    %705 = arith.truncf %704 : vector<2x4xf32> to vector<2x4xbf16>
    %cst_303 = arith.constant dense<0.000000e+00> : vector<2x16xf32>
    %706 = tpu.matmul %705, %527, %cst_303 {dimension_numbers = #tpu.dot_dimension_numbers<[1], [0], [0], [1], [0, 0, 1, 1], [], []>} : vector<2x4xbf16>, vector<4x16xbf16>, vector<2x16xf32> -> vector<2x16xf32>
    %707 = vector.extract_strided_slice %692 {offsets = [2, 0], sizes = [2, 4], strides = [1, 1]} : vector<4x4xf32> to vector<2x4xf32>
    %708 = arith.truncf %707 : vector<2x4xf32> to vector<2x4xbf16>
    %cst_304 = arith.constant dense<0.000000e+00> : vector<2x16xf32>
    %709 = tpu.matmul %708, %529, %cst_304 {dimension_numbers = #tpu.dot_dimension_numbers<[1], [0], [0], [1], [0, 0, 1, 1], [], []>} : vector<2x4xbf16>, vector<4x16xbf16>, vector<2x16xf32> -> vector<2x16xf32>
    %710 = arith.index_cast %c3_i32_301 : i32 to index
    %c0_305 = arith.constant 0 : index
    %c0_306 = arith.constant 0 : index
    %711 = vector.load %arg23[%710, %c0_305, %c0_306] : memref<8x2x16xf32, #tpu.memory_space<vmem>>, vector<1x2x16xf32>
    %712 = vector.shape_cast %711 : vector<1x2x16xf32> to vector<2x16xf32>
    %713 = arith.addf %712, %706 : vector<2x16xf32>
    %714 = arith.index_cast %703 : i32 to index
    %c0_307 = arith.constant 0 : index
    %c0_308 = arith.constant 0 : index
    %715 = vector.load %arg24[%714, %c0_307, %c0_308] : memref<8x2x16xf32, #tpu.memory_space<vmem>>, vector<1x2x16xf32>
    %716 = vector.shape_cast %715 : vector<1x2x16xf32> to vector<2x16xf32>
    %717 = arith.addf %716, %709 : vector<2x16xf32>
    %718 = tpu.concatenate %713, %717 in 0 : vector<2x16xf32>, vector<2x16xf32> -> vector<4x16xf32>
    %719 = vector.extract_strided_slice %718 {offsets = [0, 0], sizes = [4, 4], strides = [1, 1]} : vector<4x16xf32> to vector<4x4xf32>
    %cst_309 = arith.constant 5.000000e-01 : f32
    %720 = vector.broadcast %cst_309 : f32 to vector<4x4xf32>
    %721 = arith.mulf %720, %719 : vector<4x4xf32>
    %722 = math.tanh %721 : vector<4x4xf32>
    %cst_310 = arith.constant 5.000000e-01 : f32
    %723 = vector.broadcast %cst_310 : f32 to vector<4x4xf32>
    %724 = arith.mulf %723, %722 : vector<4x4xf32>
    %cst_311 = arith.constant 5.000000e-01 : f32
    %725 = vector.broadcast %cst_311 : f32 to vector<4x4xf32>
    %726 = arith.addf %724, %725 : vector<4x4xf32>
    %727 = vector.extract_strided_slice %718 {offsets = [0, 4], sizes = [4, 4], strides = [1, 1]} : vector<4x16xf32> to vector<4x4xf32>
    %cst_312 = arith.constant 5.000000e-01 : f32
    %728 = vector.broadcast %cst_312 : f32 to vector<4x4xf32>
    %729 = arith.mulf %728, %727 : vector<4x4xf32>
    %730 = math.tanh %729 : vector<4x4xf32>
    %cst_313 = arith.constant 5.000000e-01 : f32
    %731 = vector.broadcast %cst_313 : f32 to vector<4x4xf32>
    %732 = arith.mulf %731, %730 : vector<4x4xf32>
    %cst_314 = arith.constant 5.000000e-01 : f32
    %733 = vector.broadcast %cst_314 : f32 to vector<4x4xf32>
    %734 = arith.addf %732, %733 : vector<4x4xf32>
    %735 = vector.extract_strided_slice %718 {offsets = [0, 8], sizes = [4, 4], strides = [1, 1]} : vector<4x16xf32> to vector<4x4xf32>
    %736 = math.tanh %735 : vector<4x4xf32>
    %737 = vector.extract_strided_slice %718 {offsets = [0, 12], sizes = [4, 4], strides = [1, 1]} : vector<4x16xf32> to vector<4x4xf32>
    %cst_315 = arith.constant 5.000000e-01 : f32
    %738 = vector.broadcast %cst_315 : f32 to vector<4x4xf32>
    %739 = arith.mulf %738, %737 : vector<4x4xf32>
    %740 = math.tanh %739 : vector<4x4xf32>
    %cst_316 = arith.constant 5.000000e-01 : f32
    %741 = vector.broadcast %cst_316 : f32 to vector<4x4xf32>
    %742 = arith.mulf %741, %740 : vector<4x4xf32>
    %cst_317 = arith.constant 5.000000e-01 : f32
    %743 = vector.broadcast %cst_317 : f32 to vector<4x4xf32>
    %744 = arith.addf %742, %743 : vector<4x4xf32>
    %745 = arith.mulf %734, %690 : vector<4x4xf32>
    %746 = arith.mulf %726, %736 : vector<4x4xf32>
    %747 = arith.addf %745, %746 : vector<4x4xf32>
    %748 = math.tanh %747 : vector<4x4xf32>
    %749 = arith.mulf %744, %748 : vector<4x4xf32>
    %750 = vector.extract_strided_slice %749 {offsets = [0, 0], sizes = [2, 4], strides = [1, 1]} : vector<4x4xf32> to vector<2x4xf32>
    %751 = arith.index_cast %c3_i32_301 : i32 to index
    %c0_318 = arith.constant 0 : index
    %c0_319 = arith.constant 0 : index
    %752 = vector.load %arg25[%751, %c0_318, %c0_319] : memref<8x2x4xf32, #tpu.memory_space<vmem>>, vector<1x2x4xf32>
    %753 = vector.shape_cast %752 : vector<1x2x4xf32> to vector<2x4xf32>
    %754 = vector.shape_cast %750 : vector<2x4xf32> to vector<1x2x4xf32>
    tpu.vector_store %arg25[%751, %c0_318, %c0_319], %754 {strides = array<i32>} : memref<8x2x4xf32, #tpu.memory_space<vmem>>, vector<1x2x4xf32>,
    %755 = vector.extract_strided_slice %749 {offsets = [2, 0], sizes = [2, 4], strides = [1, 1]} : vector<4x4xf32> to vector<2x4xf32>
    %756 = arith.index_cast %703 : i32 to index
    %c0_320 = arith.constant 0 : index
    %c0_321 = arith.constant 0 : index
    %757 = vector.load %arg26[%756, %c0_320, %c0_321] : memref<8x2x4xf32, #tpu.memory_space<vmem>>, vector<1x2x4xf32>
    %758 = vector.shape_cast %757 : vector<1x2x4xf32> to vector<2x4xf32>
    %759 = vector.shape_cast %755 : vector<2x4xf32> to vector<1x2x4xf32>
    tpu.vector_store %arg26[%756, %c0_320, %c0_321], %759 {strides = array<i32>} : memref<8x2x4xf32, #tpu.memory_space<vmem>>, vector<1x2x4xf32>,
    %c4_i32_322 = arith.constant 4 : i32
    %c7_i32_323 = arith.constant 7 : i32
    %760 = arith.subi %c7_i32_323, %c4_i32_322 : i32
    %761 = vector.extract_strided_slice %749 {offsets = [0, 0], sizes = [2, 4], strides = [1, 1]} : vector<4x4xf32> to vector<2x4xf32>
    %762 = arith.truncf %761 : vector<2x4xf32> to vector<2x4xbf16>
    %cst_324 = arith.constant dense<0.000000e+00> : vector<2x16xf32>
    %763 = tpu.matmul %762, %527, %cst_324 {dimension_numbers = #tpu.dot_dimension_numbers<[1], [0], [0], [1], [0, 0, 1, 1], [], []>} : vector<2x4xbf16>, vector<4x16xbf16>, vector<2x16xf32> -> vector<2x16xf32>
    %764 = vector.extract_strided_slice %749 {offsets = [2, 0], sizes = [2, 4], strides = [1, 1]} : vector<4x4xf32> to vector<2x4xf32>
    %765 = arith.truncf %764 : vector<2x4xf32> to vector<2x4xbf16>
    %cst_325 = arith.constant dense<0.000000e+00> : vector<2x16xf32>
    %766 = tpu.matmul %765, %529, %cst_325 {dimension_numbers = #tpu.dot_dimension_numbers<[1], [0], [0], [1], [0, 0, 1, 1], [], []>} : vector<2x4xbf16>, vector<4x16xbf16>, vector<2x16xf32> -> vector<2x16xf32>
    %767 = arith.index_cast %c4_i32_322 : i32 to index
    %c0_326 = arith.constant 0 : index
    %c0_327 = arith.constant 0 : index
    %768 = vector.load %arg23[%767, %c0_326, %c0_327] : memref<8x2x16xf32, #tpu.memory_space<vmem>>, vector<1x2x16xf32>
    %769 = vector.shape_cast %768 : vector<1x2x16xf32> to vector<2x16xf32>
    %770 = arith.addf %769, %763 : vector<2x16xf32>
    %771 = arith.index_cast %760 : i32 to index
    %c0_328 = arith.constant 0 : index
    %c0_329 = arith.constant 0 : index
    %772 = vector.load %arg24[%771, %c0_328, %c0_329] : memref<8x2x16xf32, #tpu.memory_space<vmem>>, vector<1x2x16xf32>
    %773 = vector.shape_cast %772 : vector<1x2x16xf32> to vector<2x16xf32>
    %774 = arith.addf %773, %766 : vector<2x16xf32>
    %775 = tpu.concatenate %770, %774 in 0 : vector<2x16xf32>, vector<2x16xf32> -> vector<4x16xf32>
    %776 = vector.extract_strided_slice %775 {offsets = [0, 0], sizes = [4, 4], strides = [1, 1]} : vector<4x16xf32> to vector<4x4xf32>
    %cst_330 = arith.constant 5.000000e-01 : f32
    %777 = vector.broadcast %cst_330 : f32 to vector<4x4xf32>
    %778 = arith.mulf %777, %776 : vector<4x4xf32>
    %779 = math.tanh %778 : vector<4x4xf32>
    %cst_331 = arith.constant 5.000000e-01 : f32
    %780 = vector.broadcast %cst_331 : f32 to vector<4x4xf32>
    %781 = arith.mulf %780, %779 : vector<4x4xf32>
    %cst_332 = arith.constant 5.000000e-01 : f32
    %782 = vector.broadcast %cst_332 : f32 to vector<4x4xf32>
    %783 = arith.addf %781, %782 : vector<4x4xf32>
    %784 = vector.extract_strided_slice %775 {offsets = [0, 4], sizes = [4, 4], strides = [1, 1]} : vector<4x16xf32> to vector<4x4xf32>
    %cst_333 = arith.constant 5.000000e-01 : f32
    %785 = vector.broadcast %cst_333 : f32 to vector<4x4xf32>
    %786 = arith.mulf %785, %784 : vector<4x4xf32>
    %787 = math.tanh %786 : vector<4x4xf32>
    %cst_334 = arith.constant 5.000000e-01 : f32
    %788 = vector.broadcast %cst_334 : f32 to vector<4x4xf32>
    %789 = arith.mulf %788, %787 : vector<4x4xf32>
    %cst_335 = arith.constant 5.000000e-01 : f32
    %790 = vector.broadcast %cst_335 : f32 to vector<4x4xf32>
    %791 = arith.addf %789, %790 : vector<4x4xf32>
    %792 = vector.extract_strided_slice %775 {offsets = [0, 8], sizes = [4, 4], strides = [1, 1]} : vector<4x16xf32> to vector<4x4xf32>
    %793 = math.tanh %792 : vector<4x4xf32>
    %794 = vector.extract_strided_slice %775 {offsets = [0, 12], sizes = [4, 4], strides = [1, 1]} : vector<4x16xf32> to vector<4x4xf32>
    %cst_336 = arith.constant 5.000000e-01 : f32
    %795 = vector.broadcast %cst_336 : f32 to vector<4x4xf32>
    %796 = arith.mulf %795, %794 : vector<4x4xf32>
    %797 = math.tanh %796 : vector<4x4xf32>
    %cst_337 = arith.constant 5.000000e-01 : f32
    %798 = vector.broadcast %cst_337 : f32 to vector<4x4xf32>
    %799 = arith.mulf %798, %797 : vector<4x4xf32>
    %cst_338 = arith.constant 5.000000e-01 : f32
    %800 = vector.broadcast %cst_338 : f32 to vector<4x4xf32>
    %801 = arith.addf %799, %800 : vector<4x4xf32>
    %802 = arith.mulf %791, %747 : vector<4x4xf32>
    %803 = arith.mulf %783, %793 : vector<4x4xf32>
    %804 = arith.addf %802, %803 : vector<4x4xf32>
    %805 = math.tanh %804 : vector<4x4xf32>
    %806 = arith.mulf %801, %805 : vector<4x4xf32>
    %807 = vector.extract_strided_slice %806 {offsets = [0, 0], sizes = [2, 4], strides = [1, 1]} : vector<4x4xf32> to vector<2x4xf32>
    %808 = arith.index_cast %c4_i32_322 : i32 to index
    %c0_339 = arith.constant 0 : index
    %c0_340 = arith.constant 0 : index
    %809 = vector.load %arg25[%808, %c0_339, %c0_340] : memref<8x2x4xf32, #tpu.memory_space<vmem>>, vector<1x2x4xf32>
    %810 = vector.shape_cast %809 : vector<1x2x4xf32> to vector<2x4xf32>
    %811 = vector.shape_cast %807 : vector<2x4xf32> to vector<1x2x4xf32>
    tpu.vector_store %arg25[%808, %c0_339, %c0_340], %811 {strides = array<i32>} : memref<8x2x4xf32, #tpu.memory_space<vmem>>, vector<1x2x4xf32>,
    %812 = vector.extract_strided_slice %806 {offsets = [2, 0], sizes = [2, 4], strides = [1, 1]} : vector<4x4xf32> to vector<2x4xf32>
    %813 = arith.index_cast %760 : i32 to index
    %c0_341 = arith.constant 0 : index
    %c0_342 = arith.constant 0 : index
    %814 = vector.load %arg26[%813, %c0_341, %c0_342] : memref<8x2x4xf32, #tpu.memory_space<vmem>>, vector<1x2x4xf32>
    %815 = vector.shape_cast %814 : vector<1x2x4xf32> to vector<2x4xf32>
    %816 = vector.shape_cast %812 : vector<2x4xf32> to vector<1x2x4xf32>
    tpu.vector_store %arg26[%813, %c0_341, %c0_342], %816 {strides = array<i32>} : memref<8x2x4xf32, #tpu.memory_space<vmem>>, vector<1x2x4xf32>,
    %c5_i32_343 = arith.constant 5 : i32
    %c7_i32_344 = arith.constant 7 : i32
    %817 = arith.subi %c7_i32_344, %c5_i32_343 : i32
    %818 = vector.extract_strided_slice %806 {offsets = [0, 0], sizes = [2, 4], strides = [1, 1]} : vector<4x4xf32> to vector<2x4xf32>
    %819 = arith.truncf %818 : vector<2x4xf32> to vector<2x4xbf16>
    %cst_345 = arith.constant dense<0.000000e+00> : vector<2x16xf32>
    %820 = tpu.matmul %819, %527, %cst_345 {dimension_numbers = #tpu.dot_dimension_numbers<[1], [0], [0], [1], [0, 0, 1, 1], [], []>} : vector<2x4xbf16>, vector<4x16xbf16>, vector<2x16xf32> -> vector<2x16xf32>
    %821 = vector.extract_strided_slice %806 {offsets = [2, 0], sizes = [2, 4], strides = [1, 1]} : vector<4x4xf32> to vector<2x4xf32>
    %822 = arith.truncf %821 : vector<2x4xf32> to vector<2x4xbf16>
    %cst_346 = arith.constant dense<0.000000e+00> : vector<2x16xf32>
    %823 = tpu.matmul %822, %529, %cst_346 {dimension_numbers = #tpu.dot_dimension_numbers<[1], [0], [0], [1], [0, 0, 1, 1], [], []>} : vector<2x4xbf16>, vector<4x16xbf16>, vector<2x16xf32> -> vector<2x16xf32>
    %824 = arith.index_cast %c5_i32_343 : i32 to index
    %c0_347 = arith.constant 0 : index
    %c0_348 = arith.constant 0 : index
    %825 = vector.load %arg23[%824, %c0_347, %c0_348] : memref<8x2x16xf32, #tpu.memory_space<vmem>>, vector<1x2x16xf32>
    %826 = vector.shape_cast %825 : vector<1x2x16xf32> to vector<2x16xf32>
    %827 = arith.addf %826, %820 : vector<2x16xf32>
    %828 = arith.index_cast %817 : i32 to index
    %c0_349 = arith.constant 0 : index
    %c0_350 = arith.constant 0 : index
    %829 = vector.load %arg24[%828, %c0_349, %c0_350] : memref<8x2x16xf32, #tpu.memory_space<vmem>>, vector<1x2x16xf32>
    %830 = vector.shape_cast %829 : vector<1x2x16xf32> to vector<2x16xf32>
    %831 = arith.addf %830, %823 : vector<2x16xf32>
    %832 = tpu.concatenate %827, %831 in 0 : vector<2x16xf32>, vector<2x16xf32> -> vector<4x16xf32>
    %833 = vector.extract_strided_slice %832 {offsets = [0, 0], sizes = [4, 4], strides = [1, 1]} : vector<4x16xf32> to vector<4x4xf32>
    %cst_351 = arith.constant 5.000000e-01 : f32
    %834 = vector.broadcast %cst_351 : f32 to vector<4x4xf32>
    %835 = arith.mulf %834, %833 : vector<4x4xf32>
    %836 = math.tanh %835 : vector<4x4xf32>
    %cst_352 = arith.constant 5.000000e-01 : f32
    %837 = vector.broadcast %cst_352 : f32 to vector<4x4xf32>
    %838 = arith.mulf %837, %836 : vector<4x4xf32>
    %cst_353 = arith.constant 5.000000e-01 : f32
    %839 = vector.broadcast %cst_353 : f32 to vector<4x4xf32>
    %840 = arith.addf %838, %839 : vector<4x4xf32>
    %841 = vector.extract_strided_slice %832 {offsets = [0, 4], sizes = [4, 4], strides = [1, 1]} : vector<4x16xf32> to vector<4x4xf32>
    %cst_354 = arith.constant 5.000000e-01 : f32
    %842 = vector.broadcast %cst_354 : f32 to vector<4x4xf32>
    %843 = arith.mulf %842, %841 : vector<4x4xf32>
    %844 = math.tanh %843 : vector<4x4xf32>
    %cst_355 = arith.constant 5.000000e-01 : f32
    %845 = vector.broadcast %cst_355 : f32 to vector<4x4xf32>
    %846 = arith.mulf %845, %844 : vector<4x4xf32>
    %cst_356 = arith.constant 5.000000e-01 : f32
    %847 = vector.broadcast %cst_356 : f32 to vector<4x4xf32>
    %848 = arith.addf %846, %847 : vector<4x4xf32>
    %849 = vector.extract_strided_slice %832 {offsets = [0, 8], sizes = [4, 4], strides = [1, 1]} : vector<4x16xf32> to vector<4x4xf32>
    %850 = math.tanh %849 : vector<4x4xf32>
    %851 = vector.extract_strided_slice %832 {offsets = [0, 12], sizes = [4, 4], strides = [1, 1]} : vector<4x16xf32> to vector<4x4xf32>
    %cst_357 = arith.constant 5.000000e-01 : f32
    %852 = vector.broadcast %cst_357 : f32 to vector<4x4xf32>
    %853 = arith.mulf %852, %851 : vector<4x4xf32>
    %854 = math.tanh %853 : vector<4x4xf32>
    %cst_358 = arith.constant 5.000000e-01 : f32
    %855 = vector.broadcast %cst_358 : f32 to vector<4x4xf32>
    %856 = arith.mulf %855, %854 : vector<4x4xf32>
    %cst_359 = arith.constant 5.000000e-01 : f32
    %857 = vector.broadcast %cst_359 : f32 to vector<4x4xf32>
    %858 = arith.addf %856, %857 : vector<4x4xf32>
    %859 = arith.mulf %848, %804 : vector<4x4xf32>
    %860 = arith.mulf %840, %850 : vector<4x4xf32>
    %861 = arith.addf %859, %860 : vector<4x4xf32>
    %862 = math.tanh %861 : vector<4x4xf32>
    %863 = arith.mulf %858, %862 : vector<4x4xf32>
    %864 = vector.extract_strided_slice %863 {offsets = [0, 0], sizes = [2, 4], strides = [1, 1]} : vector<4x4xf32> to vector<2x4xf32>
    %865 = arith.index_cast %c5_i32_343 : i32 to index
    %c0_360 = arith.constant 0 : index
    %c0_361 = arith.constant 0 : index
    %866 = vector.load %arg25[%865, %c0_360, %c0_361] : memref<8x2x4xf32, #tpu.memory_space<vmem>>, vector<1x2x4xf32>
    %867 = vector.shape_cast %866 : vector<1x2x4xf32> to vector<2x4xf32>
    %868 = vector.shape_cast %864 : vector<2x4xf32> to vector<1x2x4xf32>
    tpu.vector_store %arg25[%865, %c0_360, %c0_361], %868 {strides = array<i32>} : memref<8x2x4xf32, #tpu.memory_space<vmem>>, vector<1x2x4xf32>,
    %869 = vector.extract_strided_slice %863 {offsets = [2, 0], sizes = [2, 4], strides = [1, 1]} : vector<4x4xf32> to vector<2x4xf32>
    %870 = arith.index_cast %817 : i32 to index
    %c0_362 = arith.constant 0 : index
    %c0_363 = arith.constant 0 : index
    %871 = vector.load %arg26[%870, %c0_362, %c0_363] : memref<8x2x4xf32, #tpu.memory_space<vmem>>, vector<1x2x4xf32>
    %872 = vector.shape_cast %871 : vector<1x2x4xf32> to vector<2x4xf32>
    %873 = vector.shape_cast %869 : vector<2x4xf32> to vector<1x2x4xf32>
    tpu.vector_store %arg26[%870, %c0_362, %c0_363], %873 {strides = array<i32>} : memref<8x2x4xf32, #tpu.memory_space<vmem>>, vector<1x2x4xf32>,
    %c6_i32_364 = arith.constant 6 : i32
    %c7_i32_365 = arith.constant 7 : i32
    %874 = arith.subi %c7_i32_365, %c6_i32_364 : i32
    %875 = vector.extract_strided_slice %863 {offsets = [0, 0], sizes = [2, 4], strides = [1, 1]} : vector<4x4xf32> to vector<2x4xf32>
    %876 = arith.truncf %875 : vector<2x4xf32> to vector<2x4xbf16>
    %cst_366 = arith.constant dense<0.000000e+00> : vector<2x16xf32>
    %877 = tpu.matmul %876, %527, %cst_366 {dimension_numbers = #tpu.dot_dimension_numbers<[1], [0], [0], [1], [0, 0, 1, 1], [], []>} : vector<2x4xbf16>, vector<4x16xbf16>, vector<2x16xf32> -> vector<2x16xf32>
    %878 = vector.extract_strided_slice %863 {offsets = [2, 0], sizes = [2, 4], strides = [1, 1]} : vector<4x4xf32> to vector<2x4xf32>
    %879 = arith.truncf %878 : vector<2x4xf32> to vector<2x4xbf16>
    %cst_367 = arith.constant dense<0.000000e+00> : vector<2x16xf32>
    %880 = tpu.matmul %879, %529, %cst_367 {dimension_numbers = #tpu.dot_dimension_numbers<[1], [0], [0], [1], [0, 0, 1, 1], [], []>} : vector<2x4xbf16>, vector<4x16xbf16>, vector<2x16xf32> -> vector<2x16xf32>
    %881 = arith.index_cast %c6_i32_364 : i32 to index
    %c0_368 = arith.constant 0 : index
    %c0_369 = arith.constant 0 : index
    %882 = vector.load %arg23[%881, %c0_368, %c0_369] : memref<8x2x16xf32, #tpu.memory_space<vmem>>, vector<1x2x16xf32>
    %883 = vector.shape_cast %882 : vector<1x2x16xf32> to vector<2x16xf32>
    %884 = arith.addf %883, %877 : vector<2x16xf32>
    %885 = arith.index_cast %874 : i32 to index
    %c0_370 = arith.constant 0 : index
    %c0_371 = arith.constant 0 : index
    %886 = vector.load %arg24[%885, %c0_370, %c0_371] : memref<8x2x16xf32, #tpu.memory_space<vmem>>, vector<1x2x16xf32>
    %887 = vector.shape_cast %886 : vector<1x2x16xf32> to vector<2x16xf32>
    %888 = arith.addf %887, %880 : vector<2x16xf32>
    %889 = tpu.concatenate %884, %888 in 0 : vector<2x16xf32>, vector<2x16xf32> -> vector<4x16xf32>
    %890 = vector.extract_strided_slice %889 {offsets = [0, 0], sizes = [4, 4], strides = [1, 1]} : vector<4x16xf32> to vector<4x4xf32>
    %cst_372 = arith.constant 5.000000e-01 : f32
    %891 = vector.broadcast %cst_372 : f32 to vector<4x4xf32>
    %892 = arith.mulf %891, %890 : vector<4x4xf32>
    %893 = math.tanh %892 : vector<4x4xf32>
    %cst_373 = arith.constant 5.000000e-01 : f32
    %894 = vector.broadcast %cst_373 : f32 to vector<4x4xf32>
    %895 = arith.mulf %894, %893 : vector<4x4xf32>
    %cst_374 = arith.constant 5.000000e-01 : f32
    %896 = vector.broadcast %cst_374 : f32 to vector<4x4xf32>
    %897 = arith.addf %895, %896 : vector<4x4xf32>
    %898 = vector.extract_strided_slice %889 {offsets = [0, 4], sizes = [4, 4], strides = [1, 1]} : vector<4x16xf32> to vector<4x4xf32>
    %cst_375 = arith.constant 5.000000e-01 : f32
    %899 = vector.broadcast %cst_375 : f32 to vector<4x4xf32>
    %900 = arith.mulf %899, %898 : vector<4x4xf32>
    %901 = math.tanh %900 : vector<4x4xf32>
    %cst_376 = arith.constant 5.000000e-01 : f32
    %902 = vector.broadcast %cst_376 : f32 to vector<4x4xf32>
    %903 = arith.mulf %902, %901 : vector<4x4xf32>
    %cst_377 = arith.constant 5.000000e-01 : f32
    %904 = vector.broadcast %cst_377 : f32 to vector<4x4xf32>
    %905 = arith.addf %903, %904 : vector<4x4xf32>
    %906 = vector.extract_strided_slice %889 {offsets = [0, 8], sizes = [4, 4], strides = [1, 1]} : vector<4x16xf32> to vector<4x4xf32>
    %907 = math.tanh %906 : vector<4x4xf32>
    %908 = vector.extract_strided_slice %889 {offsets = [0, 12], sizes = [4, 4], strides = [1, 1]} : vector<4x16xf32> to vector<4x4xf32>
    %cst_378 = arith.constant 5.000000e-01 : f32
    %909 = vector.broadcast %cst_378 : f32 to vector<4x4xf32>
    %910 = arith.mulf %909, %908 : vector<4x4xf32>
    %911 = math.tanh %910 : vector<4x4xf32>
    %cst_379 = arith.constant 5.000000e-01 : f32
    %912 = vector.broadcast %cst_379 : f32 to vector<4x4xf32>
    %913 = arith.mulf %912, %911 : vector<4x4xf32>
    %cst_380 = arith.constant 5.000000e-01 : f32
    %914 = vector.broadcast %cst_380 : f32 to vector<4x4xf32>
    %915 = arith.addf %913, %914 : vector<4x4xf32>
    %916 = arith.mulf %905, %861 : vector<4x4xf32>
    %917 = arith.mulf %897, %907 : vector<4x4xf32>
    %918 = arith.addf %916, %917 : vector<4x4xf32>
    %919 = math.tanh %918 : vector<4x4xf32>
    %920 = arith.mulf %915, %919 : vector<4x4xf32>
    %921 = vector.extract_strided_slice %920 {offsets = [0, 0], sizes = [2, 4], strides = [1, 1]} : vector<4x4xf32> to vector<2x4xf32>
    %922 = arith.index_cast %c6_i32_364 : i32 to index
    %c0_381 = arith.constant 0 : index
    %c0_382 = arith.constant 0 : index
    %923 = vector.load %arg25[%922, %c0_381, %c0_382] : memref<8x2x4xf32, #tpu.memory_space<vmem>>, vector<1x2x4xf32>
    %924 = vector.shape_cast %923 : vector<1x2x4xf32> to vector<2x4xf32>
    %925 = vector.shape_cast %921 : vector<2x4xf32> to vector<1x2x4xf32>
    tpu.vector_store %arg25[%922, %c0_381, %c0_382], %925 {strides = array<i32>} : memref<8x2x4xf32, #tpu.memory_space<vmem>>, vector<1x2x4xf32>,
    %926 = vector.extract_strided_slice %920 {offsets = [2, 0], sizes = [2, 4], strides = [1, 1]} : vector<4x4xf32> to vector<2x4xf32>
    %927 = arith.index_cast %874 : i32 to index
    %c0_383 = arith.constant 0 : index
    %c0_384 = arith.constant 0 : index
    %928 = vector.load %arg26[%927, %c0_383, %c0_384] : memref<8x2x4xf32, #tpu.memory_space<vmem>>, vector<1x2x4xf32>
    %929 = vector.shape_cast %928 : vector<1x2x4xf32> to vector<2x4xf32>
    %930 = vector.shape_cast %926 : vector<2x4xf32> to vector<1x2x4xf32>
    tpu.vector_store %arg26[%927, %c0_383, %c0_384], %930 {strides = array<i32>} : memref<8x2x4xf32, #tpu.memory_space<vmem>>, vector<1x2x4xf32>,
    %c7_i32_385 = arith.constant 7 : i32
    %c7_i32_386 = arith.constant 7 : i32
    %931 = arith.subi %c7_i32_386, %c7_i32_385 : i32
    %932 = vector.extract_strided_slice %920 {offsets = [0, 0], sizes = [2, 4], strides = [1, 1]} : vector<4x4xf32> to vector<2x4xf32>
    %933 = arith.truncf %932 : vector<2x4xf32> to vector<2x4xbf16>
    %cst_387 = arith.constant dense<0.000000e+00> : vector<2x16xf32>
    %934 = tpu.matmul %933, %527, %cst_387 {dimension_numbers = #tpu.dot_dimension_numbers<[1], [0], [0], [1], [0, 0, 1, 1], [], []>} : vector<2x4xbf16>, vector<4x16xbf16>, vector<2x16xf32> -> vector<2x16xf32>
    %935 = vector.extract_strided_slice %920 {offsets = [2, 0], sizes = [2, 4], strides = [1, 1]} : vector<4x4xf32> to vector<2x4xf32>
    %936 = arith.truncf %935 : vector<2x4xf32> to vector<2x4xbf16>
    %cst_388 = arith.constant dense<0.000000e+00> : vector<2x16xf32>
    %937 = tpu.matmul %936, %529, %cst_388 {dimension_numbers = #tpu.dot_dimension_numbers<[1], [0], [0], [1], [0, 0, 1, 1], [], []>} : vector<2x4xbf16>, vector<4x16xbf16>, vector<2x16xf32> -> vector<2x16xf32>
    %938 = arith.index_cast %c7_i32_385 : i32 to index
    %c0_389 = arith.constant 0 : index
    %c0_390 = arith.constant 0 : index
    %939 = vector.load %arg23[%938, %c0_389, %c0_390] : memref<8x2x16xf32, #tpu.memory_space<vmem>>, vector<1x2x16xf32>
    %940 = vector.shape_cast %939 : vector<1x2x16xf32> to vector<2x16xf32>
    %941 = arith.addf %940, %934 : vector<2x16xf32>
    %942 = arith.index_cast %931 : i32 to index
    %c0_391 = arith.constant 0 : index
    %c0_392 = arith.constant 0 : index
    %943 = vector.load %arg24[%942, %c0_391, %c0_392] : memref<8x2x16xf32, #tpu.memory_space<vmem>>, vector<1x2x16xf32>
    %944 = vector.shape_cast %943 : vector<1x2x16xf32> to vector<2x16xf32>
    %945 = arith.addf %944, %937 : vector<2x16xf32>
    %946 = tpu.concatenate %941, %945 in 0 : vector<2x16xf32>, vector<2x16xf32> -> vector<4x16xf32>
    %947 = vector.extract_strided_slice %946 {offsets = [0, 0], sizes = [4, 4], strides = [1, 1]} : vector<4x16xf32> to vector<4x4xf32>
    %cst_393 = arith.constant 5.000000e-01 : f32
    %948 = vector.broadcast %cst_393 : f32 to vector<4x4xf32>
    %949 = arith.mulf %948, %947 : vector<4x4xf32>
    %950 = math.tanh %949 : vector<4x4xf32>
    %cst_394 = arith.constant 5.000000e-01 : f32
    %951 = vector.broadcast %cst_394 : f32 to vector<4x4xf32>
    %952 = arith.mulf %951, %950 : vector<4x4xf32>
    %cst_395 = arith.constant 5.000000e-01 : f32
    %953 = vector.broadcast %cst_395 : f32 to vector<4x4xf32>
    %954 = arith.addf %952, %953 : vector<4x4xf32>
    %955 = vector.extract_strided_slice %946 {offsets = [0, 4], sizes = [4, 4], strides = [1, 1]} : vector<4x16xf32> to vector<4x4xf32>
    %cst_396 = arith.constant 5.000000e-01 : f32
    %956 = vector.broadcast %cst_396 : f32 to vector<4x4xf32>
    %957 = arith.mulf %956, %955 : vector<4x4xf32>
    %958 = math.tanh %957 : vector<4x4xf32>
    %cst_397 = arith.constant 5.000000e-01 : f32
    %959 = vector.broadcast %cst_397 : f32 to vector<4x4xf32>
    %960 = arith.mulf %959, %958 : vector<4x4xf32>
    %cst_398 = arith.constant 5.000000e-01 : f32
    %961 = vector.broadcast %cst_398 : f32 to vector<4x4xf32>
    %962 = arith.addf %960, %961 : vector<4x4xf32>
    %963 = vector.extract_strided_slice %946 {offsets = [0, 8], sizes = [4, 4], strides = [1, 1]} : vector<4x16xf32> to vector<4x4xf32>
    %964 = math.tanh %963 : vector<4x4xf32>
    %965 = vector.extract_strided_slice %946 {offsets = [0, 12], sizes = [4, 4], strides = [1, 1]} : vector<4x16xf32> to vector<4x4xf32>
    %cst_399 = arith.constant 5.000000e-01 : f32
    %966 = vector.broadcast %cst_399 : f32 to vector<4x4xf32>
    %967 = arith.mulf %966, %965 : vector<4x4xf32>
    %968 = math.tanh %967 : vector<4x4xf32>
    %cst_400 = arith.constant 5.000000e-01 : f32
    %969 = vector.broadcast %cst_400 : f32 to vector<4x4xf32>
    %970 = arith.mulf %969, %968 : vector<4x4xf32>
    %cst_401 = arith.constant 5.000000e-01 : f32
    %971 = vector.broadcast %cst_401 : f32 to vector<4x4xf32>
    %972 = arith.addf %970, %971 : vector<4x4xf32>
    %973 = arith.mulf %962, %918 : vector<4x4xf32>
    %974 = arith.mulf %954, %964 : vector<4x4xf32>
    %975 = arith.addf %973, %974 : vector<4x4xf32>
    %976 = math.tanh %975 : vector<4x4xf32>
    %977 = arith.mulf %972, %976 : vector<4x4xf32>
    %978 = vector.extract_strided_slice %977 {offsets = [0, 0], sizes = [2, 4], strides = [1, 1]} : vector<4x4xf32> to vector<2x4xf32>
    %979 = arith.index_cast %c7_i32_385 : i32 to index
    %c0_402 = arith.constant 0 : index
    %c0_403 = arith.constant 0 : index
    %980 = vector.load %arg25[%979, %c0_402, %c0_403] : memref<8x2x4xf32, #tpu.memory_space<vmem>>, vector<1x2x4xf32>
    %981 = vector.shape_cast %980 : vector<1x2x4xf32> to vector<2x4xf32>
    %982 = vector.shape_cast %978 : vector<2x4xf32> to vector<1x2x4xf32>
    tpu.vector_store %arg25[%979, %c0_402, %c0_403], %982 {strides = array<i32>} : memref<8x2x4xf32, #tpu.memory_space<vmem>>, vector<1x2x4xf32>,
    %983 = vector.extract_strided_slice %977 {offsets = [2, 0], sizes = [2, 4], strides = [1, 1]} : vector<4x4xf32> to vector<2x4xf32>
    %984 = arith.index_cast %931 : i32 to index
    %c0_404 = arith.constant 0 : index
    %c0_405 = arith.constant 0 : index
    %985 = vector.load %arg26[%984, %c0_404, %c0_405] : memref<8x2x4xf32, #tpu.memory_space<vmem>>, vector<1x2x4xf32>
    %986 = vector.shape_cast %985 : vector<1x2x4xf32> to vector<2x4xf32>
    %987 = vector.shape_cast %983 : vector<2x4xf32> to vector<1x2x4xf32>
    tpu.vector_store %arg26[%984, %c0_404, %c0_405], %987 {strides = array<i32>} : memref<8x2x4xf32, #tpu.memory_space<vmem>>, vector<1x2x4xf32>,
    %c8_i32_406 = arith.constant 8 : i32
    %c0_407 = arith.constant 0 : index
    %c0_408 = arith.constant 0 : index
    %c0_409 = arith.constant 0 : index
    %988 = vector.load %arg25[%c0_407, %c0_408, %c0_409] : memref<8x2x4xf32, #tpu.memory_space<vmem>>, vector<8x2x4xf32>
    %989 = vector.shape_cast %988 : vector<8x2x4xf32> to vector<16x4xf32>
    %c0_410 = arith.constant 0 : index
    %c0_411 = arith.constant 0 : index
    %c0_412 = arith.constant 0 : index
    %990 = vector.load %arg26[%c0_410, %c0_411, %c0_412] : memref<8x2x4xf32, #tpu.memory_space<vmem>>, vector<8x2x4xf32>
    %991 = vector.shape_cast %990 : vector<8x2x4xf32> to vector<16x4xf32>
    %992 = tpu.concatenate %989, %991 in 1 : vector<16x4xf32>, vector<16x4xf32> -> vector<16x8xf32>
    %993 = arith.truncf %992 : vector<16x8xf32> to vector<16x8xbf16>
    %c0_413 = arith.constant 0 : index
    %c0_414 = arith.constant 0 : index
    %994 = vector.load %arg16[%c0_413, %c0_414] : memref<8x128xbf16, #tpu.memory_space<vmem>>, vector<8x128xbf16>
    %cst_415 = arith.constant dense<0.000000e+00> : vector<16x128xf32>
    %995 = tpu.matmul %993, %994, %cst_415 {dimension_numbers = #tpu.dot_dimension_numbers<[1], [0], [0], [1], [0, 0, 1, 1], [], []>} : vector<16x8xbf16>, vector<8x128xbf16>, vector<16x128xf32> -> vector<16x128xf32>
    %c0_416 = arith.constant 0 : index
    %c0_417 = arith.constant 0 : index
    %996 = vector.load %arg17[%c0_416, %c0_417] : memref<1x128xf32, #tpu.memory_space<vmem>>, vector<1x128xf32>
    %997 = vector.broadcast %996 : vector<1x128xf32> to vector<16x128xf32>
    %998 = arith.addf %995, %997 : vector<16x128xf32>
    %c0_418 = arith.constant 0 : index
    %c0_419 = arith.constant 0 : index
    %999 = vector.load %arg18[%c0_418, %c0_419] : memref<16x128xf32, #tpu.memory_space<vmem>>, vector<16x128xf32>
    tpu.vector_store %arg18[%c0_418, %c0_419], %998 {strides = array<i32>} : memref<16x128xf32, #tpu.memory_space<vmem>>, vector<16x128xf32>,
    return
  }
  func.func @transform_0(%arg0: i32) -> (i32, i32) {
    %c0_i32 = arith.constant 0 : i32
    %c0_i32_0 = arith.constant 0 : i32
    %c0_i32_1 = arith.constant 0 : i32
    return %c0_i32, %c0_i32_0 : i32, i32
  }
  func.func @transform_1(%arg0: i32) -> (i32, i32) {
    %c0_i32 = arith.constant 0 : i32
    %c0_i32_0 = arith.constant 0 : i32
    %c0_i32_1 = arith.constant 0 : i32
    return %c0_i32, %c0_i32_0 : i32, i32
  }
  func.func @transform_2(%arg0: i32) -> (i32, i32) {
    %c0_i32 = arith.constant 0 : i32
    %c0_i32_0 = arith.constant 0 : i32
    %c0_i32_1 = arith.constant 0 : i32
    return %c0_i32, %c0_i32_0 : i32, i32
  }
  func.func @transform_3(%arg0: i32) -> (i32, i32) {
    %c0_i32 = arith.constant 0 : i32
    %c0_i32_0 = arith.constant 0 : i32
    %c0_i32_1 = arith.constant 0 : i32
    return %c0_i32, %c0_i32_0 : i32, i32
  }
  func.func @transform_4(%arg0: i32) -> (i32, i32, i32) {
    %c0_i32 = arith.constant 0 : i32
    %c0_i32_0 = arith.constant 0 : i32
    %c0_i32_1 = arith.constant 0 : i32
    %c0_i32_2 = arith.constant 0 : i32
    return %c0_i32, %c0_i32_0, %c0_i32_1 : i32, i32, i32
  }
  func.func @transform_5(%arg0: i32) -> (i32, i32, i32) {
    %c0_i32 = arith.constant 0 : i32
    %c0_i32_0 = arith.constant 0 : i32
    %c0_i32_1 = arith.constant 0 : i32
    %c0_i32_2 = arith.constant 0 : i32
    return %c0_i32, %c0_i32_0, %c0_i32_1 : i32, i32, i32
  }
  func.func @transform_6(%arg0: i32) -> (i32, i32, i32) {
    %c0_i32 = arith.constant 0 : i32
    %c0_i32_0 = arith.constant 0 : i32
    %c0_i32_1 = arith.constant 0 : i32
    %c0_i32_2 = arith.constant 0 : i32
    return %c0_i32, %c0_i32_0, %c0_i32_1 : i32, i32, i32
  }
  func.func @transform_7(%arg0: i32) -> (i32, i32) {
    %c0_i32 = arith.constant 0 : i32
    %c0_i32_0 = arith.constant 0 : i32
    %c0_i32_1 = arith.constant 0 : i32
    return %c0_i32, %c0_i32_0 : i32, i32
  }
  func.func @transform_8(%arg0: i32) -> (i32, i32) {
    %c0_i32 = arith.constant 0 : i32
    %c0_i32_0 = arith.constant 0 : i32
    %c0_i32_1 = arith.constant 0 : i32
    return %c0_i32, %c0_i32_0 : i32, i32
  }
  func.func @transform_9(%arg0: i32) -> (i32, i32, i32) {
    %c0_i32 = arith.constant 0 : i32
    %c0_i32_0 = arith.constant 0 : i32
    %c0_i32_1 = arith.constant 0 : i32
    %c0_i32_2 = arith.constant 0 : i32
    return %c0_i32, %c0_i32_0, %c0_i32_1 : i32, i32, i32
  }
  func.func @transform_10(%arg0: i32) -> (i32, i32, i32) {
    %c0_i32 = arith.constant 0 : i32
    %c0_i32_0 = arith.constant 0 : i32
    %c0_i32_1 = arith.constant 0 : i32
    %c0_i32_2 = arith.constant 0 : i32
    return %c0_i32, %c0_i32_0, %c0_i32_1 : i32, i32, i32
  }
  func.func @transform_11(%arg0: i32) -> (i32, i32, i32) {
    %c0_i32 = arith.constant 0 : i32
    %c0_i32_0 = arith.constant 0 : i32
    %c0_i32_1 = arith.constant 0 : i32
    %c0_i32_2 = arith.constant 0 : i32
    return %c0_i32, %c0_i32_0, %c0_i32_1 : i32, i32, i32
  }
  func.func @transform_12(%arg0: i32) -> (i32, i32, i32) {
    %c0_i32 = arith.constant 0 : i32
    %c0_i32_0 = arith.constant 0 : i32
    %c0_i32_1 = arith.constant 0 : i32
    %c0_i32_2 = arith.constant 0 : i32
    return %c0_i32, %c0_i32_0, %c0_i32_1 : i32, i32, i32
  }
  func.func @transform_13(%arg0: i32) -> (i32, i32) {
    %c0_i32 = arith.constant 0 : i32
    %c0_i32_0 = arith.constant 0 : i32
    %c0_i32_1 = arith.constant 0 : i32
    return %c0_i32, %c0_i32_0 : i32, i32
  }
  func.func @transform_14(%arg0: i32) -> (i32, i32) {
    %c0_i32 = arith.constant 0 : i32
    %c0_i32_0 = arith.constant 0 : i32
    %c0_i32_1 = arith.constant 0 : i32
    return %c0_i32, %c0_i32_0 : i32, i32
  }
  func.func @transform_15(%arg0: i32) -> (i32, i32) {
    %c0_i32 = arith.constant 0 : i32
    %c0_i32_0 = arith.constant 0 : i32
    %c0_i32_1 = arith.constant 0 : i32
    return %c0_i32, %c0_i32_0 : i32, i32
  }
  func.func @transform_16(%arg0: i32) -> (i32, i32) {
    %c0_i32 = arith.constant 0 : i32
    %c0_i32_0 = arith.constant 0 : i32
    %c0_i32_1 = arith.constant 0 : i32
    return %c0_i32, %c0_i32_0 : i32, i32
  }
  func.func @transform_17(%arg0: i32) -> (i32, i32) {
    %c0_i32 = arith.constant 0 : i32
    %c0_i32_0 = arith.constant 0 : i32
    %c0_i32_1 = arith.constant 0 : i32
    return %c0_i32, %c0_i32_0 : i32, i32
  }
}

</mosaic_0001>

<llo_original>
// kernel: bilstm_dec_cr2_forward.3
$region0: #{bilstm_dec_cr2_forward.3}
  #allocation0 [shape = 'u32[]', space=smem, size = 0x4, offset = 0x4, fixed_abs, tag = 'smem constant byte address 0x4 - core index']
  #allocation1 [shape = 'u32[72,128]{1,0:T(1,128)}', space=vmem, size = 0x9000, scoped, tag = 'internal scratch']
  #allocation2 [shape = 'f32[8,2,128]{2,1,0:T(2,128)}', space=vmem, size = 0x2000, scoped, tag = 'scratch operand']
  #allocation3 [shape = 'f32[8,2,128]{2,1,0:T(2,128)}', space=vmem, size = 0x2000, scoped, tag = 'scratch operand']
  #allocation4 [shape = 'f32[8,2,32]{2,1,0:T(2,128)}', space=vmem, size = 0x2000, scoped, tag = 'scratch operand']
  #allocation5 [shape = 'f32[8,2,32]{2,1,0:T(2,128)}', space=vmem, size = 0x2000, scoped, tag = 'scratch operand']
  #allocation6 [shape = 'f32[8,2,16]{2,1,0:T(2,128)}', space=vmem, size = 0x2000, scoped, tag = 'scratch operand']
  #allocation7 [shape = 'f32[8,2,16]{2,1,0:T(2,128)}', space=vmem, size = 0x2000, scoped, tag = 'scratch operand']
  #allocation8 [shape = 'f32[8,2,4]{2,1,0:T(2,128)}', space=vmem, size = 0x2000, scoped, tag = 'scratch operand']
  #allocation9 [shape = 'f32[8,2,4]{2,1,0:T(2,128)}', space=vmem, size = 0x2000, scoped, tag = 'scratch operand']
  %s0 = inlined_call_operand.vmem [shape: f32[16,32], index: 0, kind: input, shape index: {}]
  %s1 = inlined_call_operand.vmem [shape: f32[16,1], index: 1, kind: input, shape index: {}]
  %s2 = inlined_call_operand.vmem [shape: bf16[32,64], index: 2, kind: input, shape index: {}]
  %s3 = inlined_call_operand.vmem [shape: f32[1,64], index: 3, kind: input, shape index: {}]
  %s4 = inlined_call_operand.vmem [shape: bf16[2,64,128], index: 4, kind: input, shape index: {}]
  %s5 = inlined_call_operand.vmem [shape: bf16[2,32,128], index: 5, kind: input, shape index: {}]
  %s6 = inlined_call_operand.vmem [shape: f32[2,1,128], index: 6, kind: input, shape index: {}]
  %s7 = inlined_call_operand.vmem [shape: f32[4,32], index: 7, kind: input, shape index: {}]
  %s8 = inlined_call_operand.vmem [shape: f32[4,32], index: 8, kind: input, shape index: {}]
  %s9 = inlined_call_operand.vmem [shape: bf16[2,64,16], index: 9, kind: input, shape index: {}]
  %s10 = inlined_call_operand.vmem [shape: f32[2,1,16], index: 10, kind: input, shape index: {}]
  %s11 = inlined_call_operand.vmem [shape: bf16[2,4,16], index: 11, kind: input, shape index: {}]
  %s12 = inlined_call_operand.vmem [shape: f32[2,1,16], index: 12, kind: input, shape index: {}]
  %s13 = inlined_call_operand.vmem [shape: f32[4,4], index: 13, kind: input, shape index: {}]
  %s14 = inlined_call_operand.vmem [shape: f32[4,4], index: 14, kind: input, shape index: {}]
  %s15 = inlined_call_operand.vmem [shape: bf16[8,128], index: 15, kind: input, shape index: {}]
  %s16 = inlined_call_operand.vmem [shape: f32[1,128], index: 16, kind: input, shape index: {}]
  %s17 = inlined_call_operand.vmem [shape: f32[16,128], index: 17, kind: output, shape index: {}]
  %s18 = sld [smem:[#allocation0]]
  $region78: #{bilstm_dec_cr2_forward.3} parent=0
    _
  %s20 = ssub.s32 1, %s18
  %s21 = scalar_select 0, %s20, %s18
  // Predicated region
  $region2: #{bilstm_dec_cr2_forward.3} parent=0 // pred_check
    _
  $region3: #{bilstm_dec_cr2_forward.3} parent=0 // pred_check_branch
    %23 = sbr.rel (0) target = $region5
  $region4: #{bilstm_dec_cr2_forward.3} parent=0 // pred_region
    _
  $region5: #{bilstm_dec_cr2_forward.3} parent=0 // pred_fallthru
    _
  // Predicated region
  $region6: #{bilstm_dec_cr2_forward.3} parent=0 // pred_check
    _
  $region7: #{bilstm_dec_cr2_forward.3} parent=0 // pred_check_branch
    %25 = sbr.rel (0) target = $region9
  $region8: #{bilstm_dec_cr2_forward.3} parent=0 // pred_region
    _
  $region9: #{bilstm_dec_cr2_forward.3} parent=0 // pred_fallthru
    _
  // Predicated region
  $region10: #{bilstm_dec_cr2_forward.3} parent=0 // pred_check
    _
  $region11: #{bilstm_dec_cr2_forward.3} parent=0 // pred_check_branch
    %27 = sbr.rel (0) target = $region13
  $region12: #{bilstm_dec_cr2_forward.3} parent=0 // pred_region
    _
  $region13: #{bilstm_dec_cr2_forward.3} parent=0 // pred_fallthru
    _
  // Predicated region
  $region14: #{bilstm_dec_cr2_forward.3} parent=0 // pred_check
    _
  $region15: #{bilstm_dec_cr2_forward.3} parent=0 // pred_check_branch
    %29 = sbr.rel (0) target = $region17
  $region16: #{bilstm_dec_cr2_forward.3} parent=0 // pred_region
    _
  $region17: #{bilstm_dec_cr2_forward.3} parent=0 // pred_fallthru
    _
  // Predicated region
  $region18: #{bilstm_dec_cr2_forward.3} parent=0 // pred_check
    _
  $region19: #{bilstm_dec_cr2_forward.3} parent=0 // pred_check_branch
    %31 = sbr.rel (0) target = $region21
  $region20: #{bilstm_dec_cr2_forward.3} parent=0 // pred_region
    _
  $region21: #{bilstm_dec_cr2_forward.3} parent=0 // pred_fallthru
    _
  // Predicated region
  $region22: #{bilstm_dec_cr2_forward.3} parent=0 // pred_check
    _
  $region23: #{bilstm_dec_cr2_forward.3} parent=0 // pred_check_branch
    %33 = sbr.rel (0) target = $region25
  $region24: #{bilstm_dec_cr2_forward.3} parent=0 // pred_region
    _
  $region25: #{bilstm_dec_cr2_forward.3} parent=0 // pred_fallthru
    _
  // Predicated region
  $region26: #{bilstm_dec_cr2_forward.3} parent=0 // pred_check
    _
  $region27: #{bilstm_dec_cr2_forward.3} parent=0 // pred_check_branch
    %35 = sbr.rel (0) target = $region29
  $region28: #{bilstm_dec_cr2_forward.3} parent=0 // pred_region
    _
  $region29: #{bilstm_dec_cr2_forward.3} parent=0 // pred_fallthru
    _
  // Predicated region
  $region30: #{bilstm_dec_cr2_forward.3} parent=0 // pred_check
    _
  $region31: #{bilstm_dec_cr2_forward.3} parent=0 // pred_check_branch
    %37 = sbr.rel (0) target = $region33
  $region32: #{bilstm_dec_cr2_forward.3} parent=0 // pred_region
    _
  $region33: #{bilstm_dec_cr2_forward.3} parent=0 // pred_fallthru
    _
  // Predicated region
  $region34: #{bilstm_dec_cr2_forward.3} parent=0 // pred_check
    _
  $region35: #{bilstm_dec_cr2_forward.3} parent=0 // pred_check_branch
    %39 = sbr.rel (0) target = $region37
  $region36: #{bilstm_dec_cr2_forward.3} parent=0 // pred_region
    _
  $region37: #{bilstm_dec_cr2_forward.3} parent=0 // pred_fallthru
    _
  // Predicated region
  $region38: #{bilstm_dec_cr2_forward.3} parent=0 // pred_check
    _
  $region39: #{bilstm_dec_cr2_forward.3} parent=0 // pred_check_branch
    %41 = sbr.rel (0) target = $region41
  $region40: #{bilstm_dec_cr2_forward.3} parent=0 // pred_region
    _
  $region41: #{bilstm_dec_cr2_forward.3} parent=0 // pred_fallthru
    _
  // Predicated region
  $region42: #{bilstm_dec_cr2_forward.3} parent=0 // pred_check
    _
  $region43: #{bilstm_dec_cr2_forward.3} parent=0 // pred_check_branch
    %43 = sbr.rel (0) target = $region45
  $region44: #{bilstm_dec_cr2_forward.3} parent=0 // pred_region
    _
  $region45: #{bilstm_dec_cr2_forward.3} parent=0 // pred_fallthru
    _
  // Predicated region
  $region46: #{bilstm_dec_cr2_forward.3} parent=0 // pred_check
    _
  $region47: #{bilstm_dec_cr2_forward.3} parent=0 // pred_check_branch
    %45 = sbr.rel (0) target = $region49
  $region48: #{bilstm_dec_cr2_forward.3} parent=0 // pred_region
    _
  $region49: #{bilstm_dec_cr2_forward.3} parent=0 // pred_fallthru
    _
  // Predicated region
  $region50: #{bilstm_dec_cr2_forward.3} parent=0 // pred_check
    _
  $region51: #{bilstm_dec_cr2_forward.3} parent=0 // pred_check_branch
    %47 = sbr.rel (0) target = $region53
  $region52: #{bilstm_dec_cr2_forward.3} parent=0 // pred_region
    _
  $region53: #{bilstm_dec_cr2_forward.3} parent=0 // pred_fallthru
    _
  // Predicated region
  $region54: #{bilstm_dec_cr2_forward.3} parent=0 // pred_check
    _
  $region55: #{bilstm_dec_cr2_forward.3} parent=0 // pred_check_branch
    %49 = sbr.rel (0) target = $region57
  $region56: #{bilstm_dec_cr2_forward.3} parent=0 // pred_region
    _
  $region57: #{bilstm_dec_cr2_forward.3} parent=0 // pred_fallthru
    _
  // Predicated region
  $region58: #{bilstm_dec_cr2_forward.3} parent=0 // pred_check
    _
  $region59: #{bilstm_dec_cr2_forward.3} parent=0 // pred_check_branch
    %51 = sbr.rel (0) target = $region61
  $region60: #{bilstm_dec_cr2_forward.3} parent=0 // pred_region
    _
  $region61: #{bilstm_dec_cr2_forward.3} parent=0 // pred_fallthru
    _
  // Predicated region
  $region62: #{bilstm_dec_cr2_forward.3} parent=0 // pred_check
    _
  $region63: #{bilstm_dec_cr2_forward.3} parent=0 // pred_check_branch
    %53 = sbr.rel (0) target = $region65
  $region64: #{bilstm_dec_cr2_forward.3} parent=0 // pred_region
    _
  $region65: #{bilstm_dec_cr2_forward.3} parent=0 // pred_fallthru
    _
  // Predicated region
  $region66: #{bilstm_dec_cr2_forward.3} parent=0 // pred_check
    _
  $region67: #{bilstm_dec_cr2_forward.3} parent=0 // pred_check_branch
    %55 = sbr.rel (0) target = $region69
  $region68: #{bilstm_dec_cr2_forward.3} parent=0 // pred_region
    _
  $region69: #{bilstm_dec_cr2_forward.3} parent=0 // pred_fallthru
    _
  %v57 = vld [vmem:[%s0] sm:$0xff]
  %v58 = vld [vmem:[%s0 + $0x8] sm:$0xff]
  %v59 = vpack.c.bf16 %v58, %v57
  %v60 = vld [vmem:[%s2] sm:$0xf]
  %v61 = vld [vmem:[%s2 + $0x4] sm:$0xf]
  %v62 = vld [vmem:[%s2 + $0x8] sm:$0xf]
  %v63 = vld [vmem:[%s2 + $0xc] sm:$0xf]
  %v64 = vld [vmem:[%s3] sm:$0x1]
  %v66 = vperm.slane %v64, 0
  %v72 = vunpack.c.l.b16 %v60
  %v73 = vunpack.c.l.b16 %v61
  %v74 = vunpack.c.l.b16 %v62
  %v75 = vunpack.c.l.b16 %v63
  %v76 = vpack.c.b16 %v73, %v72
  %v77 = vpack.c.b16 %v75, %v74
  %vm80 = vcmask 261120
  %v82 = vsel %vm80, %v59, 0
  %84 = vmatpush.bf16.msra.mxu0 0
  %85 = vmatpush.bf16.msra.mxu0 0
  %86 = vmatpush.bf16.msra.mxu0 0
  %87 = vmatpush.bf16.msra.mxu0 0
  %88 = vmatpush.bf16.msra.mxu0 0
  %89 = vmatpush.bf16.msra.mxu0 0
  %90 = vmatpush.bf16.msra.mxu0 %v77
  %91 = vmatpush.bf16.msra.mxu0 %v76
  %92 = vmatmul.bf16.gmra.mxu0 %v82
  %v93 = vpop.f32.mrf.mxu0
  %v94 = vadd.f32 %v66, %v93
  %v95 = vpop.f32.mrf.mxu0
  %v96 = vadd.f32 %v66, %v95
  %97 = vdwg.mxu0
  %v98 = vtanh.pop %v94
  %v99 = vtanh.pop %v96
  %v100 = vpack.c.bf16 %v99, %v98
  %v101 = vld [vmem:[%s4] sm:$0xf]
  %v102 = vld [vmem:[%s4 + $0x4] sm:$0xf]
  %v103 = vld [vmem:[%s4 + $0x8] sm:$0xf]
  %v104 = vld [vmem:[%s4 + $0xc] sm:$0xf]
  %v105 = vld [vmem:[%s4 + $0x10] sm:$0xf]
  %v106 = vld [vmem:[%s4 + $0x14] sm:$0xf]
  %v107 = vld [vmem:[%s4 + $0x18] sm:$0xf]
  %v108 = vld [vmem:[%s4 + $0x1c] sm:$0xf]
  %v109 = vld [vmem:[%s6] sm:$0x1]
  %v111 = vperm.slane %v109, 0
  %v121 = vunpack.c.l.b16 %v101
  %v122 = vunpack.c.l.b16 %v102
  %v123 = vunpack.c.l.b16 %v103
  %v124 = vunpack.c.l.b16 %v104
  %v125 = vunpack.c.l.b16 %v105
  %v126 = vunpack.c.l.b16 %v106
  %v127 = vunpack.c.l.b16 %v107
  %v128 = vunpack.c.l.b16 %v108
  %v129 = vpack.c.b16 %v122, %v121
  %v130 = vpack.c.b16 %v124, %v123
  %v131 = vpack.c.b16 %v126, %v125
  %v132 = vpack.c.b16 %v128, %v127
  %vm137 = vcmask 523264
  %v139 = vsel %vm137, %v100, 0
  %141 = vmatpush.bf16.msra.mxu0 0
  %142 = vmatpush.bf16.msra.mxu0 0
  %143 = vmatpush.bf16.msra.mxu0 0
  %144 = vmatpush.bf16.msra.mxu0 0
  %145 = vmatpush.bf16.msra.mxu0 %v132
  %146 = vmatpush.bf16.msra.mxu0 %v131
  %147 = vmatpush.bf16.msra.mxu0 %v130
  %148 = vmatpush.bf16.msra.mxu0 %v129
  %149 = vmatmul.bf16.gmra.mxu0 %v139
  %v150 = vpop.f32.mrf.mxu0
  %v151 = vadd.f32 %v111, %v150
  %v152 = vpop.f32.mrf.mxu0
  %v153 = vadd.f32 %v111, %v152
  %154 = vdwg.mxu0
  %v157 = vrot.slane %v151, 2
  %v158 = vrot.slane %v151, 4
  %v159 = vrot.slane %v151, 6
  %v160 = vrot.slane %v153, 2
  %v161 = vrot.slane %v153, 4
  %v162 = vrot.slane %v153, 6
  %169 = vst [vmem:[#allocation2] sm:$0x3] %v151
  %170 = vst [vmem:[#allocation2 + $0x2] sm:$0x3] %v157
  %171 = vst [vmem:[#allocation2 + $0x4] sm:$0x3] %v158
  %172 = vst [vmem:[#allocation2 + $0x6] sm:$0x3] %v159
  %173 = vst [vmem:[#allocation2 + $0x8] sm:$0x3] %v153
  %174 = vst [vmem:[#allocation2 + $0xa] sm:$0x3] %v160
  %175 = vst [vmem:[#allocation2 + $0xc] sm:$0x3] %v161
  %176 = vst [vmem:[#allocation2 + $0xe] sm:$0x3] %v162
  %s177 = scalar_lea.vmem %s4, 32
  %v178 = vld [vmem:[%s177] sm:$0xf]
  %v179 = vld [vmem:[%s177 + $0x4] sm:$0xf]
  %v180 = vld [vmem:[%s177 + $0x8] sm:$0xf]
  %v181 = vld [vmem:[%s177 + $0xc] sm:$0xf]
  %v182 = vld [vmem:[%s177 + $0x10] sm:$0xf]
  %v183 = vld [vmem:[%s177 + $0x14] sm:$0xf]
  %v184 = vld [vmem:[%s177 + $0x18] sm:$0xf]
  %v185 = vld [vmem:[%s177 + $0x1c] sm:$0xf]
  %s186 = scalar_lea.vmem %s6, 1
  %v187 = vld [vmem:[%s186] sm:$0x1]
  %v189 = vperm.slane %v187, 0
  %v199 = vunpack.c.l.b16 %v178
  %v200 = vunpack.c.l.b16 %v179
  %v201 = vunpack.c.l.b16 %v180
  %v202 = vunpack.c.l.b16 %v181
  %v203 = vunpack.c.l.b16 %v182
  %v204 = vunpack.c.l.b16 %v183
  %v205 = vunpack.c.l.b16 %v184
  %v206 = vunpack.c.l.b16 %v185
  %v207 = vpack.c.b16 %v200, %v199
  %v208 = vpack.c.b16 %v202, %v201
  %v209 = vpack.c.b16 %v204, %v203
  %v210 = vpack.c.b16 %v206, %v205
  %215 = vmatpush.bf16.msra.mxu0 0
  %216 = vmatpush.bf16.msra.mxu0 0
  %217 = vmatpush.bf16.msra.mxu0 0
  %218 = vmatpush.bf16.msra.mxu0 0
  %219 = vmatpush.bf16.msra.mxu0 %v210
  %220 = vmatpush.bf16.msra.mxu0 %v209
  %221 = vmatpush.bf16.msra.mxu0 %v208
  %222 = vmatpush.bf16.msra.mxu0 %v207
  %223 = vmatmul.bf16.gmra.mxu0 %v139
  %v224 = vpop.f32.mrf.mxu0
  %v225 = vadd.f32 %v189, %v224
  %v226 = vpop.f32.mrf.mxu0
  %v227 = vadd.f32 %v189, %v226
  %228 = vdwg.mxu0
  %v231 = vrot.slane %v225, 2
  %v232 = vrot.slane %v225, 4
  %v233 = vrot.slane %v225, 6
  %v234 = vrot.slane %v227, 2
  %v235 = vrot.slane %v227, 4
  %v236 = vrot.slane %v227, 6
  %243 = vst [vmem:[#allocation3] sm:$0x3] %v225
  %244 = vst [vmem:[#allocation3 + $0x2] sm:$0x3] %v231
  %245 = vst [vmem:[#allocation3 + $0x4] sm:$0x3] %v232
  %246 = vst [vmem:[#allocation3 + $0x6] sm:$0x3] %v233
  %247 = vst [vmem:[#allocation3 + $0x8] sm:$0x3] %v227
  %248 = vst [vmem:[#allocation3 + $0xa] sm:$0x3] %v234
  %249 = vst [vmem:[#allocation3 + $0xc] sm:$0x3] %v235
  %250 = vst [vmem:[#allocation3 + $0xe] sm:$0x3] %v236
  %v251 = vld [vmem:[%s5] sm:$0xf]
  %v252 = vld [vmem:[%s5 + $0x4] sm:$0xf]
  %v253 = vld [vmem:[%s5 + $0x8] sm:$0xf]
  %v254 = vld [vmem:[%s5 + $0xc] sm:$0xf]
  %s255 = scalar_lea.vmem %s5, 16
  %v256 = vld [vmem:[%s255] sm:$0xf]
  %v257 = vld [vmem:[%s255 + $0x4] sm:$0xf]
  %v258 = vld [vmem:[%s255 + $0x8] sm:$0xf]
  %v259 = vld [vmem:[%s255 + $0xc] sm:$0xf]
  %v260 = vld [vmem:[%s7] sm:$0xf]
  %v261 = vld [vmem:[%s8] sm:$0xf]
  %v262 = vpack.c.bf16 %v260, %v260
  %v267 = vunpack.c.l.b16 %v251
  %v268 = vunpack.c.l.b16 %v252
  %v269 = vunpack.c.l.b16 %v253
  %v270 = vunpack.c.l.b16 %v254
  %v271 = vpack.c.b16 %v268, %v267
  %v272 = vpack.c.b16 %v270, %v269
  %v276 = vsel %vm80, %v262, 0
  %278 = vmatpush.bf16.msra.mxu0 0
  %279 = vmatpush.bf16.msra.mxu0 0
  %280 = vmatpush.bf16.msra.mxu0 0
  %281 = vmatpush.bf16.msra.mxu0 0
  %282 = vmatpush.bf16.msra.mxu0 0
  %283 = vmatpush.bf16.msra.mxu0 0
  %284 = vmatpush.bf16.msra.mxu0 %v272
  %285 = vmatpush.bf16.msra.mxu0 %v271
  %286 = vmatmul.bf16.gmra.mxu0 %v276
  %v287 = vpop.f32.mrf.mxu0
  %v288 = vadd.f32 0.0, %v287
  %v289 = vpop.f32.mrf.mxu0
  %290 = vdwg.mxu0
  %v292 = vrot.slane %v262, 1
  %v297 = vunpack.c.l.b16 %v256
  %v298 = vunpack.c.l.b16 %v257
  %v299 = vunpack.c.l.b16 %v258
  %v300 = vunpack.c.l.b16 %v259
  %v301 = vpack.c.b16 %v298, %v297
  %v302 = vpack.c.b16 %v300, %v299
  %v306 = vsel %vm80, %v292, 0
  %308 = vmatpush.bf16.msra.mxu0 0
  %309 = vmatpush.bf16.msra.mxu0 0
  %310 = vmatpush.bf16.msra.mxu0 0
  %311 = vmatpush.bf16.msra.mxu0 0
  %312 = vmatpush.bf16.msra.mxu0 0
  %313 = vmatpush.bf16.msra.mxu0 0
  %314 = vmatpush.bf16.msra.mxu0 %v302
  %315 = vmatpush.bf16.msra.mxu0 %v301
  %316 = vmatmul.bf16.gmra.mxu0 %v306
  %v317 = vpop.f32.mrf.mxu0
  %v318 = vadd.f32 0.0, %v317
  %v319 = vpop.f32.mrf.mxu0
  %320 = vdwg.mxu0
  %v321 = vld [vmem:[#allocation2] sm:$0x3]
  %v322 = vadd.f32 %v321, %v288
  %s323 = scalar_lea.vmem [#allocation3], 14
  %v324 = vld [vmem:[%s323] sm:$0x3]
  %v325 = vadd.f32 %v324, %v318
  %v327 = vrot.slane %v325, 6
  %vm329 = vcmask 1041408
  %v330 = vsel %vm329, %v322, %v327
  %v331 = vmul.f32 %v330, 0.5
  %v332 = vtanh.pop %v331
  %v333 = vmul.f32 %v332, 0.5
  %v334 = vadd.f32 %v333, 0.5
  %v335 = vtanh.pop %v330
  %337 = vrot.lane.b32.xlu0 %v261, 32
  %v338 = vpop.permute.xlu0 %337
  %v340 = vmul.f32 %v334, %v338
  %342 = vrot.lane.b32.xlu0 %v335, 64
  %v343 = vpop.permute.xlu0 %342
  %v345 = vmul.f32 %v334, %v343
  %347 = vrot.lane.b32.xlu0 %v345, 32
  %v348 = vpop.permute.xlu0 %347
  %v350 = vadd.f32 %v340, %v348
  %v351 = vtanh.pop %v350
  %353 = vrot.lane.b32.xlu0 %v351, 64
  %v354 = vpop.permute.xlu0 %353
  %v356 = vmul.f32 %v334, %v354
  %358 = vrot.lane.b32.xlu0 %v356, 32
  %v359 = vpop.permute.xlu0 %358
  %vm361 = vcmask 254976
  %362 = vst.msk [vmem:[#allocation4] sm:$0x3] %vm361, %v359
  %s363 = scalar_lea.vmem [#allocation5], 14
  %vm364 = vcmask 257026
  %365 = vst.msk [vmem:[%s363 - $0x2] sm:$0xc] %vm364, %v359
  %v366 = vpack.c.bf16 %v356, %v356
  %368 = vrot.lane.b32.xlu0 %v366, 32
  %v369 = vpop.permute.xlu0 %368
  %v371 = vsel %vm80, %v369, 0
  %373 = vmatpush.bf16.msra.mxu0 0
  %374 = vmatpush.bf16.msra.mxu0 0
  %375 = vmatpush.bf16.msra.mxu0 0
  %376 = vmatpush.bf16.msra.mxu0 0
  %377 = vmatpush.bf16.msra.mxu0 0
  %378 = vmatpush.bf16.msra.mxu0 0
  %379 = vmatpush.bf16.msra.mxu0 %v272
  %380 = vmatpush.bf16.msra.mxu0 %v271
  %381 = vmatmul.bf16.gmra.mxu0 %v371
  %v382 = vpop.f32.mrf.mxu0
  %v383 = vadd.f32 0.0, %v382
  %v384 = vpop.f32.mrf.mxu0
  %385 = vdwg.mxu0
  %v386 = vrot.slane %v366, 1
  %387 = vrot.lane.b32.xlu0 %v386, 32
  %v388 = vpop.permute.xlu0 %387
  %v390 = vsel %vm80, %v388, 0
  %392 = vmatpush.bf16.msra.mxu0 0
  %393 = vmatpush.bf16.msra.mxu0 0
  %394 = vmatpush.bf16.msra.mxu0 0
  %395 = vmatpush.bf16.msra.mxu0 0
  %396 = vmatpush.bf16.msra.mxu0 0
  %397 = vmatpush.bf16.msra.mxu0 0
  %398 = vmatpush.bf16.msra.mxu0 %v302
  %399 = vmatpush.bf16.msra.mxu0 %v301
  %400 = vmatmul.bf16.gmra.mxu0 %v390
  %v401 = vpop.f32.mrf.mxu0
  %v402 = vadd.f32 0.0, %v401
  %v403 = vpop.f32.mrf.mxu0
  %404 = vdwg.mxu0
  %s405 = scalar_lea.vmem [#allocation2], 2
  %v406 = vld [vmem:[%s405] sm:$0x3]
  %v407 = vadd.f32 %v406, %v383
  %s408 = scalar_lea.vmem [#allocation3], 12
  %v409 = vld [vmem:[%s408] sm:$0x3]
  %v410 = vadd.f32 %v409, %v402
  %v412 = vrot.slane %v410, 6
  %v414 = vsel %vm329, %v407, %v412
  %v415 = vmul.f32 %v414, 0.5
  %v416 = vtanh.pop %v415
  %v417 = vmul.f32 %v416, 0.5
  %v418 = vadd.f32 %v417, 0.5
  %v419 = vtanh.pop %v414
  %v420 = vmul.f32 %v418, %v350
  %422 = vrot.lane.b32.xlu0 %v419, 64
  %v423 = vpop.permute.xlu0 %422
  %v425 = vmul.f32 %v418, %v423
  %427 = vrot.lane.b32.xlu0 %v425, 32
  %v428 = vpop.permute.xlu0 %427
  %v430 = vadd.f32 %v420, %v428
  %v431 = vtanh.pop %v430
  %433 = vrot.lane.b32.xlu0 %v431, 64
  %v434 = vpop.permute.xlu0 %433
  %v436 = vmul.f32 %v418, %v434
  %438 = vrot.lane.b32.xlu0 %v436, 32
  %v439 = vpop.permute.xlu0 %438
  %s441 = scalar_lea.vmem [#allocation4], 2
  %442 = vst.msk [vmem:[%s441] sm:$0x3] %vm361, %v439
  %s443 = scalar_lea.vmem [#allocation5], 12
  %444 = vst.msk [vmem:[%s443 - $0x2] sm:$0xc] %vm364, %v439
  %v445 = vpack.c.bf16 %v436, %v436
  %447 = vrot.lane.b32.xlu0 %v445, 32
  %v448 = vpop.permute.xlu0 %447
  %v450 = vsel %vm80, %v448, 0
  %452 = vmatpush.bf16.msra.mxu0 0
  %453 = vmatpush.bf16.msra.mxu0 0
  %454 = vmatpush.bf16.msra.mxu0 0
  %455 = vmatpush.bf16.msra.mxu0 0
  %456 = vmatpush.bf16.msra.mxu0 0
  %457 = vmatpush.bf16.msra.mxu0 0
  %458 = vmatpush.bf16.msra.mxu0 %v272
  %459 = vmatpush.bf16.msra.mxu0 %v271
  %460 = vmatmul.bf16.gmra.mxu0 %v450
  %v461 = vpop.f32.mrf.mxu0
  %v462 = vadd.f32 0.0, %v461
  %v463 = vpop.f32.mrf.mxu0
  %464 = vdwg.mxu0
  %v465 = vrot.slane %v445, 1
  %466 = vrot.lane.b32.xlu0 %v465, 32
  %v467 = vpop.permute.xlu0 %466
  %v469 = vsel %vm80, %v467, 0
  %471 = vmatpush.bf16.msra.mxu0 0
  %472 = vmatpush.bf16.msra.mxu0 0
  %473 = vmatpush.bf16.msra.mxu0 0
  %474 = vmatpush.bf16.msra.mxu0 0
  %475 = vmatpush.bf16.msra.mxu0 0
  %476 = vmatpush.bf16.msra.mxu0 0
  %477 = vmatpush.bf16.msra.mxu0 %v302
  %478 = vmatpush.bf16.msra.mxu0 %v301
  %479 = vmatmul.bf16.gmra.mxu0 %v469
  %v480 = vpop.f32.mrf.mxu0
  %v481 = vadd.f32 0.0, %v480
  %v482 = vpop.f32.mrf.mxu0
  %483 = vdwg.mxu0
  %s484 = scalar_lea.vmem [#allocation2], 4
  %v485 = vld [vmem:[%s484] sm:$0x3]
  %v486 = vadd.f32 %v485, %v462
  %s487 = scalar_lea.vmem [#allocation3], 10
  %v488 = vld [vmem:[%s487] sm:$0x3]
  %v489 = vadd.f32 %v488, %v481
  %v491 = vrot.slane %v489, 6
  %v493 = vsel %vm329, %v486, %v491
  %v494 = vmul.f32 %v493, 0.5
  %v495 = vtanh.pop %v494
  %v496 = vmul.f32 %v495, 0.5
  %v497 = vadd.f32 %v496, 0.5
  %v498 = vtanh.pop %v493
  %v499 = vmul.f32 %v497, %v430
  %501 = vrot.lane.b32.xlu0 %v498, 64
  %v502 = vpop.permute.xlu0 %501
  %v504 = vmul.f32 %v497, %v502
  %506 = vrot.lane.b32.xlu0 %v504, 32
  %v507 = vpop.permute.xlu0 %506
  %v509 = vadd.f32 %v499, %v507
  %v510 = vtanh.pop %v509
  %512 = vrot.lane.b32.xlu0 %v510, 64
  %v513 = vpop.permute.xlu0 %512
  %v515 = vmul.f32 %v497, %v513
  %517 = vrot.lane.b32.xlu0 %v515, 32
  %v518 = vpop.permute.xlu0 %517
  %s520 = scalar_lea.vmem [#allocation4], 4
  %521 = vst.msk [vmem:[%s520] sm:$0x3] %vm361, %v518
  %s522 = scalar_lea.vmem [#allocation5], 10
  %523 = vst.msk [vmem:[%s522 - $0x2] sm:$0xc] %vm364, %v518
  %v524 = vpack.c.bf16 %v515, %v515
  %526 = vrot.lane.b32.xlu0 %v524, 32
  %v527 = vpop.permute.xlu0 %526
  %v529 = vsel %vm80, %v527, 0
  %531 = vmatpush.bf16.msra.mxu0 0
  %532 = vmatpush.bf16.msra.mxu0 0
  %533 = vmatpush.bf16.msra.mxu0 0
  %534 = vmatpush.bf16.msra.mxu0 0
  %535 = vmatpush.bf16.msra.mxu0 0
  %536 = vmatpush.bf16.msra.mxu0 0
  %537 = vmatpush.bf16.msra.mxu0 %v272
  %538 = vmatpush.bf16.msra.mxu0 %v271
  %539 = vmatmul.bf16.gmra.mxu0 %v529
  %v540 = vpop.f32.mrf.mxu0
  %v541 = vadd.f32 0.0, %v540
  %v542 = vpop.f32.mrf.mxu0
  %543 = vdwg.mxu0
  %v544 = vrot.slane %v524, 1
  %545 = vrot.lane.b32.xlu0 %v544, 32
  %v546 = vpop.permute.xlu0 %545
  %v548 = vsel %vm80, %v546, 0
  %550 = vmatpush.bf16.msra.mxu0 0
  %551 = vmatpush.bf16.msra.mxu0 0
  %552 = vmatpush.bf16.msra.mxu0 0
  %553 = vmatpush.bf16.msra.mxu0 0
  %554 = vmatpush.bf16.msra.mxu0 0
  %555 = vmatpush.bf16.msra.mxu0 0
  %556 = vmatpush.bf16.msra.mxu0 %v302
  %557 = vmatpush.bf16.msra.mxu0 %v301
  %558 = vmatmul.bf16.gmra.mxu0 %v548
  %v559 = vpop.f32.mrf.mxu0
  %v560 = vadd.f32 0.0, %v559
  %v561 = vpop.f32.mrf.mxu0
  %562 = vdwg.mxu0
  %s563 = scalar_lea.vmem [#allocation2], 6
  %v564 = vld [vmem:[%s563] sm:$0x3]
  %v565 = vadd.f32 %v564, %v541
  %s566 = scalar_lea.vmem [#allocation3], 8
  %v567 = vld [vmem:[%s566] sm:$0x3]
  %v568 = vadd.f32 %v567, %v560
  %v570 = vrot.slane %v568, 6
  %v572 = vsel %vm329, %v565, %v570
  %v573 = vmul.f32 %v572, 0.5
  %v574 = vtanh.pop %v573
  %v575 = vmul.f32 %v574, 0.5
  %v576 = vadd.f32 %v575, 0.5
  %v577 = vtanh.pop %v572
  %v578 = vmul.f32 %v576, %v509
  %580 = vrot.lane.b32.xlu0 %v577, 64
  %v581 = vpop.permute.xlu0 %580
  %v583 = vmul.f32 %v576, %v581
  %585 = vrot.lane.b32.xlu0 %v583, 32
  %v586 = vpop.permute.xlu0 %585
  %v588 = vadd.f32 %v578, %v586
  %v589 = vtanh.pop %v588
  %591 = vrot.lane.b32.xlu0 %v589, 64
  %v592 = vpop.permute.xlu0 %591
  %v594 = vmul.f32 %v576, %v592
  %596 = vrot.lane.b32.xlu0 %v594, 32
  %v597 = vpop.permute.xlu0 %596
  %s599 = scalar_lea.vmem [#allocation4], 6
  %600 = vst.msk [vmem:[%s599] sm:$0x3] %vm361, %v597
  %s601 = scalar_lea.vmem [#allocation5], 8
  %602 = vst.msk [vmem:[%s601 - $0x2] sm:$0xc] %vm364, %v597
  %v603 = vpack.c.bf16 %v594, %v594
  %605 = vrot.lane.b32.xlu0 %v603, 32
  %v606 = vpop.permute.xlu0 %605
  %v608 = vsel %vm80, %v606, 0
  %610 = vmatpush.bf16.msra.mxu0 0
  %611 = vmatpush.bf16.msra.mxu0 0
  %612 = vmatpush.bf16.msra.mxu0 0
  %613 = vmatpush.bf16.msra.mxu0 0
  %614 = vmatpush.bf16.msra.mxu0 0
  %615 = vmatpush.bf16.msra.mxu0 0
  %616 = vmatpush.bf16.msra.mxu0 %v272
  %617 = vmatpush.bf16.msra.mxu0 %v271
  %618 = vmatmul.bf16.gmra.mxu0 %v608
  %v619 = vpop.f32.mrf.mxu0
  %v620 = vadd.f32 0.0, %v619
  %v621 = vpop.f32.mrf.mxu0
  %622 = vdwg.mxu0
  %v623 = vrot.slane %v603, 1
  %624 = vrot.lane.b32.xlu0 %v623, 32
  %v625 = vpop.permute.xlu0 %624
  %v627 = vsel %vm80, %v625, 0
  %629 = vmatpush.bf16.msra.mxu0 0
  %630 = vmatpush.bf16.msra.mxu0 0
  %631 = vmatpush.bf16.msra.mxu0 0
  %632 = vmatpush.bf16.msra.mxu0 0
  %633 = vmatpush.bf16.msra.mxu0 0
  %634 = vmatpush.bf16.msra.mxu0 0
  %635 = vmatpush.bf16.msra.mxu0 %v302
  %636 = vmatpush.bf16.msra.mxu0 %v301
  %637 = vmatmul.bf16.gmra.mxu0 %v627
  %v638 = vpop.f32.mrf.mxu0
  %v639 = vadd.f32 0.0, %v638
  %v640 = vpop.f32.mrf.mxu0
  %641 = vdwg.mxu0
  %s642 = scalar_lea.vmem [#allocation2], 8
  %v643 = vld [vmem:[%s642] sm:$0x3]
  %v644 = vadd.f32 %v643, %v620
  %s645 = scalar_lea.vmem [#allocation3], 6
  %v646 = vld [vmem:[%s645] sm:$0x3]
  %v647 = vadd.f32 %v646, %v639
  %v649 = vrot.slane %v647, 6
  %v651 = vsel %vm329, %v644, %v649
  %v652 = vmul.f32 %v651, 0.5
  %v653 = vtanh.pop %v652
  %v654 = vmul.f32 %v653, 0.5
  %v655 = vadd.f32 %v654, 0.5
  %v656 = vtanh.pop %v651
  %v657 = vmul.f32 %v655, %v588
  %659 = vrot.lane.b32.xlu0 %v656, 64
  %v660 = vpop.permute.xlu0 %659
  %v662 = vmul.f32 %v655, %v660
  %664 = vrot.lane.b32.xlu0 %v662, 32
  %v665 = vpop.permute.xlu0 %664
  %v667 = vadd.f32 %v657, %v665
  %v668 = vtanh.pop %v667
  %670 = vrot.lane.b32.xlu0 %v668, 64
  %v671 = vpop.permute.xlu0 %670
  %v673 = vmul.f32 %v655, %v671
  %675 = vrot.lane.b32.xlu0 %v673, 32
  %v676 = vpop.permute.xlu0 %675
  %s678 = scalar_lea.vmem [#allocation4], 8
  %679 = vst.msk [vmem:[%s678] sm:$0x3] %vm361, %v676
  %s680 = scalar_lea.vmem [#allocation5], 6
  %681 = vst.msk [vmem:[%s680 - $0x2] sm:$0xc] %vm364, %v676
  %v682 = vpack.c.bf16 %v673, %v673
  %684 = vrot.lane.b32.xlu0 %v682, 32
  %v685 = vpop.permute.xlu0 %684
  %v687 = vsel %vm80, %v685, 0
  %689 = vmatpush.bf16.msra.mxu0 0
  %690 = vmatpush.bf16.msra.mxu0 0
  %691 = vmatpush.bf16.msra.mxu0 0
  %692 = vmatpush.bf16.msra.mxu0 0
  %693 = vmatpush.bf16.msra.mxu0 0
  %694 = vmatpush.bf16.msra.mxu0 0
  %695 = vmatpush.bf16.msra.mxu0 %v272
  %696 = vmatpush.bf16.msra.mxu0 %v271
  %697 = vmatmul.bf16.gmra.mxu0 %v687
  %v698 = vpop.f32.mrf.mxu0
  %v699 = vadd.f32 0.0, %v698
  %v700 = vpop.f32.mrf.mxu0
  %701 = vdwg.mxu0
  %v702 = vrot.slane %v682, 1
  %703 = vrot.lane.b32.xlu0 %v702, 32
  %v704 = vpop.permute.xlu0 %703
  %v706 = vsel %vm80, %v704, 0
  %708 = vmatpush.bf16.msra.mxu0 0
  %709 = vmatpush.bf16.msra.mxu0 0
  %710 = vmatpush.bf16.msra.mxu0 0
  %711 = vmatpush.bf16.msra.mxu0 0
  %712 = vmatpush.bf16.msra.mxu0 0
  %713 = vmatpush.bf16.msra.mxu0 0
  %714 = vmatpush.bf16.msra.mxu0 %v302
  %715 = vmatpush.bf16.msra.mxu0 %v301
  %716 = vmatmul.bf16.gmra.mxu0 %v706
  %v717 = vpop.f32.mrf.mxu0
  %v718 = vadd.f32 0.0, %v717
  %v719 = vpop.f32.mrf.mxu0
  %720 = vdwg.mxu0
  %s721 = scalar_lea.vmem [#allocation2], 10
  %v722 = vld [vmem:[%s721] sm:$0x3]
  %v723 = vadd.f32 %v722, %v699
  %s724 = scalar_lea.vmem [#allocation3], 4
  %v725 = vld [vmem:[%s724] sm:$0x3]
  %v726 = vadd.f32 %v725, %v718
  %v728 = vrot.slane %v726, 6
  %v730 = vsel %vm329, %v723, %v728
  %v731 = vmul.f32 %v730, 0.5
  %v732 = vtanh.pop %v731
  %v733 = vmul.f32 %v732, 0.5
  %v734 = vadd.f32 %v733, 0.5
  %v735 = vtanh.pop %v730
  %v736 = vmul.f32 %v734, %v667
  %738 = vrot.lane.b32.xlu0 %v735, 64
  %v739 = vpop.permute.xlu0 %738
  %v741 = vmul.f32 %v734, %v739
  %743 = vrot.lane.b32.xlu0 %v741, 32
  %v744 = vpop.permute.xlu0 %743
  %v746 = vadd.f32 %v736, %v744
  %v747 = vtanh.pop %v746
  %749 = vrot.lane.b32.xlu0 %v747, 64
  %v750 = vpop.permute.xlu0 %749
  %v752 = vmul.f32 %v734, %v750
  %754 = vrot.lane.b32.xlu0 %v752, 32
  %v755 = vpop.permute.xlu0 %754
  %s757 = scalar_lea.vmem [#allocation4], 10
  %758 = vst.msk [vmem:[%s757] sm:$0x3] %vm361, %v755
  %s759 = scalar_lea.vmem [#allocation5], 4
  %760 = vst.msk [vmem:[%s759 - $0x2] sm:$0xc] %vm364, %v755
  %v761 = vpack.c.bf16 %v752, %v752
  %763 = vrot.lane.b32.xlu0 %v761, 32
  %v764 = vpop.permute.xlu0 %763
  %v766 = vsel %vm80, %v764, 0
  %768 = vmatpush.bf16.msra.mxu0 0
  %769 = vmatpush.bf16.msra.mxu0 0
  %770 = vmatpush.bf16.msra.mxu0 0
  %771 = vmatpush.bf16.msra.mxu0 0
  %772 = vmatpush.bf16.msra.mxu0 0
  %773 = vmatpush.bf16.msra.mxu0 0
  %774 = vmatpush.bf16.msra.mxu0 %v272
  %775 = vmatpush.bf16.msra.mxu0 %v271
  %776 = vmatmul.bf16.gmra.mxu0 %v766
  %v777 = vpop.f32.mrf.mxu0
  %v778 = vadd.f32 0.0, %v777
  %v779 = vpop.f32.mrf.mxu0
  %780 = vdwg.mxu0
  %v781 = vrot.slane %v761, 1
  %782 = vrot.lane.b32.xlu0 %v781, 32
  %v783 = vpop.permute.xlu0 %782
  %v785 = vsel %vm80, %v783, 0
  %787 = vmatpush.bf16.msra.mxu0 0
  %788 = vmatpush.bf16.msra.mxu0 0
  %789 = vmatpush.bf16.msra.mxu0 0
  %790 = vmatpush.bf16.msra.mxu0 0
  %791 = vmatpush.bf16.msra.mxu0 0
  %792 = vmatpush.bf16.msra.mxu0 0
  %793 = vmatpush.bf16.msra.mxu0 %v302
  %794 = vmatpush.bf16.msra.mxu0 %v301
  %795 = vmatmul.bf16.gmra.mxu0 %v785
  %v796 = vpop.f32.mrf.mxu0
  %v797 = vadd.f32 0.0, %v796
  %v798 = vpop.f32.mrf.mxu0
  %799 = vdwg.mxu0
  %s800 = scalar_lea.vmem [#allocation2], 12
  %v801 = vld [vmem:[%s800] sm:$0x3]
  %v802 = vadd.f32 %v801, %v778
  %s803 = scalar_lea.vmem [#allocation3], 2
  %v804 = vld [vmem:[%s803] sm:$0x3]
  %v805 = vadd.f32 %v804, %v797
  %v807 = vrot.slane %v805, 6
  %v809 = vsel %vm329, %v802, %v807
  %v810 = vmul.f32 %v809, 0.5
  %v811 = vtanh.pop %v810
  %v812 = vmul.f32 %v811, 0.5
  %v813 = vadd.f32 %v812, 0.5
  %v814 = vtanh.pop %v809
  %v815 = vmul.f32 %v813, %v746
  %817 = vrot.lane.b32.xlu0 %v814, 64
  %v818 = vpop.permute.xlu0 %817
  %v820 = vmul.f32 %v813, %v818
  %822 = vrot.lane.b32.xlu0 %v820, 32
  %v823 = vpop.permute.xlu0 %822
  %v825 = vadd.f32 %v815, %v823
  %v826 = vtanh.pop %v825
  %828 = vrot.lane.b32.xlu0 %v826, 64
  %v829 = vpop.permute.xlu0 %828
  %v831 = vmul.f32 %v813, %v829
  %833 = vrot.lane.b32.xlu0 %v831, 32
  %v834 = vpop.permute.xlu0 %833
  %s836 = scalar_lea.vmem [#allocation4], 12
  %837 = vst.msk [vmem:[%s836] sm:$0x3] %vm361, %v834
  %s838 = scalar_lea.vmem [#allocation5], 2
  %839 = vst.msk [vmem:[%s838 - $0x2] sm:$0xc] %vm364, %v834
  %v840 = vpack.c.bf16 %v831, %v831
  %842 = vrot.lane.b32.xlu0 %v840, 32
  %v843 = vpop.permute.xlu0 %842
  %v845 = vsel %vm80, %v843, 0
  %847 = vmatpush.bf16.msra.mxu0 0
  %848 = vmatpush.bf16.msra.mxu0 0
  %849 = vmatpush.bf16.msra.mxu0 0
  %850 = vmatpush.bf16.msra.mxu0 0
  %851 = vmatpush.bf16.msra.mxu0 0
  %852 = vmatpush.bf16.msra.mxu0 0
  %853 = vmatpush.bf16.msra.mxu0 %v272
  %854 = vmatpush.bf16.msra.mxu0 %v271
  %855 = vmatmul.bf16.gmra.mxu0 %v845
  %v856 = vpop.f32.mrf.mxu0
  %v857 = vadd.f32 0.0, %v856
  %v858 = vpop.f32.mrf.mxu0
  %859 = vdwg.mxu0
  %v860 = vrot.slane %v840, 1
  %861 = vrot.lane.b32.xlu0 %v860, 32
  %v862 = vpop.permute.xlu0 %861
  %v864 = vsel %vm80, %v862, 0
  %866 = vmatpush.bf16.msra.mxu0 0
  %867 = vmatpush.bf16.msra.mxu0 0
  %868 = vmatpush.bf16.msra.mxu0 0
  %869 = vmatpush.bf16.msra.mxu0 0
  %870 = vmatpush.bf16.msra.mxu0 0
  %871 = vmatpush.bf16.msra.mxu0 0
  %872 = vmatpush.bf16.msra.mxu0 %v302
  %873 = vmatpush.bf16.msra.mxu0 %v301
  %874 = vmatmul.bf16.gmra.mxu0 %v864
  %v875 = vpop.f32.mrf.mxu0
  %v876 = vadd.f32 0.0, %v875
  %v877 = vpop.f32.mrf.mxu0
  %878 = vdwg.mxu0
  %s879 = scalar_lea.vmem [#allocation2], 14
  %v880 = vld [vmem:[%s879] sm:$0x3]
  %v881 = vadd.f32 %v880, %v857
  %v882 = vld [vmem:[#allocation3] sm:$0x3]
  %v883 = vadd.f32 %v882, %v876
  %v885 = vrot.slane %v883, 6
  %v887 = vsel %vm329, %v881, %v885
  %v888 = vmul.f32 %v887, 0.5
  %v889 = vtanh.pop %v888
  %v890 = vmul.f32 %v889, 0.5
  %v891 = vadd.f32 %v890, 0.5
  %v892 = vtanh.pop %v887
  %v893 = vmul.f32 %v891, %v825
  %895 = vrot.lane.b32.xlu0 %v892, 64
  %v896 = vpop.permute.xlu0 %895
  %v898 = vmul.f32 %v891, %v896
  %900 = vrot.lane.b32.xlu0 %v898, 32
  %v901 = vpop.permute.xlu0 %900
  %v903 = vadd.f32 %v893, %v901
  %v904 = vtanh.pop %v903
  %906 = vrot.lane.b32.xlu0 %v904, 64
  %v907 = vpop.permute.xlu0 %906
  %v909 = vmul.f32 %v891, %v907
  %911 = vrot.lane.b32.xlu0 %v909, 32
  %v912 = vpop.permute.xlu0 %911
  %s914 = scalar_lea.vmem [#allocation4], 14
  %915 = vst.msk [vmem:[%s914] sm:$0x3] %vm361, %v912
  %916 = vst.msk [vmem:[#allocation5 - $0x2] sm:$0xc] %vm364, %v912
  %v917 = vld [vmem:[#allocation4] sm:$0x3]
  %v918 = vld [vmem:[#allocation4 + $0x2] sm:$0x3]
  %v919 = vld [vmem:[#allocation4 + $0x4] sm:$0x3]
  %v920 = vld [vmem:[#allocation4 + $0x6] sm:$0x3]
  %v921 = vld [vmem:[#allocation4 + $0x8] sm:$0x3]
  %v922 = vld [vmem:[#allocation4 + $0xa] sm:$0x3]
  %v923 = vld [vmem:[#allocation4 + $0xc] sm:$0x3]
  %v924 = vld [vmem:[#allocation4 + $0xe] sm:$0x3]
  %v925 = vld [vmem:[#allocation5] sm:$0x3]
  %v926 = vld [vmem:[#allocation5 + $0x2] sm:$0x3]
  %v927 = vld [vmem:[#allocation5 + $0x4] sm:$0x3]
  %v928 = vld [vmem:[#allocation5 + $0x6] sm:$0x3]
  %v929 = vld [vmem:[#allocation5 + $0x8] sm:$0x3]
  %v930 = vld [vmem:[#allocation5 + $0xa] sm:$0x3]
  %v931 = vld [vmem:[#allocation5 + $0xc] sm:$0x3]
  %v932 = vld [vmem:[#allocation5 + $0xe] sm:$0x3]
  %941 = vst [vmem:[#allocation1] ss:$4 sm:$0xff] %v917
  %s942 = scalar_lea.vmem [#allocation1], 1
  %943 = vst [vmem:[%s942] ss:$4 sm:$0xff] %v918
  %s944 = scalar_lea.vmem [#allocation1], 2
  %945 = vst [vmem:[%s944] ss:$4 sm:$0xff] %v919
  %s946 = scalar_lea.vmem [#allocation1], 3
  %947 = vst [vmem:[%s946] ss:$4 sm:$0xff] %v920
  %s948 = scalar_lea.vmem [#allocation1], 32
  %949 = vst [vmem:[%s948] ss:$4 sm:$0xff] %v921
  %s950 = scalar_lea.vmem [#allocation1], 33
  %951 = vst [vmem:[%s950] ss:$4 sm:$0xff] %v922
  %s952 = scalar_lea.vmem [#allocation1], 34
  %953 = vst [vmem:[%s952] ss:$4 sm:$0xff] %v923
  %s954 = scalar_lea.vmem [#allocation1], 35
  %955 = vst [vmem:[%s954] ss:$4 sm:$0xff] %v924
  %v956 = vld.sshfl [vmem:[#allocation1] sm:$0xff pattern:$0x73625140]
  %v957 = vld.sshfl [vmem:[#allocation1 + $0x20] sm:$0xff pattern:$0x73625140]
  %968 = vst [vmem:[#allocation1] ss:$4 sm:$0xff] %v925
  %s969 = scalar_lea.vmem [#allocation1], 1
  %970 = vst [vmem:[%s969] ss:$4 sm:$0xff] %v926
  %s971 = scalar_lea.vmem [#allocation1], 2
  %972 = vst [vmem:[%s971] ss:$4 sm:$0xff] %v927
  %s973 = scalar_lea.vmem [#allocation1], 3
  %974 = vst [vmem:[%s973] ss:$4 sm:$0xff] %v928
  %s975 = scalar_lea.vmem [#allocation1], 32
  %976 = vst [vmem:[%s975] ss:$4 sm:$0xff] %v929
  %s977 = scalar_lea.vmem [#allocation1], 33
  %978 = vst [vmem:[%s977] ss:$4 sm:$0xff] %v930
  %s979 = scalar_lea.vmem [#allocation1], 34
  %980 = vst [vmem:[%s979] ss:$4 sm:$0xff] %v931
  %s981 = scalar_lea.vmem [#allocation1], 35
  %982 = vst [vmem:[%s981] ss:$4 sm:$0xff] %v932
  %v983 = vld.sshfl [vmem:[#allocation1] sm:$0xff pattern:$0x73625140]
  %v984 = vld.sshfl [vmem:[#allocation1 + $0x20] sm:$0xff pattern:$0x73625140]
  %985 = vrot.lane.b32.xlu0 %v983, 32
  %v986 = vpop.permute.xlu0 %985
  %987 = vrot.lane.b32.xlu0 %v984, 32
  %v988 = vpop.permute.xlu0 %987
  %v991 = vsel %vm80, %v956, %v986
  %v992 = vsel %vm80, %v957, %v988
  %v993 = vpack.c.bf16 %v992, %v991
  %v994 = vld [vmem:[%s1] sm:$0xff]
  %v995 = vld [vmem:[%s1 + $0x8] sm:$0xff]
  %v996 = vld [vmem:[%s9] sm:$0xf]
  %v997 = vld [vmem:[%s9 + $0x4] sm:$0xf]
  %v998 = vld [vmem:[%s9 + $0x8] sm:$0xf]
  %v999 = vld [vmem:[%s9 + $0xc] sm:$0xf]
  %v1000 = vld [vmem:[%s9 + $0x10] sm:$0xf]
  %v1001 = vld [vmem:[%s9 + $0x14] sm:$0xf]
  %v1002 = vld [vmem:[%s9 + $0x18] sm:$0xf]
  %v1003 = vld [vmem:[%s9 + $0x1c] sm:$0xf]
  %v1004 = vld [vmem:[%s10] sm:$0x1]
  %1006 = vset.pattern.permute.xlu0 0
  %1007 = vperm.xlu0 %1006, %v994
  %v1008 = vpop.permute.xlu0 %1007
  %1011 = vset.pattern.permute.xlu0 0
  %1012 = vperm.xlu0 %1011, %v995
  %v1013 = vpop.permute.xlu0 %1012
  %v1016 = vperm.slane %v1004, 0
  %v1018 = vmul.f32 %v1008, %v1016
  %v1019 = vmul.f32 %v1013, %v1016
  %v1028 = vunpack.c.l.b16 %v996
  %v1029 = vunpack.c.l.b16 %v997
  %v1030 = vunpack.c.l.b16 %v998
  %v1031 = vunpack.c.l.b16 %v999
  %v1032 = vunpack.c.l.b16 %v1000
  %v1033 = vunpack.c.l.b16 %v1001
  %v1034 = vunpack.c.l.b16 %v1002
  %v1035 = vunpack.c.l.b16 %v1003
  %v1036 = vpack.c.b16 %v1029, %v1028
  %v1037 = vpack.c.b16 %v1031, %v1030
  %v1038 = vpack.c.b16 %v1033, %v1032
  %v1039 = vpack.c.b16 %v1035, %v1034
  %v1045 = vsel %vm137, %v993, 0
  %1047 = vmatpush.bf16.msra.mxu0 0
  %1048 = vmatpush.bf16.msra.mxu0 0
  %1049 = vmatpush.bf16.msra.mxu0 0
  %1050 = vmatpush.bf16.msra.mxu0 0
  %1051 = vmatpush.bf16.msra.mxu0 %v1039
  %1052 = vmatpush.bf16.msra.mxu0 %v1038
  %1053 = vmatpush.bf16.msra.mxu0 %v1037
  %1054 = vmatpush.bf16.msra.mxu0 %v1036
  %1055 = vmatmul.bf16.gmra.mxu0 %v1045
  %v1056 = vpop.f32.mrf.mxu0
  %v1057 = vadd.f32 %v1018, %v1056
  %v1058 = vpop.f32.mrf.mxu0
  %v1059 = vadd.f32 %v1019, %v1058
  %1060 = vdwg.mxu0
  %v1061 = vld [vmem:[%s12] sm:$0x1]
  %v1063 = vperm.slane %v1061, 0
  %v1065 = vadd.f32 %v1057, %v1063
  %v1066 = vadd.f32 %v1059, %v1063
  %v1069 = vrot.slane %v1065, 2
  %v1070 = vrot.slane %v1065, 4
  %v1071 = vrot.slane %v1065, 6
  %v1072 = vrot.slane %v1066, 2
  %v1073 = vrot.slane %v1066, 4
  %v1074 = vrot.slane %v1066, 6
  %vm1081 = vcmask 123904
  %1082 = vst.msk [vmem:[#allocation6] sm:$0x3] %vm1081, %v1065
  %1083 = vst.msk [vmem:[#allocation6 + $0x2] sm:$0x3] %vm1081, %v1069
  %1084 = vst.msk [vmem:[#allocation6 + $0x4] sm:$0x3] %vm1081, %v1070
  %1085 = vst.msk [vmem:[#allocation6 + $0x6] sm:$0x3] %vm1081, %v1071
  %1086 = vst.msk [vmem:[#allocation6 + $0x8] sm:$0x3] %vm1081, %v1066
  %1087 = vst.msk [vmem:[#allocation6 + $0xa] sm:$0x3] %vm1081, %v1072
  %1088 = vst.msk [vmem:[#allocation6 + $0xc] sm:$0x3] %vm1081, %v1073
  %1089 = vst.msk [vmem:[#allocation6 + $0xe] sm:$0x3] %vm1081, %v1074
  %s1090 = scalar_lea.vmem %s9, 32
  %v1091 = vld [vmem:[%s1090] sm:$0xf]
  %v1092 = vld [vmem:[%s1090 + $0x4] sm:$0xf]
  %v1093 = vld [vmem:[%s1090 + $0x8] sm:$0xf]
  %v1094 = vld [vmem:[%s1090 + $0xc] sm:$0xf]
  %v1095 = vld [vmem:[%s1090 + $0x10] sm:$0xf]
  %v1096 = vld [vmem:[%s1090 + $0x14] sm:$0xf]
  %v1097 = vld [vmem:[%s1090 + $0x18] sm:$0xf]
  %v1098 = vld [vmem:[%s1090 + $0x1c] sm:$0xf]
  %s1099 = scalar_lea.vmem %s10, 1
  %v1100 = vld [vmem:[%s1099] sm:$0x1]
  %v1102 = vperm.slane %v1100, 0
  %v1104 = vmul.f32 %v1008, %v1102
  %v1105 = vmul.f32 %v1013, %v1102
  %v1114 = vunpack.c.l.b16 %v1091
  %v1115 = vunpack.c.l.b16 %v1092
  %v1116 = vunpack.c.l.b16 %v1093
  %v1117 = vunpack.c.l.b16 %v1094
  %v1118 = vunpack.c.l.b16 %v1095
  %v1119 = vunpack.c.l.b16 %v1096
  %v1120 = vunpack.c.l.b16 %v1097
  %v1121 = vunpack.c.l.b16 %v1098
  %v1122 = vpack.c.b16 %v1115, %v1114
  %v1123 = vpack.c.b16 %v1117, %v1116
  %v1124 = vpack.c.b16 %v1119, %v1118
  %v1125 = vpack.c.b16 %v1121, %v1120
  %1130 = vmatpush.bf16.msra.mxu0 0
  %1131 = vmatpush.bf16.msra.mxu0 0
  %1132 = vmatpush.bf16.msra.mxu0 0
  %1133 = vmatpush.bf16.msra.mxu0 0
  %1134 = vmatpush.bf16.msra.mxu0 %v1125
  %1135 = vmatpush.bf16.msra.mxu0 %v1124
  %1136 = vmatpush.bf16.msra.mxu0 %v1123
  %1137 = vmatpush.bf16.msra.mxu0 %v1122
  %1138 = vmatmul.bf16.gmra.mxu0 %v1045
  %v1139 = vpop.f32.mrf.mxu0
  %v1140 = vadd.f32 %v1104, %v1139
  %v1141 = vpop.f32.mrf.mxu0
  %v1142 = vadd.f32 %v1105, %v1141
  %1143 = vdwg.mxu0
  %s1144 = scalar_lea.vmem %s12, 1
  %v1145 = vld [vmem:[%s1144] sm:$0x1]
  %v1147 = vperm.slane %v1145, 0
  %v1149 = vadd.f32 %v1140, %v1147
  %v1150 = vadd.f32 %v1142, %v1147
  %v1153 = vrot.slane %v1149, 2
  %v1154 = vrot.slane %v1149, 4
  %v1155 = vrot.slane %v1149, 6
  %v1156 = vrot.slane %v1150, 2
  %v1157 = vrot.slane %v1150, 4
  %v1158 = vrot.slane %v1150, 6
  %1165 = vst.msk [vmem:[#allocation7] sm:$0x3] %vm1081, %v1149
  %1166 = vst.msk [vmem:[#allocation7 + $0x2] sm:$0x3] %vm1081, %v1153
  %1167 = vst.msk [vmem:[#allocation7 + $0x4] sm:$0x3] %vm1081, %v1154
  %1168 = vst.msk [vmem:[#allocation7 + $0x6] sm:$0x3] %vm1081, %v1155
  %1169 = vst.msk [vmem:[#allocation7 + $0x8] sm:$0x3] %vm1081, %v1150
  %1170 = vst.msk [vmem:[#allocation7 + $0xa] sm:$0x3] %vm1081, %v1156
  %1171 = vst.msk [vmem:[#allocation7 + $0xc] sm:$0x3] %vm1081, %v1157
  %1172 = vst.msk [vmem:[#allocation7 + $0xe] sm:$0x3] %vm1081, %v1158
  %v1173 = vld [vmem:[%s11] sm:$0x3]
  %s1174 = scalar_lea.vmem %s11, 2
  %v1175 = vld [vmem:[%s1174] sm:$0x3]
  %v1176 = vld [vmem:[%s13] sm:$0xf]
  %v1177 = vld [vmem:[%s14] sm:$0xf]
  %v1178 = vpack.c.bf16 %v1176, %v1176
  %vm1179 = vcmask 31744
  %v1181 = vsel %vm1179, %v1178, 0
  %v1184 = vsel %vm329, %v1173, 0
  %1186 = vmatpush.bf16.msra.mxu0 0
  %1187 = vmatpush.bf16.msra.mxu0 0
  %1188 = vmatpush.bf16.msra.mxu0 0
  %1189 = vmatpush.bf16.msra.mxu0 0
  %1190 = vmatpush.bf16.msra.mxu0 0
  %1191 = vmatpush.bf16.msra.mxu0 0
  %1192 = vmatpush.bf16.msra.mxu0 0
  %1193 = vmatpush.bf16.msra.mxu0 %v1184
  %1194 = vmatmul.bf16.gmra.mxu0 %v1181
  %v1195 = vpop.f32.mrf.mxu0
  %v1196 = vadd.f32 0.0, %v1195
  %v1197 = vpop.f32.mrf.mxu0
  %1198 = vdwg.mxu0
  %v1200 = vrot.slane %v1178, 1
  %v1202 = vsel %vm1179, %v1200, 0
  %v1205 = vsel %vm329, %v1175, 0
  %1207 = vmatpush.bf16.msra.mxu0 0
  %1208 = vmatpush.bf16.msra.mxu0 0
  %1209 = vmatpush.bf16.msra.mxu0 0
  %1210 = vmatpush.bf16.msra.mxu0 0
  %1211 = vmatpush.bf16.msra.mxu0 0
  %1212 = vmatpush.bf16.msra.mxu0 0
  %1213 = vmatpush.bf16.msra.mxu0 0
  %1214 = vmatpush.bf16.msra.mxu0 %v1205
  %1215 = vmatmul.bf16.gmra.mxu0 %v1202
  %v1216 = vpop.f32.mrf.mxu0
  %v1217 = vadd.f32 0.0, %v1216
  %v1218 = vpop.f32.mrf.mxu0
  %1219 = vdwg.mxu0
  %v1220 = vld [vmem:[#allocation6] sm:$0x3]
  %v1221 = vadd.f32 %v1220, %v1196
  %s1222 = scalar_lea.vmem [#allocation7], 14
  %v1223 = vld [vmem:[%s1222] sm:$0x3]
  %v1224 = vadd.f32 %v1223, %v1217
  %v1226 = vrot.slane %v1224, 6
  %v1228 = vsel %vm329, %v1221, %v1226
  %v1229 = vmul.f32 %v1228, 0.5
  %v1230 = vtanh.pop %v1229
  %v1231 = vmul.f32 %v1230, 0.5
  %v1232 = vadd.f32 %v1231, 0.5
  %v1233 = vtanh.pop %v1228
  %1235 = vrot.lane.b32.xlu0 %v1177, 4
  %v1236 = vpop.permute.xlu0 %1235
  %v1238 = vmul.f32 %v1232, %v1236
  %1240 = vrot.lane.b32.xlu0 %v1233, 120
  %v1241 = vpop.permute.xlu0 %1240
  %v1243 = vmul.f32 %v1232, %v1241
  %1245 = vrot.lane.b32.xlu0 %v1243, 4
  %v1246 = vpop.permute.xlu0 %1245
  %v1248 = vadd.f32 %v1238, %v1246
  %v1249 = vtanh.pop %v1248
  %1251 = vrot.lane.b32.xlu0 %v1249, 8
  %v1252 = vpop.permute.xlu0 %1251
  %v1254 = vmul.f32 %v1232, %v1252
  %1256 = vrot.lane.b32.xlu0 %v1254, 116
  %v1257 = vpop.permute.xlu0 %1256
  %vm1259 = vcmask 25600
  %1260 = vst.msk [vmem:[#allocation8] sm:$0x3] %vm1259, %v1257
  %s1261 = scalar_lea.vmem [#allocation9], 14
  %vm1262 = vcmask 27650
  %1263 = vst.msk [vmem:[%s1261 - $0x2] sm:$0xc] %vm1262, %v1257
  %v1264 = vpack.c.bf16 %v1254, %v1254
  %1266 = vrot.lane.b32.xlu0 %v1264, 116
  %v1267 = vpop.permute.xlu0 %1266
  %v1269 = vsel %vm1179, %v1267, 0
  %1271 = vmatpush.bf16.msra.mxu0 0
  %1272 = vmatpush.bf16.msra.mxu0 0
  %1273 = vmatpush.bf16.msra.mxu0 0
  %1274 = vmatpush.bf16.msra.mxu0 0
  %1275 = vmatpush.bf16.msra.mxu0 0
  %1276 = vmatpush.bf16.msra.mxu0 0
  %1277 = vmatpush.bf16.msra.mxu0 0
  %1278 = vmatpush.bf16.msra.mxu0 %v1184
  %1279 = vmatmul.bf16.gmra.mxu0 %v1269
  %v1280 = vpop.f32.mrf.mxu0
  %v1281 = vadd.f32 0.0, %v1280
  %v1282 = vpop.f32.mrf.mxu0
  %1283 = vdwg.mxu0
  %v1284 = vrot.slane %v1264, 1
  %1285 = vrot.lane.b32.xlu0 %v1284, 116
  %v1286 = vpop.permute.xlu0 %1285
  %v1288 = vsel %vm1179, %v1286, 0
  %1290 = vmatpush.bf16.msra.mxu0 0
  %1291 = vmatpush.bf16.msra.mxu0 0
  %1292 = vmatpush.bf16.msra.mxu0 0
  %1293 = vmatpush.bf16.msra.mxu0 0
  %1294 = vmatpush.bf16.msra.mxu0 0
  %1295 = vmatpush.bf16.msra.mxu0 0
  %1296 = vmatpush.bf16.msra.mxu0 0
  %1297 = vmatpush.bf16.msra.mxu0 %v1205
  %1298 = vmatmul.bf16.gmra.mxu0 %v1288
  %v1299 = vpop.f32.mrf.mxu0
  %v1300 = vadd.f32 0.0, %v1299
  %v1301 = vpop.f32.mrf.mxu0
  %1302 = vdwg.mxu0
  %s1303 = scalar_lea.vmem [#allocation6], 2
  %v1304 = vld [vmem:[%s1303] sm:$0x3]
  %v1305 = vadd.f32 %v1304, %v1281
  %s1306 = scalar_lea.vmem [#allocation7], 12
  %v1307 = vld [vmem:[%s1306] sm:$0x3]
  %v1308 = vadd.f32 %v1307, %v1300
  %v1310 = vrot.slane %v1308, 6
  %v1312 = vsel %vm329, %v1305, %v1310
  %v1313 = vmul.f32 %v1312, 0.5
  %v1314 = vtanh.pop %v1313
  %v1315 = vmul.f32 %v1314, 0.5
  %v1316 = vadd.f32 %v1315, 0.5
  %v1317 = vtanh.pop %v1312
  %v1318 = vmul.f32 %v1316, %v1248
  %1320 = vrot.lane.b32.xlu0 %v1317, 120
  %v1321 = vpop.permute.xlu0 %1320
  %v1323 = vmul.f32 %v1316, %v1321
  %1325 = vrot.lane.b32.xlu0 %v1323, 4
  %v1326 = vpop.permute.xlu0 %1325
  %v1328 = vadd.f32 %v1318, %v1326
  %v1329 = vtanh.pop %v1328
  %1331 = vrot.lane.b32.xlu0 %v1329, 8
  %v1332 = vpop.permute.xlu0 %1331
  %v1334 = vmul.f32 %v1316, %v1332
  %1336 = vrot.lane.b32.xlu0 %v1334, 116
  %v1337 = vpop.permute.xlu0 %1336
  %s1339 = scalar_lea.vmem [#allocation8], 2
  %1340 = vst.msk [vmem:[%s1339] sm:$0x3] %vm1259, %v1337
  %s1341 = scalar_lea.vmem [#allocation9], 12
  %1342 = vst.msk [vmem:[%s1341 - $0x2] sm:$0xc] %vm1262, %v1337
  %v1343 = vpack.c.bf16 %v1334, %v1334
  %1345 = vrot.lane.b32.xlu0 %v1343, 116
  %v1346 = vpop.permute.xlu0 %1345
  %v1348 = vsel %vm1179, %v1346, 0
  %1350 = vmatpush.bf16.msra.mxu0 0
  %1351 = vmatpush.bf16.msra.mxu0 0
  %1352 = vmatpush.bf16.msra.mxu0 0
  %1353 = vmatpush.bf16.msra.mxu0 0
  %1354 = vmatpush.bf16.msra.mxu0 0
  %1355 = vmatpush.bf16.msra.mxu0 0
  %1356 = vmatpush.bf16.msra.mxu0 0
  %1357 = vmatpush.bf16.msra.mxu0 %v1184
  %1358 = vmatmul.bf16.gmra.mxu0 %v1348
  %v1359 = vpop.f32.mrf.mxu0
  %v1360 = vadd.f32 0.0, %v1359
  %v1361 = vpop.f32.mrf.mxu0
  %1362 = vdwg.mxu0
  %v1363 = vrot.slane %v1343, 1
  %1364 = vrot.lane.b32.xlu0 %v1363, 116
  %v1365 = vpop.permute.xlu0 %1364
  %v1367 = vsel %vm1179, %v1365, 0
  %1369 = vmatpush.bf16.msra.mxu0 0
  %1370 = vmatpush.bf16.msra.mxu0 0
  %1371 = vmatpush.bf16.msra.mxu0 0
  %1372 = vmatpush.bf16.msra.mxu0 0
  %1373 = vmatpush.bf16.msra.mxu0 0
  %1374 = vmatpush.bf16.msra.mxu0 0
  %1375 = vmatpush.bf16.msra.mxu0 0
  %1376 = vmatpush.bf16.msra.mxu0 %v1205
  %1377 = vmatmul.bf16.gmra.mxu0 %v1367
  %v1378 = vpop.f32.mrf.mxu0
  %v1379 = vadd.f32 0.0, %v1378
  %v1380 = vpop.f32.mrf.mxu0
  %1381 = vdwg.mxu0
  %s1382 = scalar_lea.vmem [#allocation6], 4
  %v1383 = vld [vmem:[%s1382] sm:$0x3]
  %v1384 = vadd.f32 %v1383, %v1360
  %s1385 = scalar_lea.vmem [#allocation7], 10
  %v1386 = vld [vmem:[%s1385] sm:$0x3]
  %v1387 = vadd.f32 %v1386, %v1379
  %v1389 = vrot.slane %v1387, 6
  %v1391 = vsel %vm329, %v1384, %v1389
  %v1392 = vmul.f32 %v1391, 0.5
  %v1393 = vtanh.pop %v1392
  %v1394 = vmul.f32 %v1393, 0.5
  %v1395 = vadd.f32 %v1394, 0.5
  %v1396 = vtanh.pop %v1391
  %v1397 = vmul.f32 %v1395, %v1328
  %1399 = vrot.lane.b32.xlu0 %v1396, 120
  %v1400 = vpop.permute.xlu0 %1399
  %v1402 = vmul.f32 %v1395, %v1400
  %1404 = vrot.lane.b32.xlu0 %v1402, 4
  %v1405 = vpop.permute.xlu0 %1404
  %v1407 = vadd.f32 %v1397, %v1405
  %v1408 = vtanh.pop %v1407
  %1410 = vrot.lane.b32.xlu0 %v1408, 8
  %v1411 = vpop.permute.xlu0 %1410
  %v1413 = vmul.f32 %v1395, %v1411
  %1415 = vrot.lane.b32.xlu0 %v1413, 116
  %v1416 = vpop.permute.xlu0 %1415
  %s1418 = scalar_lea.vmem [#allocation8], 4
  %1419 = vst.msk [vmem:[%s1418] sm:$0x3] %vm1259, %v1416
  %s1420 = scalar_lea.vmem [#allocation9], 10
  %1421 = vst.msk [vmem:[%s1420 - $0x2] sm:$0xc] %vm1262, %v1416
  %v1422 = vpack.c.bf16 %v1413, %v1413
  %1424 = vrot.lane.b32.xlu0 %v1422, 116
  %v1425 = vpop.permute.xlu0 %1424
  %v1427 = vsel %vm1179, %v1425, 0
  %1429 = vmatpush.bf16.msra.mxu0 0
  %1430 = vmatpush.bf16.msra.mxu0 0
  %1431 = vmatpush.bf16.msra.mxu0 0
  %1432 = vmatpush.bf16.msra.mxu0 0
  %1433 = vmatpush.bf16.msra.mxu0 0
  %1434 = vmatpush.bf16.msra.mxu0 0
  %1435 = vmatpush.bf16.msra.mxu0 0
  %1436 = vmatpush.bf16.msra.mxu0 %v1184
  %1437 = vmatmul.bf16.gmra.mxu0 %v1427
  %v1438 = vpop.f32.mrf.mxu0
  %v1439 = vadd.f32 0.0, %v1438
  %v1440 = vpop.f32.mrf.mxu0
  %1441 = vdwg.mxu0
  %v1442 = vrot.slane %v1422, 1
  %1443 = vrot.lane.b32.xlu0 %v1442, 116
  %v1444 = vpop.permute.xlu0 %1443
  %v1446 = vsel %vm1179, %v1444, 0
  %1448 = vmatpush.bf16.msra.mxu0 0
  %1449 = vmatpush.bf16.msra.mxu0 0
  %1450 = vmatpush.bf16.msra.mxu0 0
  %1451 = vmatpush.bf16.msra.mxu0 0
  %1452 = vmatpush.bf16.msra.mxu0 0
  %1453 = vmatpush.bf16.msra.mxu0 0
  %1454 = vmatpush.bf16.msra.mxu0 0
  %1455 = vmatpush.bf16.msra.mxu0 %v1205
  %1456 = vmatmul.bf16.gmra.mxu0 %v1446
  %v1457 = vpop.f32.mrf.mxu0
  %v1458 = vadd.f32 0.0, %v1457
  %v1459 = vpop.f32.mrf.mxu0
  %1460 = vdwg.mxu0
  %s1461 = scalar_lea.vmem [#allocation6], 6
  %v1462 = vld [vmem:[%s1461] sm:$0x3]
  %v1463 = vadd.f32 %v1462, %v1439
  %s1464 = scalar_lea.vmem [#allocation7], 8
  %v1465 = vld [vmem:[%s1464] sm:$0x3]
  %v1466 = vadd.f32 %v1465, %v1458
  %v1468 = vrot.slane %v1466, 6
  %v1470 = vsel %vm329, %v1463, %v1468
  %v1471 = vmul.f32 %v1470, 0.5
  %v1472 = vtanh.pop %v1471
  %v1473 = vmul.f32 %v1472, 0.5
  %v1474 = vadd.f32 %v1473, 0.5
  %v1475 = vtanh.pop %v1470
  %v1476 = vmul.f32 %v1474, %v1407
  %1478 = vrot.lane.b32.xlu0 %v1475, 120
  %v1479 = vpop.permute.xlu0 %1478
  %v1481 = vmul.f32 %v1474, %v1479
  %1483 = vrot.lane.b32.xlu0 %v1481, 4
  %v1484 = vpop.permute.xlu0 %1483
  %v1486 = vadd.f32 %v1476, %v1484
  %v1487 = vtanh.pop %v1486
  %1489 = vrot.lane.b32.xlu0 %v1487, 8
  %v1490 = vpop.permute.xlu0 %1489
  %v1492 = vmul.f32 %v1474, %v1490
  %1494 = vrot.lane.b32.xlu0 %v1492, 116
  %v1495 = vpop.permute.xlu0 %1494
  %s1497 = scalar_lea.vmem [#allocation8], 6
  %1498 = vst.msk [vmem:[%s1497] sm:$0x3] %vm1259, %v1495
  %s1499 = scalar_lea.vmem [#allocation9], 8
  %1500 = vst.msk [vmem:[%s1499 - $0x2] sm:$0xc] %vm1262, %v1495
  %v1501 = vpack.c.bf16 %v1492, %v1492
  %1503 = vrot.lane.b32.xlu0 %v1501, 116
  %v1504 = vpop.permute.xlu0 %1503
  %v1506 = vsel %vm1179, %v1504, 0
  %1508 = vmatpush.bf16.msra.mxu0 0
  %1509 = vmatpush.bf16.msra.mxu0 0
  %1510 = vmatpush.bf16.msra.mxu0 0
  %1511 = vmatpush.bf16.msra.mxu0 0
  %1512 = vmatpush.bf16.msra.mxu0 0
  %1513 = vmatpush.bf16.msra.mxu0 0
  %1514 = vmatpush.bf16.msra.mxu0 0
  %1515 = vmatpush.bf16.msra.mxu0 %v1184
  %1516 = vmatmul.bf16.gmra.mxu0 %v1506
  %v1517 = vpop.f32.mrf.mxu0
  %v1518 = vadd.f32 0.0, %v1517
  %v1519 = vpop.f32.mrf.mxu0
  %1520 = vdwg.mxu0
  %v1521 = vrot.slane %v1501, 1
  %1522 = vrot.lane.b32.xlu0 %v1521, 116
  %v1523 = vpop.permute.xlu0 %1522
  %v1525 = vsel %vm1179, %v1523, 0
  %1527 = vmatpush.bf16.msra.mxu0 0
  %1528 = vmatpush.bf16.msra.mxu0 0
  %1529 = vmatpush.bf16.msra.mxu0 0
  %1530 = vmatpush.bf16.msra.mxu0 0
  %1531 = vmatpush.bf16.msra.mxu0 0
  %1532 = vmatpush.bf16.msra.mxu0 0
  %1533 = vmatpush.bf16.msra.mxu0 0
  %1534 = vmatpush.bf16.msra.mxu0 %v1205
  %1535 = vmatmul.bf16.gmra.mxu0 %v1525
  %v1536 = vpop.f32.mrf.mxu0
  %v1537 = vadd.f32 0.0, %v1536
  %v1538 = vpop.f32.mrf.mxu0
  %1539 = vdwg.mxu0
  %s1540 = scalar_lea.vmem [#allocation6], 8
  %v1541 = vld [vmem:[%s1540] sm:$0x3]
  %v1542 = vadd.f32 %v1541, %v1518
  %s1543 = scalar_lea.vmem [#allocation7], 6
  %v1544 = vld [vmem:[%s1543] sm:$0x3]
  %v1545 = vadd.f32 %v1544, %v1537
  %v1547 = vrot.slane %v1545, 6
  %v1549 = vsel %vm329, %v1542, %v1547
  %v1550 = vmul.f32 %v1549, 0.5
  %v1551 = vtanh.pop %v1550
  %v1552 = vmul.f32 %v1551, 0.5
  %v1553 = vadd.f32 %v1552, 0.5
  %v1554 = vtanh.pop %v1549
  %v1555 = vmul.f32 %v1553, %v1486
  %1557 = vrot.lane.b32.xlu0 %v1554, 120
  %v1558 = vpop.permute.xlu0 %1557
  %v1560 = vmul.f32 %v1553, %v1558
  %1562 = vrot.lane.b32.xlu0 %v1560, 4
  %v1563 = vpop.permute.xlu0 %1562
  %v1565 = vadd.f32 %v1555, %v1563
  %v1566 = vtanh.pop %v1565
  %1568 = vrot.lane.b32.xlu0 %v1566, 8
  %v1569 = vpop.permute.xlu0 %1568
  %v1571 = vmul.f32 %v1553, %v1569
  %1573 = vrot.lane.b32.xlu0 %v1571, 116
  %v1574 = vpop.permute.xlu0 %1573
  %s1576 = scalar_lea.vmem [#allocation8], 8
  %1577 = vst.msk [vmem:[%s1576] sm:$0x3] %vm1259, %v1574
  %s1578 = scalar_lea.vmem [#allocation9], 6
  %1579 = vst.msk [vmem:[%s1578 - $0x2] sm:$0xc] %vm1262, %v1574
  %v1580 = vpack.c.bf16 %v1571, %v1571
  %1582 = vrot.lane.b32.xlu0 %v1580, 116
  %v1583 = vpop.permute.xlu0 %1582
  %v1585 = vsel %vm1179, %v1583, 0
  %1587 = vmatpush.bf16.msra.mxu0 0
  %1588 = vmatpush.bf16.msra.mxu0 0
  %1589 = vmatpush.bf16.msra.mxu0 0
  %1590 = vmatpush.bf16.msra.mxu0 0
  %1591 = vmatpush.bf16.msra.mxu0 0
  %1592 = vmatpush.bf16.msra.mxu0 0
  %1593 = vmatpush.bf16.msra.mxu0 0
  %1594 = vmatpush.bf16.msra.mxu0 %v1184
  %1595 = vmatmul.bf16.gmra.mxu0 %v1585
  %v1596 = vpop.f32.mrf.mxu0
  %v1597 = vadd.f32 0.0, %v1596
  %v1598 = vpop.f32.mrf.mxu0
  %1599 = vdwg.mxu0
  %v1600 = vrot.slane %v1580, 1
  %1601 = vrot.lane.b32.xlu0 %v1600, 116
  %v1602 = vpop.permute.xlu0 %1601
  %v1604 = vsel %vm1179, %v1602, 0
  %1606 = vmatpush.bf16.msra.mxu0 0
  %1607 = vmatpush.bf16.msra.mxu0 0
  %1608 = vmatpush.bf16.msra.mxu0 0
  %1609 = vmatpush.bf16.msra.mxu0 0
  %1610 = vmatpush.bf16.msra.mxu0 0
  %1611 = vmatpush.bf16.msra.mxu0 0
  %1612 = vmatpush.bf16.msra.mxu0 0
  %1613 = vmatpush.bf16.msra.mxu0 %v1205
  %1614 = vmatmul.bf16.gmra.mxu0 %v1604
  %v1615 = vpop.f32.mrf.mxu0
  %v1616 = vadd.f32 0.0, %v1615
  %v1617 = vpop.f32.mrf.mxu0
  %1618 = vdwg.mxu0
  %s1619 = scalar_lea.vmem [#allocation6], 10
  %v1620 = vld [vmem:[%s1619] sm:$0x3]
  %v1621 = vadd.f32 %v1620, %v1597
  %s1622 = scalar_lea.vmem [#allocation7], 4
  %v1623 = vld [vmem:[%s1622] sm:$0x3]
  %v1624 = vadd.f32 %v1623, %v1616
  %v1626 = vrot.slane %v1624, 6
  %v1628 = vsel %vm329, %v1621, %v1626
  %v1629 = vmul.f32 %v1628, 0.5
  %v1630 = vtanh.pop %v1629
  %v1631 = vmul.f32 %v1630, 0.5
  %v1632 = vadd.f32 %v1631, 0.5
  %v1633 = vtanh.pop %v1628
  %v1634 = vmul.f32 %v1632, %v1565
  %1636 = vrot.lane.b32.xlu0 %v1633, 120
  %v1637 = vpop.permute.xlu0 %1636
  %v1639 = vmul.f32 %v1632, %v1637
  %1641 = vrot.lane.b32.xlu0 %v1639, 4
  %v1642 = vpop.permute.xlu0 %1641
  %v1644 = vadd.f32 %v1634, %v1642
  %v1645 = vtanh.pop %v1644
  %1647 = vrot.lane.b32.xlu0 %v1645, 8
  %v1648 = vpop.permute.xlu0 %1647
  %v1650 = vmul.f32 %v1632, %v1648
  %1652 = vrot.lane.b32.xlu0 %v1650, 116
  %v1653 = vpop.permute.xlu0 %1652
  %s1655 = scalar_lea.vmem [#allocation8], 10
  %1656 = vst.msk [vmem:[%s1655] sm:$0x3] %vm1259, %v1653
  %s1657 = scalar_lea.vmem [#allocation9], 4
  %1658 = vst.msk [vmem:[%s1657 - $0x2] sm:$0xc] %vm1262, %v1653
  %v1659 = vpack.c.bf16 %v1650, %v1650
  %1661 = vrot.lane.b32.xlu0 %v1659, 116
  %v1662 = vpop.permute.xlu0 %1661
  %v1664 = vsel %vm1179, %v1662, 0
  %1666 = vmatpush.bf16.msra.mxu0 0
  %1667 = vmatpush.bf16.msra.mxu0 0
  %1668 = vmatpush.bf16.msra.mxu0 0
  %1669 = vmatpush.bf16.msra.mxu0 0
  %1670 = vmatpush.bf16.msra.mxu0 0
  %1671 = vmatpush.bf16.msra.mxu0 0
  %1672 = vmatpush.bf16.msra.mxu0 0
  %1673 = vmatpush.bf16.msra.mxu0 %v1184
  %1674 = vmatmul.bf16.gmra.mxu0 %v1664
  %v1675 = vpop.f32.mrf.mxu0
  %v1676 = vadd.f32 0.0, %v1675
  %v1677 = vpop.f32.mrf.mxu0
  %1678 = vdwg.mxu0
  %v1679 = vrot.slane %v1659, 1
  %1680 = vrot.lane.b32.xlu0 %v1679, 116
  %v1681 = vpop.permute.xlu0 %1680
  %v1683 = vsel %vm1179, %v1681, 0
  %1685 = vmatpush.bf16.msra.mxu0 0
  %1686 = vmatpush.bf16.msra.mxu0 0
  %1687 = vmatpush.bf16.msra.mxu0 0
  %1688 = vmatpush.bf16.msra.mxu0 0
  %1689 = vmatpush.bf16.msra.mxu0 0
  %1690 = vmatpush.bf16.msra.mxu0 0
  %1691 = vmatpush.bf16.msra.mxu0 0
  %1692 = vmatpush.bf16.msra.mxu0 %v1205
  %1693 = vmatmul.bf16.gmra.mxu0 %v1683
  %v1694 = vpop.f32.mrf.mxu0
  %v1695 = vadd.f32 0.0, %v1694
  %v1696 = vpop.f32.mrf.mxu0
  %1697 = vdwg.mxu0
  %s1698 = scalar_lea.vmem [#allocation6], 12
  %v1699 = vld [vmem:[%s1698] sm:$0x3]
  %v1700 = vadd.f32 %v1699, %v1676
  %s1701 = scalar_lea.vmem [#allocation7], 2
  %v1702 = vld [vmem:[%s1701] sm:$0x3]
  %v1703 = vadd.f32 %v1702, %v1695
  %v1705 = vrot.slane %v1703, 6
  %v1707 = vsel %vm329, %v1700, %v1705
  %v1708 = vmul.f32 %v1707, 0.5
  %v1709 = vtanh.pop %v1708
  %v1710 = vmul.f32 %v1709, 0.5
  %v1711 = vadd.f32 %v1710, 0.5
  %v1712 = vtanh.pop %v1707
  %v1713 = vmul.f32 %v1711, %v1644
  %1715 = vrot.lane.b32.xlu0 %v1712, 120
  %v1716 = vpop.permute.xlu0 %1715
  %v1718 = vmul.f32 %v1711, %v1716
  %1720 = vrot.lane.b32.xlu0 %v1718, 4
  %v1721 = vpop.permute.xlu0 %1720
  %v1723 = vadd.f32 %v1713, %v1721
  %v1724 = vtanh.pop %v1723
  %1726 = vrot.lane.b32.xlu0 %v1724, 8
  %v1727 = vpop.permute.xlu0 %1726
  %v1729 = vmul.f32 %v1711, %v1727
  %1731 = vrot.lane.b32.xlu0 %v1729, 116
  %v1732 = vpop.permute.xlu0 %1731
  %s1734 = scalar_lea.vmem [#allocation8], 12
  %1735 = vst.msk [vmem:[%s1734] sm:$0x3] %vm1259, %v1732
  %s1736 = scalar_lea.vmem [#allocation9], 2
  %1737 = vst.msk [vmem:[%s1736 - $0x2] sm:$0xc] %vm1262, %v1732
  %v1738 = vpack.c.bf16 %v1729, %v1729
  %1740 = vrot.lane.b32.xlu0 %v1738, 116
  %v1741 = vpop.permute.xlu0 %1740
  %v1743 = vsel %vm1179, %v1741, 0
  %1745 = vmatpush.bf16.msra.mxu0 0
  %1746 = vmatpush.bf16.msra.mxu0 0
  %1747 = vmatpush.bf16.msra.mxu0 0
  %1748 = vmatpush.bf16.msra.mxu0 0
  %1749 = vmatpush.bf16.msra.mxu0 0
  %1750 = vmatpush.bf16.msra.mxu0 0
  %1751 = vmatpush.bf16.msra.mxu0 0
  %1752 = vmatpush.bf16.msra.mxu0 %v1184
  %1753 = vmatmul.bf16.gmra.mxu0 %v1743
  %v1754 = vpop.f32.mrf.mxu0
  %v1755 = vadd.f32 0.0, %v1754
  %v1756 = vpop.f32.mrf.mxu0
  %1757 = vdwg.mxu0
  %v1758 = vrot.slane %v1738, 1
  %1759 = vrot.lane.b32.xlu0 %v1758, 116
  %v1760 = vpop.permute.xlu0 %1759
  %v1762 = vsel %vm1179, %v1760, 0
  %1764 = vmatpush.bf16.msra.mxu0 0
  %1765 = vmatpush.bf16.msra.mxu0 0
  %1766 = vmatpush.bf16.msra.mxu0 0
  %1767 = vmatpush.bf16.msra.mxu0 0
  %1768 = vmatpush.bf16.msra.mxu0 0
  %1769 = vmatpush.bf16.msra.mxu0 0
  %1770 = vmatpush.bf16.msra.mxu0 0
  %1771 = vmatpush.bf16.msra.mxu0 %v1205
  %1772 = vmatmul.bf16.gmra.mxu0 %v1762
  %v1773 = vpop.f32.mrf.mxu0
  %v1774 = vadd.f32 0.0, %v1773
  %v1775 = vpop.f32.mrf.mxu0
  %1776 = vdwg.mxu0
  %s1777 = scalar_lea.vmem [#allocation6], 14
  %v1778 = vld [vmem:[%s1777] sm:$0x3]
  %v1779 = vadd.f32 %v1778, %v1755
  %v1780 = vld [vmem:[#allocation7] sm:$0x3]
  %v1781 = vadd.f32 %v1780, %v1774
  %v1783 = vrot.slane %v1781, 6
  %v1785 = vsel %vm329, %v1779, %v1783
  %v1786 = vmul.f32 %v1785, 0.5
  %v1787 = vtanh.pop %v1786
  %v1788 = vmul.f32 %v1787, 0.5
  %v1789 = vadd.f32 %v1788, 0.5
  %v1790 = vtanh.pop %v1785
  %v1791 = vmul.f32 %v1789, %v1723
  %1793 = vrot.lane.b32.xlu0 %v1790, 120
  %v1794 = vpop.permute.xlu0 %1793
  %v1796 = vmul.f32 %v1789, %v1794
  %1798 = vrot.lane.b32.xlu0 %v1796, 4
  %v1799 = vpop.permute.xlu0 %1798
  %v1801 = vadd.f32 %v1791, %v1799
  %v1802 = vtanh.pop %v1801
  %1804 = vrot.lane.b32.xlu0 %v1802, 8
  %v1805 = vpop.permute.xlu0 %1804
  %v1807 = vmul.f32 %v1789, %v1805
  %1809 = vrot.lane.b32.xlu0 %v1807, 116
  %v1810 = vpop.permute.xlu0 %1809
  %s1812 = scalar_lea.vmem [#allocation8], 14
  %1813 = vst.msk [vmem:[%s1812] sm:$0x3] %vm1259, %v1810
  %1814 = vst.msk [vmem:[#allocation9 - $0x2] sm:$0xc] %vm1262, %v1810
  %v1815 = vld [vmem:[#allocation8] sm:$0x3]
  %v1816 = vld [vmem:[#allocation8 + $0x2] sm:$0x3]
  %v1817 = vld [vmem:[#allocation8 + $0x4] sm:$0x3]
  %v1818 = vld [vmem:[#allocation8 + $0x6] sm:$0x3]
  %v1819 = vld [vmem:[#allocation8 + $0x8] sm:$0x3]
  %v1820 = vld [vmem:[#allocation8 + $0xa] sm:$0x3]
  %v1821 = vld [vmem:[#allocation8 + $0xc] sm:$0x3]
  %v1822 = vld [vmem:[#allocation8 + $0xe] sm:$0x3]
  %v1823 = vld [vmem:[#allocation9] sm:$0x3]
  %v1824 = vld [vmem:[#allocation9 + $0x2] sm:$0x3]
  %v1825 = vld [vmem:[#allocation9 + $0x4] sm:$0x3]
  %v1826 = vld [vmem:[#allocation9 + $0x6] sm:$0x3]
  %v1827 = vld [vmem:[#allocation9 + $0x8] sm:$0x3]
  %v1828 = vld [vmem:[#allocation9 + $0xa] sm:$0x3]
  %v1829 = vld [vmem:[#allocation9 + $0xc] sm:$0x3]
  %v1830 = vld [vmem:[#allocation9 + $0xe] sm:$0x3]
  %1839 = vst [vmem:[#allocation1] ss:$4 sm:$0xff] %v1815
  %s1840 = scalar_lea.vmem [#allocation1], 1
  %1841 = vst [vmem:[%s1840] ss:$4 sm:$0xff] %v1816
  %s1842 = scalar_lea.vmem [#allocation1], 2
  %1843 = vst [vmem:[%s1842] ss:$4 sm:$0xff] %v1817
  %s1844 = scalar_lea.vmem [#allocation1], 3
  %1845 = vst [vmem:[%s1844] ss:$4 sm:$0xff] %v1818
  %s1846 = scalar_lea.vmem [#allocation1], 32
  %1847 = vst [vmem:[%s1846] ss:$4 sm:$0xff] %v1819
  %s1848 = scalar_lea.vmem [#allocation1], 33
  %1849 = vst [vmem:[%s1848] ss:$4 sm:$0xff] %v1820
  %s1850 = scalar_lea.vmem [#allocation1], 34
  %1851 = vst [vmem:[%s1850] ss:$4 sm:$0xff] %v1821
  %s1852 = scalar_lea.vmem [#allocation1], 35
  %1853 = vst [vmem:[%s1852] ss:$4 sm:$0xff] %v1822
  %v1854 = vld.sshfl [vmem:[#allocation1] sm:$0xff pattern:$0x73625140]
  %v1855 = vld.sshfl [vmem:[#allocation1 + $0x20] sm:$0xff pattern:$0x73625140]
  %1866 = vst [vmem:[#allocation1] ss:$4 sm:$0xff] %v1823
  %s1867 = scalar_lea.vmem [#allocation1], 1
  %1868 = vst [vmem:[%s1867] ss:$4 sm:$0xff] %v1824
  %s1869 = scalar_lea.vmem [#allocation1], 2
  %1870 = vst [vmem:[%s1869] ss:$4 sm:$0xff] %v1825
  %s1871 = scalar_lea.vmem [#allocation1], 3
  %1872 = vst [vmem:[%s1871] ss:$4 sm:$0xff] %v1826
  %s1873 = scalar_lea.vmem [#allocation1], 32
  %1874 = vst [vmem:[%s1873] ss:$4 sm:$0xff] %v1827
  %s1875 = scalar_lea.vmem [#allocation1], 33
  %1876 = vst [vmem:[%s1875] ss:$4 sm:$0xff] %v1828
  %s1877 = scalar_lea.vmem [#allocation1], 34
  %1878 = vst [vmem:[%s1877] ss:$4 sm:$0xff] %v1829
  %s1879 = scalar_lea.vmem [#allocation1], 35
  %1880 = vst [vmem:[%s1879] ss:$4 sm:$0xff] %v1830
  %v1881 = vld.sshfl [vmem:[#allocation1] sm:$0xff pattern:$0x73625140]
  %v1882 = vld.sshfl [vmem:[#allocation1 + $0x20] sm:$0xff pattern:$0x73625140]
  %1883 = vrot.lane.b32.xlu0 %v1881, 4
  %v1884 = vpop.permute.xlu0 %1883
  %1885 = vrot.lane.b32.xlu0 %v1882, 4
  %v1886 = vpop.permute.xlu0 %1885
  %v1889 = vsel %vm1179, %v1854, %v1884
  %v1890 = vsel %vm1179, %v1855, %v1886
  %v1891 = vpack.c.bf16 %v1890, %v1889
  %v1892 = vld [vmem:[%s15] sm:$0xf]
  %v1893 = vld [vmem:[%s16] sm:$0x1]
  %v1895 = vperm.slane %v1893, 0
  %vm1897 = vcmask 64512
  %v1899 = vsel %vm1897, %v1891, 0
  %vm1901 = vcmask 1043456
  %v1903 = vsel %vm1901, %v1892, 0
  %1905 = vmatpush.bf16.msra.mxu0 0
  %1906 = vmatpush.bf16.msra.mxu0 0
  %1907 = vmatpush.bf16.msra.mxu0 0
  %1908 = vmatpush.bf16.msra.mxu0 0
  %1909 = vmatpush.bf16.msra.mxu0 0
  %1910 = vmatpush.bf16.msra.mxu0 0
  %1911 = vmatpush.bf16.msra.mxu0 0
  %1912 = vmatpush.bf16.msra.mxu0 %v1903
  %1913 = vmatmul.bf16.gmra.mxu0 %v1899
  %v1914 = vpop.f32.mrf.mxu0
  %v1915 = vadd.f32 %v1895, %v1914
  %v1916 = vpop.f32.mrf.mxu0
  %v1917 = vadd.f32 %v1895, %v1916
  %1918 = vdwg.mxu0
  %1919 = vst [vmem:[%s17] sm:$0xff] %v1915
  %1920 = vst [vmem:[%s17 + $0x8] sm:$0xff] %v1917
  // Predicated region
  $region70: #{bilstm_dec_cr2_forward.3} parent=0 // pred_check
    _
  $region71: #{bilstm_dec_cr2_forward.3} parent=0 // pred_check_branch
    %1922 = sbr.rel (0) target = $region73
  $region72: #{bilstm_dec_cr2_forward.3} parent=0 // pred_region
    _
  $region73: #{bilstm_dec_cr2_forward.3} parent=0 // pred_fallthru
    _
  // Predicated region
  $region74: #{bilstm_dec_cr2_forward.3} parent=0 // pred_check
    _
  $region75: #{bilstm_dec_cr2_forward.3} parent=0 // pred_check_branch
    %1924 = sbr.rel (0) target = $region77
  $region76: #{bilstm_dec_cr2_forward.3} parent=0 // pred_region
    _
  $region77: #{bilstm_dec_cr2_forward.3} parent=0 // pred_fallthru
    _

</llo_original>
